<compile_context>
chip_gen: v7x
topology: tpu7x:2x2x1
jax: 0.10.0
libtpu: 0.0.40
codegen_flags: <defaults>
</compile_context>

<pallas_src>
import math
import functools

import jax
import jax.numpy as jnp
from jax.experimental import pallas as pl
from jax.experimental.pallas import tpu as pltpu


# ----------------------------- helpers ---------------------------------------

def _rmsnorm(x, eps=1e-6):
    xf = x.astype(jnp.float32)
    var = jnp.mean(xf * xf, axis=-1, keepdims=True)
    return xf * jax.lax.rsqrt(var + eps)


def _rope_head(uh, cos, sin, d):
    # uh: (rows, head_dim) f32, cos/sin: (rows, d) f32.
    u1 = uh[:, :d]
    u2 = uh[:, d:]
    return jnp.concatenate([u1 * cos + u2 * sin, -u1 * sin + u2 * cos], axis=1)


# ----------------------------- kernel ----------------------------------------

def block_kernel(x_ref, cos_ref, sin_ref, wqkv_ref, wproj_ref, wfc_ref,
                 wcproj_ref, out_ref, k_scr, v_scr, *,
                 n_head, head_dim, mlp_chunk, mixer_scale, compute_dtype,
                 approx_recip):
    qi = pl.program_id(1)
    tq, C = x_ref.shape
    hd = head_dim
    d = hd // 2
    cdt = compute_dtype
    scale = 1.0 / math.sqrt(hd)
    row0 = pl.multiple_of(qi * tq, tq)

    # ---- per tile: one rmsnorm, fused QKV projection -----------------------
    x_t = x_ref[...].astype(jnp.float32)                       # (tq, C)
    h_t = _rmsnorm(x_t)
    qkv = jnp.dot(h_t.astype(cdt), wqkv_ref[...],
                  preferred_element_type=jnp.float32)          # (tq, 3C) f32
    cos_t = cos_ref[...]                                       # (tq, d)
    sin_t = sin_ref[...]

    # ---- incremental K/V: rotate this tile's K and append rows to scratch --
    q_heads = []
    k_heads = []
    for hh in range(n_head):
        q_heads.append(_rope_head(qkv[:, hh * hd:(hh + 1) * hd],
                                  cos_t, sin_t, d).astype(cdt))
        k_heads.append(_rope_head(qkv[:, C + hh * hd:C + (hh + 1) * hd],
                                  cos_t, sin_t, d))
    k_scr[pl.ds(row0, tq), :] = jnp.concatenate(k_heads, axis=1).astype(cdt)
    v_scr[pl.ds(row0, tq), :] = qkv[:, 2 * C:].astype(cdt)

    # ---- flash-style causal attention over k-tiles 0..qi --------------------
    rows = jax.lax.broadcasted_iota(jnp.int32, (tq, tq), 0)
    cols = jax.lax.broadcasted_iota(jnp.int32, (tq, tq), 1)
    diag_ok = rows >= cols                                     # within-block mask

    def kv_step(j, carry):
        c0 = pl.multiple_of(j * tq, tq)
        k_blk = k_scr[pl.ds(c0, tq), :]                        # (tq, C) cdt
        v_blk = v_scr[pl.ds(c0, tq), :]
        valid = jnp.logical_or(j < qi, diag_ok)                # mask only diag blk
        new = []
        for hh in range(n_head):
            m, l, acc = carry[hh]
            kh = k_blk[:, hh * hd:(hh + 1) * hd]
            vh = v_blk[:, hh * hd:(hh + 1) * hd]
            s = jax.lax.dot_general(q_heads[hh], kh, (((1,), (1,)), ((), ())),
                                    preferred_element_type=jnp.float32) * scale
            s = jnp.where(valid, s, -1e30)
            m_new = jnp.maximum(m, jnp.max(s, axis=-1, keepdims=True))
            alpha = jnp.exp(m - m_new)
            p = jnp.exp(s - m_new)
            l_new = alpha * l + jnp.sum(p, axis=-1, keepdims=True)
            acc_new = alpha * acc + jnp.dot(p.astype(cdt), vh,
                                            preferred_element_type=jnp.float32)
            new.append((m_new, l_new, acc_new))
        return new

    init = [(jnp.full((tq, 1), -1e30, jnp.float32),
             jnp.zeros((tq, 1), jnp.float32),
             jnp.zeros((tq, hd), jnp.float32)) for _ in range(n_head)]
    final = jax.lax.fori_loop(0, qi + 1, kv_step, init)

    y_heads = []
    for hh in range(n_head):
        _, l, acc = final[hh]
        if approx_recip:
            y_heads.append(acc * pl.reciprocal(l, approx=True))
        else:
            y_heads.append(acc / l)
    y = jnp.concatenate(y_heads, axis=1)                       # (tq, C) f32

    attn = jnp.dot(y.astype(cdt), wproj_ref[...],
                   preferred_element_type=jnp.float32)
    x1 = x_t + mixer_scale * attn                              # f32 residual

    # ---- rmsnorm #2 + chunked MLP (exact erf-gelu) --------------------------
    h2 = _rmsnorm(x1).astype(cdt)
    F4 = wfc_ref.shape[1]
    mlp = jnp.zeros((tq, C), jnp.float32)
    for c0 in range(0, F4, mlp_chunk):
        c1 = min(c0 + mlp_chunk, F4)
        g = jnp.dot(h2, wfc_ref[:, c0:c1],
                    preferred_element_type=jnp.float32)        # (tq, chunk)
        g = 0.5 * g * (1.0 + jax.lax.erf(g * 0.7071067811865476))
        mlp = mlp + jnp.dot(g.astype(cdt), wcproj_ref[c0:c1, :],
                            preferred_element_type=jnp.float32)
    out_ref[...] = (x1 + mlp).astype(out_ref.dtype)


# ----------------------------- wrapper ----------------------------------------

def make_rotary_tables(T, head_dim, base=10000):
    inv_freq = 1.0 / (base ** (jnp.arange(0, head_dim, 2, dtype=jnp.float32)
                               / head_dim))
    t = jnp.arange(T, dtype=jnp.float32)
    freqs = jnp.outer(t, inv_freq)                 # (T, head_dim // 2)
    return jnp.cos(freqs), jnp.sin(freqs)


def block_forward(x, w_attn, w_proj, w_fc, w_cproj, *, n_head, mixer_scale,
                  q_block=None, mlp_chunk=512, compute_dtype=jnp.bfloat16):
    B, T, C = x.shape
    head_dim = C // n_head
    d = head_dim // 2
    # Production: q_block should be a multiple of 256 on v6e/v7x (128 on v5e).
    tq = T if q_block is None else q_block
    assert T % tq == 0
    assert tq == T or tq % 8 == 0
    nq = T // tq
    cdt = compute_dtype
    mlp_chunk = max(1, min(mlp_chunk, 4 * C))

    cos_td, sin_td = make_rotary_tables(T, head_dim)           # (T, d) each

    # glue: fused qkv weight, pre-transposed, cast to the MXU dtype.
    wqkv_t = w_attn.T.astype(cdt)                              # (C, 3C)  [q|k|v]
    wproj_t = w_proj.T.astype(cdt)                             # (C, C)
    wfc_t = w_fc.T.astype(cdt)                                 # (C, 4C)
    wcproj_t = w_cproj.T.astype(cdt)                           # (4C, C)

    kernel = functools.partial(
        block_kernel, n_head=n_head, head_dim=head_dim, mlp_chunk=mlp_chunk,
        mixer_scale=mixer_scale, compute_dtype=cdt,
        approx_recip=(cdt != jnp.float32))

    # VMEM budget: ~75% of the per-core physical capacity (v7x 64MiB -> 48MiB,
    # v5e/v6e 128MiB -> 96MiB).  Fallback if the info query is unavailable.
    try:
        vmem_cap = pltpu.get_tpu_info().vmem_capacity_bytes
        vmem_limit = int(0.75 * vmem_cap)
    except Exception:
        vmem_limit = 48 * 1024 * 1024

    w_isz = jnp.dtype(cdt).itemsize
    cost = pl.CostEstimate(
        flops=int(B * (24 * T * C * C + 2 * T * T * C)),
        transcendentals=int(B * (n_head * T * T // 2 + 4 * T * C)),
        bytes_accessed=int(2 * B * T * C * 4 + 12 * C * C * w_isz + 2 * T * d * 4),
    )

    def build_grid_spec(single_buffer_weights):
        def wspec(shape):
            # constant-index weights: index_map never changes, so a single
            # buffer is enough -> halves their VMEM residency.
            if single_buffer_weights:
                return pl.BlockSpec(shape, lambda b, qi: (0, 0),
                                    pipeline_mode=pl.Buffered(1))
            return pl.BlockSpec(shape, lambda b, qi: (0, 0))
        return pltpu.PrefetchScalarGridSpec(
            num_scalar_prefetch=0,
            grid=(B, nq),
            in_specs=[
                pl.BlockSpec((None, tq, C), lambda b, qi: (b, qi, 0)),  # x tile
                pl.BlockSpec((tq, d), lambda b, qi: (qi, 0)),           # cos tile
                pl.BlockSpec((tq, d), lambda b, qi: (qi, 0)),           # sin tile
                wspec((C, 3 * C)),        # wqkv_t
                wspec((C, C)),            # wproj_t
                wspec((C, 4 * C)),        # wfc_t
                wspec((4 * C, C)),        # wcproj_t
            ],
            out_specs=pl.BlockSpec((None, tq, C), lambda b, qi: (b, qi, 0)),
            scratch_shapes=[
                pltpu.VMEM((T, C), cdt),   # rotary-applied K (persists over qi)
                pltpu.VMEM((T, C), cdt),   # V
            ],
        )

    def run(single_buffer_weights):
        fn = pl.pallas_call(
            kernel,
            out_shape=jax.ShapeDtypeStruct((B, T, C), x.dtype),
            grid_spec=build_grid_spec(single_buffer_weights),
            compiler_params=pltpu.CompilerParams(
                # batch axis is independent (megacore-shardable); the q-tile
                # axis carries the K/V scratch so it must stay sequential and
                # in-order on each core ("arbitrary").
                dimension_semantics=("parallel", "arbitrary"),
                vmem_limit_bytes=vmem_limit,
            ),
            cost_estimate=cost,
        )
        return fn(x, cos_td, sin_td, wqkv_t, wproj_t, wfc_t, wcproj_t)

    try:
        return jax.block_until_ready(run(True))
    except Exception:
        # pipeline_mode=pl.Buffered(1) not supported in this jax version:
        # fall back to default (double-buffered) weight specs.
        return run(False)


# ----------------------------- pure-JAX reference -----------------------------
# compute_dtype mirrors the kernel's matmul-operand casts so both the exact f32
# path and the bf16 MXU path can be validated.

def block_reference(x, w_attn, w_proj, w_fc, w_cproj, n_head, mixer_scale,
                    compute_dtype=jnp.float32, base=10000):
    B, T, C = x.shape
    hd = C // n_head
    d = hd // 2
    cdt = compute_dtype

    def rms(v, eps=1e-6):
        vf = v.astype(jnp.float32)
        return vf * jax.lax.rsqrt(jnp.mean(vf * vf, -1, keepdims=True) + eps)

    def mm(a, b):
        return jnp.dot(a.astype(cdt), b.astype(cdt),
                       preferred_element_type=jnp.float32)

    h = rms(x)
    q = mm(h, w_attn[:C].T).reshape(B, T, n_head, hd)
    k = mm(h, w_attn[C:2 * C].T).reshape(B, T, n_head, hd)
    v = mm(h, w_attn[2 * C:].T).reshape(B, T, n_head, hd)

    inv_freq = 1.0 / (base ** (jnp.arange(0, hd, 2, dtype=jnp.float32) / hd))
    freqs = jnp.outer(jnp.arange(T, dtype=jnp.float32), inv_freq)
    cos = jnp.cos(freqs)[None, :, None, :]
    sin = jnp.sin(freqs)[None, :, None, :]

    def rope(u):
        u1, u2 = u[..., :d], u[..., d:]
        return jnp.concatenate([u1 * cos + u2 * sin, -u1 * sin + u2 * cos], axis=-1)

    q, k = rope(q), rope(k)
    s = jnp.einsum('bqhd,bkhd->bhqk', q.astype(cdt), k.astype(cdt),
                   preferred_element_type=jnp.float32) / math.sqrt(hd)
    causal = jnp.tril(jnp.ones((T, T), bool))
    s = jnp.where(causal[None, None], s, -jnp.inf)
    p = jax.nn.softmax(s, axis=-1)
    y = jnp.einsum('bhqk,bkhd->bqhd', p.astype(cdt), v.astype(cdt),
                   preferred_element_type=jnp.float32).reshape(B, T, C)
    x1 = x + mixer_scale * mm(y, w_proj.T)
    h2 = rms(x1)
    g = mm(h2, w_fc.T)
    g = 0.5 * g * (1.0 + jax.lax.erf(g * 0.7071067811865476))
    return x1 + mm(g, w_cproj.T)


# ----------------------------- main -------------------------------------------

if __name__ == "__main__":
    B, T, C, H, n_layer = 2, 16, 32, 4, 2
    mixer_scale = 1.0 / math.sqrt(2 * n_layer)

    key = jax.random.PRNGKey(0)
    kx, k1, k2, k3, k4 = jax.random.split(key, 5)

    def init_linear(k, out_f, in_f):   # deterministic stand-in for nn.Linear init
        bound = 1.0 / math.sqrt(in_f)
        return jax.random.uniform(k, (out_f, in_f), jnp.float32, -bound, bound)

    x = jax.random.normal(kx, (B, T, C), jnp.float32)
    w_attn = init_linear(k1, 3 * C, C)       # c_attn.weight   (3C, C)
    w_proj = init_linear(k2, C, C)           # c_proj.weight   (C, C)
    w_fc = init_linear(k3, 4 * C, C)         # mlp.c_fc.weight (4C, C)
    w_cproj = init_linear(k4, C, 4 * C)      # mlp.c_proj.weight (C, 4C)

    # 1) exact f32 compute path: tight correctness check.
    out_f32 = block_forward(x, w_attn, w_proj, w_fc, w_cproj, n_head=H,
                            mixer_scale=mixer_scale, q_block=8,
                            compute_dtype=jnp.float32)
    out_f32 = jax.block_until_ready(out_f32)
    ref_f32 = block_reference(x, w_attn, w_proj, w_fc, w_cproj, H, mixer_scale,
                              compute_dtype=jnp.float32)
    err32 = float(jnp.max(jnp.abs(out_f32 - ref_f32)))
    assert jnp.allclose(out_f32, ref_f32, rtol=1e-4, atol=1e-4), \
        f"f32 max abs err = {err32}"

    # 2) bf16 MXU path (the performance configuration); checked against the
    #    cast-mirrored reference with a tolerance covering online softmax and
    #    the approximate reciprocal.
    out_bf16 = block_forward(x, w_attn, w_proj, w_fc, w_cproj, n_head=H,
                             mixer_scale=mixer_scale, q_block=8,
                             compute_dtype=jnp.bfloat16)
    out_bf16 = jax.block_until_ready(out_bf16)
    ref_bf16 = block_reference(x, w_attn, w_proj, w_fc, w_cproj, H, mixer_scale,
                               compute_dtype=jnp.bfloat16)
    err16 = float(jnp.max(jnp.abs(out_bf16 - ref_bf16)))
    assert jnp.allclose(out_bf16, ref_bf16, rtol=1e-2, atol=1e-2), \
        f"bf16 max abs err = {err16}"

    print("KERNEL_OK")
</pallas_src>

<mosaic_0001>
module attributes {stable_mosaic.version = 11 : i64} {
  func.func @block_kernel(%arg0: i32, %arg1: i32, %arg2: memref<1x8x32xf32, #tpu.memory_space<vmem>>, %arg3: memref<8x4xf32, #tpu.memory_space<vmem>>, %arg4: memref<8x4xf32, #tpu.memory_space<vmem>>, %arg5: memref<32x96xf32, #tpu.memory_space<vmem>>, %arg6: memref<32x32xf32, #tpu.memory_space<vmem>>, %arg7: memref<32x128xf32, #tpu.memory_space<vmem>>, %arg8: memref<128x32xf32, #tpu.memory_space<vmem>>, %arg9: memref<1x8x32xf32, #tpu.memory_space<vmem>>, %arg10: memref<16x32xf32, #tpu.memory_space<vmem>>, %arg11: memref<16x32xf32, #tpu.memory_space<vmem>>) attributes {dimension_semantics = [#tpu.dimension_semantics<parallel>, #tpu.dimension_semantics<arbitrary>], iteration_bounds = array<i64: 2, 2>, scalar_prefetch = 0 : i64, scratch_operands = 2 : i64, tpu.core_type = #tpu.core_type<tc>, window_params = [{transform_indices = @transform_0, window_bounds = array<i64: 1, 8, 32>}, {transform_indices = @transform_1, window_bounds = array<i64: 8, 4>}, {transform_indices = @transform_2, window_bounds = array<i64: 8, 4>}, {pipeline_mode = #tpu.pipeline_mode<synchronous>, transform_indices = @transform_3, window_bounds = array<i64: 32, 96>}, {pipeline_mode = #tpu.pipeline_mode<synchronous>, transform_indices = @transform_4, window_bounds = array<i64: 32, 32>}, {pipeline_mode = #tpu.pipeline_mode<synchronous>, transform_indices = @transform_5, window_bounds = array<i64: 32, 128>}, {pipeline_mode = #tpu.pipeline_mode<synchronous>, transform_indices = @transform_6, window_bounds = array<i64: 128, 32>}, {transform_indices = @transform_7, window_bounds = array<i64: 1, 8, 32>}]} {
    %c8_i32 = arith.constant 8 : i32
    %0 = arith.muli %arg1, %c8_i32 : i32
    %1 = tpu.assume_multiple %0, 8 : i32
    %c0 = arith.constant 0 : index
    %c0_0 = arith.constant 0 : index
    %c0_1 = arith.constant 0 : index
    %2 = vector.load %arg2[%c0, %c0_0, %c0_1] : memref<1x8x32xf32, #tpu.memory_space<vmem>>, vector<1x8x32xf32>
    %3 = vector.shape_cast %2 : vector<1x8x32xf32> to vector<8x32xf32>
    %4 = arith.mulf %3, %3 : vector<8x32xf32>
    %cst = arith.constant dense<0.000000e+00> : vector<8xf32>
    %5 = vector.multi_reduction <add>, %4, %cst [1] : vector<8x32xf32> to vector<8xf32>
    %6 = vector.shape_cast %5 : vector<8xf32> to vector<8x1xf32>
    %cst_2 = arith.constant 3.200000e+01 : f32
    %7 = vector.broadcast %cst_2 : f32 to vector<8x1xf32>
    %8 = arith.divf %6, %7 : vector<8x1xf32>
    %cst_3 = arith.constant 9.99999997E-7 : f32
    %9 = vector.broadcast %cst_3 : f32 to vector<8x1xf32>
    %10 = arith.addf %8, %9 : vector<8x1xf32>
    %11 = math.rsqrt %10 : vector<8x1xf32>
    %12 = vector.broadcast %11 : vector<8x1xf32> to vector<8x32xf32>
    %13 = arith.mulf %3, %12 : vector<8x32xf32>
    %c0_4 = arith.constant 0 : index
    %c0_5 = arith.constant 0 : index
    %14 = vector.load %arg5[%c0_4, %c0_5] : memref<32x96xf32, #tpu.memory_space<vmem>>, vector<32x96xf32>
    %cst_6 = arith.constant dense<0.000000e+00> : vector<8x96xf32>
    %15 = tpu.matmul %13, %14, %cst_6 {dimension_numbers = #tpu.dot_dimension_numbers<[1], [0], [0], [1], [0, 0, 1, 1], [], []>} : vector<8x32xf32>, vector<32x96xf32>, vector<8x96xf32> -> vector<8x96xf32>
    %c0_7 = arith.constant 0 : index
    %c0_8 = arith.constant 0 : index
    %16 = vector.load %arg3[%c0_7, %c0_8] : memref<8x4xf32, #tpu.memory_space<vmem>>, vector<8x4xf32>
    %c0_9 = arith.constant 0 : index
    %c0_10 = arith.constant 0 : index
    %17 = vector.load %arg4[%c0_9, %c0_10] : memref<8x4xf32, #tpu.memory_space<vmem>>, vector<8x4xf32>
    %18 = vector.extract_strided_slice %15 {offsets = [0, 0], sizes = [8, 8], strides = [1, 1]} : vector<8x96xf32> to vector<8x8xf32>
    %19 = vector.extract_strided_slice %18 {offsets = [0, 0], sizes = [8, 4], strides = [1, 1]} : vector<8x8xf32> to vector<8x4xf32>
    %20 = vector.extract_strided_slice %18 {offsets = [0, 4], sizes = [8, 4], strides = [1, 1]} : vector<8x8xf32> to vector<8x4xf32>
    %21 = arith.mulf %19, %16 : vector<8x4xf32>
    %22 = arith.mulf %20, %17 : vector<8x4xf32>
    %23 = arith.addf %21, %22 : vector<8x4xf32>
    %cst_11 = arith.constant 0.000000e+00 : f32
    %24 = vector.broadcast %cst_11 : f32 to vector<8x4xf32>
    %25 = arith.subf %24, %19 : vector<8x4xf32>
    %26 = arith.mulf %25, %17 : vector<8x4xf32>
    %27 = arith.mulf %20, %16 : vector<8x4xf32>
    %28 = arith.addf %26, %27 : vector<8x4xf32>
    %29 = tpu.concatenate %23, %28 in 1 : vector<8x4xf32>, vector<8x4xf32> -> vector<8x8xf32>
    %30 = vector.extract_strided_slice %15 {offsets = [0, 32], sizes = [8, 8], strides = [1, 1]} : vector<8x96xf32> to vector<8x8xf32>
    %31 = vector.extract_strided_slice %30 {offsets = [0, 0], sizes = [8, 4], strides = [1, 1]} : vector<8x8xf32> to vector<8x4xf32>
    %32 = vector.extract_strided_slice %30 {offsets = [0, 4], sizes = [8, 4], strides = [1, 1]} : vector<8x8xf32> to vector<8x4xf32>
    %33 = arith.mulf %31, %16 : vector<8x4xf32>
    %34 = arith.mulf %32, %17 : vector<8x4xf32>
    %35 = arith.addf %33, %34 : vector<8x4xf32>
    %cst_12 = arith.constant 0.000000e+00 : f32
    %36 = vector.broadcast %cst_12 : f32 to vector<8x4xf32>
    %37 = arith.subf %36, %31 : vector<8x4xf32>
    %38 = arith.mulf %37, %17 : vector<8x4xf32>
    %39 = arith.mulf %32, %16 : vector<8x4xf32>
    %40 = arith.addf %38, %39 : vector<8x4xf32>
    %41 = tpu.concatenate %35, %40 in 1 : vector<8x4xf32>, vector<8x4xf32> -> vector<8x8xf32>
    %42 = vector.extract_strided_slice %15 {offsets = [0, 8], sizes = [8, 8], strides = [1, 1]} : vector<8x96xf32> to vector<8x8xf32>
    %43 = vector.extract_strided_slice %42 {offsets = [0, 0], sizes = [8, 4], strides = [1, 1]} : vector<8x8xf32> to vector<8x4xf32>
    %44 = vector.extract_strided_slice %42 {offsets = [0, 4], sizes = [8, 4], strides = [1, 1]} : vector<8x8xf32> to vector<8x4xf32>
    %45 = arith.mulf %43, %16 : vector<8x4xf32>
    %46 = arith.mulf %44, %17 : vector<8x4xf32>
    %47 = arith.addf %45, %46 : vector<8x4xf32>
    %cst_13 = arith.constant 0.000000e+00 : f32
    %48 = vector.broadcast %cst_13 : f32 to vector<8x4xf32>
    %49 = arith.subf %48, %43 : vector<8x4xf32>
    %50 = arith.mulf %49, %17 : vector<8x4xf32>
    %51 = arith.mulf %44, %16 : vector<8x4xf32>
    %52 = arith.addf %50, %51 : vector<8x4xf32>
    %53 = tpu.concatenate %47, %52 in 1 : vector<8x4xf32>, vector<8x4xf32> -> vector<8x8xf32>
    %54 = vector.extract_strided_slice %15 {offsets = [0, 40], sizes = [8, 8], strides = [1, 1]} : vector<8x96xf32> to vector<8x8xf32>
    %55 = vector.extract_strided_slice %54 {offsets = [0, 0], sizes = [8, 4], strides = [1, 1]} : vector<8x8xf32> to vector<8x4xf32>
    %56 = vector.extract_strided_slice %54 {offsets = [0, 4], sizes = [8, 4], strides = [1, 1]} : vector<8x8xf32> to vector<8x4xf32>
    %57 = arith.mulf %55, %16 : vector<8x4xf32>
    %58 = arith.mulf %56, %17 : vector<8x4xf32>
    %59 = arith.addf %57, %58 : vector<8x4xf32>
    %cst_14 = arith.constant 0.000000e+00 : f32
    %60 = vector.broadcast %cst_14 : f32 to vector<8x4xf32>
    %61 = arith.subf %60, %55 : vector<8x4xf32>
    %62 = arith.mulf %61, %17 : vector<8x4xf32>
    %63 = arith.mulf %56, %16 : vector<8x4xf32>
    %64 = arith.addf %62, %63 : vector<8x4xf32>
    %65 = tpu.concatenate %59, %64 in 1 : vector<8x4xf32>, vector<8x4xf32> -> vector<8x8xf32>
    %66 = vector.extract_strided_slice %15 {offsets = [0, 16], sizes = [8, 8], strides = [1, 1]} : vector<8x96xf32> to vector<8x8xf32>
    %67 = vector.extract_strided_slice %66 {offsets = [0, 0], sizes = [8, 4], strides = [1, 1]} : vector<8x8xf32> to vector<8x4xf32>
    %68 = vector.extract_strided_slice %66 {offsets = [0, 4], sizes = [8, 4], strides = [1, 1]} : vector<8x8xf32> to vector<8x4xf32>
    %69 = arith.mulf %67, %16 : vector<8x4xf32>
    %70 = arith.mulf %68, %17 : vector<8x4xf32>
    %71 = arith.addf %69, %70 : vector<8x4xf32>
    %cst_15 = arith.constant 0.000000e+00 : f32
    %72 = vector.broadcast %cst_15 : f32 to vector<8x4xf32>
    %73 = arith.subf %72, %67 : vector<8x4xf32>
    %74 = arith.mulf %73, %17 : vector<8x4xf32>
    %75 = arith.mulf %68, %16 : vector<8x4xf32>
    %76 = arith.addf %74, %75 : vector<8x4xf32>
    %77 = tpu.concatenate %71, %76 in 1 : vector<8x4xf32>, vector<8x4xf32> -> vector<8x8xf32>
    %78 = vector.extract_strided_slice %15 {offsets = [0, 48], sizes = [8, 8], strides = [1, 1]} : vector<8x96xf32> to vector<8x8xf32>
    %79 = vector.extract_strided_slice %78 {offsets = [0, 0], sizes = [8, 4], strides = [1, 1]} : vector<8x8xf32> to vector<8x4xf32>
    %80 = vector.extract_strided_slice %78 {offsets = [0, 4], sizes = [8, 4], strides = [1, 1]} : vector<8x8xf32> to vector<8x4xf32>
    %81 = arith.mulf %79, %16 : vector<8x4xf32>
    %82 = arith.mulf %80, %17 : vector<8x4xf32>
    %83 = arith.addf %81, %82 : vector<8x4xf32>
    %cst_16 = arith.constant 0.000000e+00 : f32
    %84 = vector.broadcast %cst_16 : f32 to vector<8x4xf32>
    %85 = arith.subf %84, %79 : vector<8x4xf32>
    %86 = arith.mulf %85, %17 : vector<8x4xf32>
    %87 = arith.mulf %80, %16 : vector<8x4xf32>
    %88 = arith.addf %86, %87 : vector<8x4xf32>
    %89 = tpu.concatenate %83, %88 in 1 : vector<8x4xf32>, vector<8x4xf32> -> vector<8x8xf32>
    %90 = vector.extract_strided_slice %15 {offsets = [0, 24], sizes = [8, 8], strides = [1, 1]} : vector<8x96xf32> to vector<8x8xf32>
    %91 = vector.extract_strided_slice %90 {offsets = [0, 0], sizes = [8, 4], strides = [1, 1]} : vector<8x8xf32> to vector<8x4xf32>
    %92 = vector.extract_strided_slice %90 {offsets = [0, 4], sizes = [8, 4], strides = [1, 1]} : vector<8x8xf32> to vector<8x4xf32>
    %93 = arith.mulf %91, %16 : vector<8x4xf32>
    %94 = arith.mulf %92, %17 : vector<8x4xf32>
    %95 = arith.addf %93, %94 : vector<8x4xf32>
    %cst_17 = arith.constant 0.000000e+00 : f32
    %96 = vector.broadcast %cst_17 : f32 to vector<8x4xf32>
    %97 = arith.subf %96, %91 : vector<8x4xf32>
    %98 = arith.mulf %97, %17 : vector<8x4xf32>
    %99 = arith.mulf %92, %16 : vector<8x4xf32>
    %100 = arith.addf %98, %99 : vector<8x4xf32>
    %101 = tpu.concatenate %95, %100 in 1 : vector<8x4xf32>, vector<8x4xf32> -> vector<8x8xf32>
    %102 = vector.extract_strided_slice %15 {offsets = [0, 56], sizes = [8, 8], strides = [1, 1]} : vector<8x96xf32> to vector<8x8xf32>
    %103 = vector.extract_strided_slice %102 {offsets = [0, 0], sizes = [8, 4], strides = [1, 1]} : vector<8x8xf32> to vector<8x4xf32>
    %104 = vector.extract_strided_slice %102 {offsets = [0, 4], sizes = [8, 4], strides = [1, 1]} : vector<8x8xf32> to vector<8x4xf32>
    %105 = arith.mulf %103, %16 : vector<8x4xf32>
    %106 = arith.mulf %104, %17 : vector<8x4xf32>
    %107 = arith.addf %105, %106 : vector<8x4xf32>
    %cst_18 = arith.constant 0.000000e+00 : f32
    %108 = vector.broadcast %cst_18 : f32 to vector<8x4xf32>
    %109 = arith.subf %108, %103 : vector<8x4xf32>
    %110 = arith.mulf %109, %17 : vector<8x4xf32>
    %111 = arith.mulf %104, %16 : vector<8x4xf32>
    %112 = arith.addf %110, %111 : vector<8x4xf32>
    %113 = tpu.concatenate %107, %112 in 1 : vector<8x4xf32>, vector<8x4xf32> -> vector<8x8xf32>
    %114 = tpu.concatenate %41, %65, %89, %113 in 1 : vector<8x8xf32>, vector<8x8xf32>, vector<8x8xf32>, vector<8x8xf32> -> vector<8x32xf32>
    %115 = arith.index_cast %1 : i32 to index
    %c0_19 = arith.constant 0 : index
    %116 = vector.load %arg10[%115, %c0_19] : memref<16x32xf32, #tpu.memory_space<vmem>>, vector<8x32xf32>
    tpu.vector_store %arg10[%115, %c0_19], %114 {strides = array<i32>} : memref<16x32xf32, #tpu.memory_space<vmem>>, vector<8x32xf32>,
    %117 = vector.extract_strided_slice %15 {offsets = [0, 64], sizes = [8, 32], strides = [1, 1]} : vector<8x96xf32> to vector<8x32xf32>
    %118 = arith.index_cast %1 : i32 to index
    %c0_20 = arith.constant 0 : index
    %119 = vector.load %arg11[%118, %c0_20] : memref<16x32xf32, #tpu.memory_space<vmem>>, vector<8x32xf32>
    tpu.vector_store %arg11[%118, %c0_20], %117 {strides = array<i32>} : memref<16x32xf32, #tpu.memory_space<vmem>>, vector<8x32xf32>,
    %120 = tpu.iota {dimensions = array<i32: 0>} : vector<8x8xi32>
    %121 = tpu.iota {dimensions = array<i32: 1>} : vector<8x8xi32>
    %122 = arith.cmpi sge, %120, %121 : vector<8x8xi32>
    %cst_21 = arith.constant -1.000000e+30 : f32
    %123 = vector.broadcast %cst_21 : f32 to vector<8x1xf32>
    %cst_22 = arith.constant 0.000000e+00 : f32
    %124 = vector.broadcast %cst_22 : f32 to vector<8x1xf32>
    %cst_23 = arith.constant 0.000000e+00 : f32
    %125 = vector.broadcast %cst_23 : f32 to vector<8x8xf32>
    %cst_24 = arith.constant -1.000000e+30 : f32
    %126 = vector.broadcast %cst_24 : f32 to vector<8x1xf32>
    %cst_25 = arith.constant 0.000000e+00 : f32
    %127 = vector.broadcast %cst_25 : f32 to vector<8x1xf32>
    %cst_26 = arith.constant 0.000000e+00 : f32
    %128 = vector.broadcast %cst_26 : f32 to vector<8x8xf32>
    %cst_27 = arith.constant -1.000000e+30 : f32
    %129 = vector.broadcast %cst_27 : f32 to vector<8x1xf32>
    %cst_28 = arith.constant 0.000000e+00 : f32
    %130 = vector.broadcast %cst_28 : f32 to vector<8x1xf32>
    %cst_29 = arith.constant 0.000000e+00 : f32
    %131 = vector.broadcast %cst_29 : f32 to vector<8x8xf32>
    %cst_30 = arith.constant -1.000000e+30 : f32
    %132 = vector.broadcast %cst_30 : f32 to vector<8x1xf32>
    %cst_31 = arith.constant 0.000000e+00 : f32
    %133 = vector.broadcast %cst_31 : f32 to vector<8x1xf32>
    %cst_32 = arith.constant 0.000000e+00 : f32
    %134 = vector.broadcast %cst_32 : f32 to vector<8x8xf32>
    %c1_i32 = arith.constant 1 : i32
    %135 = arith.addi %arg1, %c1_i32 : i32
    %c0_i32 = arith.constant 0 : i32
    %136 = arith.subi %135, %c0_i32 : i32
    %137 = arith.addi %c0_i32, %136 : i32
    %c1_i32_33 = arith.constant 1 : i32
    %138:12 = scf.for %arg12 = %c0_i32 to %137 step %c1_i32_33 iter_args(%arg13 = %123, %arg14 = %124, %arg15 = %125, %arg16 = %126, %arg17 = %127, %arg18 = %128, %arg19 = %129, %arg20 = %130, %arg21 = %131, %arg22 = %132, %arg23 = %133, %arg24 = %134) -> (vector<8x1xf32>, vector<8x1xf32>, vector<8x8xf32>, vector<8x1xf32>, vector<8x1xf32>, vector<8x8xf32>, vector<8x1xf32>, vector<8x1xf32>, vector<8x8xf32>, vector<8x1xf32>, vector<8x1xf32>, vector<8x8xf32>)  : i32 {
      %c8_i32_54 = arith.constant 8 : i32
      %181 = arith.muli %arg12, %c8_i32_54 : i32
      %182 = tpu.assume_multiple %181, 8 : i32
      %183 = arith.index_cast %182 : i32 to index
      %c0_55 = arith.constant 0 : index
      %184 = vector.load %arg10[%183, %c0_55] : memref<16x32xf32, #tpu.memory_space<vmem>>, vector<8x32xf32>
      %185 = arith.index_cast %182 : i32 to index
      %c0_56 = arith.constant 0 : index
      %186 = vector.load %arg11[%185, %c0_56] : memref<16x32xf32, #tpu.memory_space<vmem>>, vector<8x32xf32>
      %187 = arith.cmpi slt, %arg12, %arg1 : i32
      %188 = vector.broadcast %187 : i1 to vector<8x8xi1>
      %189 = arith.ori %188, %122 : vector<8x8xi1>
      %190 = vector.extract_strided_slice %184 {offsets = [0, 0], sizes = [8, 8], strides = [1, 1]} : vector<8x32xf32> to vector<8x8xf32>
      %191 = vector.extract_strided_slice %186 {offsets = [0, 0], sizes = [8, 8], strides = [1, 1]} : vector<8x32xf32> to vector<8x8xf32>
      %cst_57 = arith.constant dense<0.000000e+00> : vector<8x8xf32>
      %192 = tpu.matmul %29, %190, %cst_57 {dimension_numbers = #tpu.dot_dimension_numbers<[1], [1], [0], [0], [0, 0, 1, 0], [], []>} : vector<8x8xf32>, vector<8x8xf32>, vector<8x8xf32> -> vector<8x8xf32>
      %cst_58 = arith.constant 0.353553385 : f32
      %193 = vector.broadcast %cst_58 : f32 to vector<8x8xf32>
      %194 = arith.mulf %192, %193 : vector<8x8xf32>
      %cst_59 = arith.constant -1.000000e+30 : f32
      %195 = vector.broadcast %cst_59 : f32 to vector<8x8xf32>
      %196 = arith.select %189, %194, %195 : vector<8x8xi1>, vector<8x8xf32>
      %cst_60 = arith.constant dense<0xFF800000> : vector<8xf32>
      %197 = vector.multi_reduction <maximumf>, %196, %cst_60 [1] : vector<8x8xf32> to vector<8xf32>
      %198 = vector.shape_cast %197 : vector<8xf32> to vector<8x1xf32>
      %199 = arith.maximumf %arg13, %198 : vector<8x1xf32>
      %200 = arith.subf %arg13, %199 : vector<8x1xf32>
      %201 = math.exp %200 : vector<8x1xf32>
      %202 = vector.broadcast %199 : vector<8x1xf32> to vector<8x8xf32>
      %203 = arith.subf %196, %202 : vector<8x8xf32>
      %204 = math.exp %203 : vector<8x8xf32>
      %205 = arith.mulf %201, %arg14 : vector<8x1xf32>
      %cst_61 = arith.constant dense<0.000000e+00> : vector<8xf32>
      %206 = vector.multi_reduction <add>, %204, %cst_61 [1] : vector<8x8xf32> to vector<8xf32>
      %207 = vector.shape_cast %206 : vector<8xf32> to vector<8x1xf32>
      %208 = arith.addf %205, %207 : vector<8x1xf32>
      %209 = vector.broadcast %201 : vector<8x1xf32> to vector<8x8xf32>
      %210 = arith.mulf %209, %arg15 : vector<8x8xf32>
      %cst_62 = arith.constant dense<0.000000e+00> : vector<8x8xf32>
      %211 = tpu.matmul %204, %191, %cst_62 {dimension_numbers = #tpu.dot_dimension_numbers<[1], [0], [0], [1], [0, 0, 1, 1], [], []>} : vector<8x8xf32>, vector<8x8xf32>, vector<8x8xf32> -> vector<8x8xf32>
      %212 = arith.addf %210, %211 : vector<8x8xf32>
      %213 = vector.extract_strided_slice %184 {offsets = [0, 8], sizes = [8, 8], strides = [1, 1]} : vector<8x32xf32> to vector<8x8xf32>
      %214 = vector.extract_strided_slice %186 {offsets = [0, 8], sizes = [8, 8], strides = [1, 1]} : vector<8x32xf32> to vector<8x8xf32>
      %cst_63 = arith.constant dense<0.000000e+00> : vector<8x8xf32>
      %215 = tpu.matmul %53, %213, %cst_63 {dimension_numbers = #tpu.dot_dimension_numbers<[1], [1], [0], [0], [0, 0, 1, 0], [], []>} : vector<8x8xf32>, vector<8x8xf32>, vector<8x8xf32> -> vector<8x8xf32>
      %cst_64 = arith.constant 0.353553385 : f32
      %216 = vector.broadcast %cst_64 : f32 to vector<8x8xf32>
      %217 = arith.mulf %215, %216 : vector<8x8xf32>
      %cst_65 = arith.constant -1.000000e+30 : f32
      %218 = vector.broadcast %cst_65 : f32 to vector<8x8xf32>
      %219 = arith.select %189, %217, %218 : vector<8x8xi1>, vector<8x8xf32>
      %cst_66 = arith.constant dense<0xFF800000> : vector<8xf32>
      %220 = vector.multi_reduction <maximumf>, %219, %cst_66 [1] : vector<8x8xf32> to vector<8xf32>
      %221 = vector.shape_cast %220 : vector<8xf32> to vector<8x1xf32>
      %222 = arith.maximumf %arg16, %221 : vector<8x1xf32>
      %223 = arith.subf %arg16, %222 : vector<8x1xf32>
      %224 = math.exp %223 : vector<8x1xf32>
      %225 = vector.broadcast %222 : vector<8x1xf32> to vector<8x8xf32>
      %226 = arith.subf %219, %225 : vector<8x8xf32>
      %227 = math.exp %226 : vector<8x8xf32>
      %228 = arith.mulf %224, %arg17 : vector<8x1xf32>
      %cst_67 = arith.constant dense<0.000000e+00> : vector<8xf32>
      %229 = vector.multi_reduction <add>, %227, %cst_67 [1] : vector<8x8xf32> to vector<8xf32>
      %230 = vector.shape_cast %229 : vector<8xf32> to vector<8x1xf32>
      %231 = arith.addf %228, %230 : vector<8x1xf32>
      %232 = vector.broadcast %224 : vector<8x1xf32> to vector<8x8xf32>
      %233 = arith.mulf %232, %arg18 : vector<8x8xf32>
      %cst_68 = arith.constant dense<0.000000e+00> : vector<8x8xf32>
      %234 = tpu.matmul %227, %214, %cst_68 {dimension_numbers = #tpu.dot_dimension_numbers<[1], [0], [0], [1], [0, 0, 1, 1], [], []>} : vector<8x8xf32>, vector<8x8xf32>, vector<8x8xf32> -> vector<8x8xf32>
      %235 = arith.addf %233, %234 : vector<8x8xf32>
      %236 = vector.extract_strided_slice %184 {offsets = [0, 16], sizes = [8, 8], strides = [1, 1]} : vector<8x32xf32> to vector<8x8xf32>
      %237 = vector.extract_strided_slice %186 {offsets = [0, 16], sizes = [8, 8], strides = [1, 1]} : vector<8x32xf32> to vector<8x8xf32>
      %cst_69 = arith.constant dense<0.000000e+00> : vector<8x8xf32>
      %238 = tpu.matmul %77, %236, %cst_69 {dimension_numbers = #tpu.dot_dimension_numbers<[1], [1], [0], [0], [0, 0, 1, 0], [], []>} : vector<8x8xf32>, vector<8x8xf32>, vector<8x8xf32> -> vector<8x8xf32>
      %cst_70 = arith.constant 0.353553385 : f32
      %239 = vector.broadcast %cst_70 : f32 to vector<8x8xf32>
      %240 = arith.mulf %238, %239 : vector<8x8xf32>
      %cst_71 = arith.constant -1.000000e+30 : f32
      %241 = vector.broadcast %cst_71 : f32 to vector<8x8xf32>
      %242 = arith.select %189, %240, %241 : vector<8x8xi1>, vector<8x8xf32>
      %cst_72 = arith.constant dense<0xFF800000> : vector<8xf32>
      %243 = vector.multi_reduction <maximumf>, %242, %cst_72 [1] : vector<8x8xf32> to vector<8xf32>
      %244 = vector.shape_cast %243 : vector<8xf32> to vector<8x1xf32>
      %245 = arith.maximumf %arg19, %244 : vector<8x1xf32>
      %246 = arith.subf %arg19, %245 : vector<8x1xf32>
      %247 = math.exp %246 : vector<8x1xf32>
      %248 = vector.broadcast %245 : vector<8x1xf32> to vector<8x8xf32>
      %249 = arith.subf %242, %248 : vector<8x8xf32>
      %250 = math.exp %249 : vector<8x8xf32>
      %251 = arith.mulf %247, %arg20 : vector<8x1xf32>
      %cst_73 = arith.constant dense<0.000000e+00> : vector<8xf32>
      %252 = vector.multi_reduction <add>, %250, %cst_73 [1] : vector<8x8xf32> to vector<8xf32>
      %253 = vector.shape_cast %252 : vector<8xf32> to vector<8x1xf32>
      %254 = arith.addf %251, %253 : vector<8x1xf32>
      %255 = vector.broadcast %247 : vector<8x1xf32> to vector<8x8xf32>
      %256 = arith.mulf %255, %arg21 : vector<8x8xf32>
      %cst_74 = arith.constant dense<0.000000e+00> : vector<8x8xf32>
      %257 = tpu.matmul %250, %237, %cst_74 {dimension_numbers = #tpu.dot_dimension_numbers<[1], [0], [0], [1], [0, 0, 1, 1], [], []>} : vector<8x8xf32>, vector<8x8xf32>, vector<8x8xf32> -> vector<8x8xf32>
      %258 = arith.addf %256, %257 : vector<8x8xf32>
      %259 = vector.extract_strided_slice %184 {offsets = [0, 24], sizes = [8, 8], strides = [1, 1]} : vector<8x32xf32> to vector<8x8xf32>
      %260 = vector.extract_strided_slice %186 {offsets = [0, 24], sizes = [8, 8], strides = [1, 1]} : vector<8x32xf32> to vector<8x8xf32>
      %cst_75 = arith.constant dense<0.000000e+00> : vector<8x8xf32>
      %261 = tpu.matmul %101, %259, %cst_75 {dimension_numbers = #tpu.dot_dimension_numbers<[1], [1], [0], [0], [0, 0, 1, 0], [], []>} : vector<8x8xf32>, vector<8x8xf32>, vector<8x8xf32> -> vector<8x8xf32>
      %cst_76 = arith.constant 0.353553385 : f32
      %262 = vector.broadcast %cst_76 : f32 to vector<8x8xf32>
      %263 = arith.mulf %261, %262 : vector<8x8xf32>
      %cst_77 = arith.constant -1.000000e+30 : f32
      %264 = vector.broadcast %cst_77 : f32 to vector<8x8xf32>
      %265 = arith.select %189, %263, %264 : vector<8x8xi1>, vector<8x8xf32>
      %cst_78 = arith.constant dense<0xFF800000> : vector<8xf32>
      %266 = vector.multi_reduction <maximumf>, %265, %cst_78 [1] : vector<8x8xf32> to vector<8xf32>
      %267 = vector.shape_cast %266 : vector<8xf32> to vector<8x1xf32>
      %268 = arith.maximumf %arg22, %267 : vector<8x1xf32>
      %269 = arith.subf %arg22, %268 : vector<8x1xf32>
      %270 = math.exp %269 : vector<8x1xf32>
      %271 = vector.broadcast %268 : vector<8x1xf32> to vector<8x8xf32>
      %272 = arith.subf %265, %271 : vector<8x8xf32>
      %273 = math.exp %272 : vector<8x8xf32>
      %274 = arith.mulf %270, %arg23 : vector<8x1xf32>
      %cst_79 = arith.constant dense<0.000000e+00> : vector<8xf32>
      %275 = vector.multi_reduction <add>, %273, %cst_79 [1] : vector<8x8xf32> to vector<8xf32>
      %276 = vector.shape_cast %275 : vector<8xf32> to vector<8x1xf32>
      %277 = arith.addf %274, %276 : vector<8x1xf32>
      %278 = vector.broadcast %270 : vector<8x1xf32> to vector<8x8xf32>
      %279 = arith.mulf %278, %arg24 : vector<8x8xf32>
      %cst_80 = arith.constant dense<0.000000e+00> : vector<8x8xf32>
      %280 = tpu.matmul %273, %260, %cst_80 {dimension_numbers = #tpu.dot_dimension_numbers<[1], [0], [0], [1], [0, 0, 1, 1], [], []>} : vector<8x8xf32>, vector<8x8xf32>, vector<8x8xf32> -> vector<8x8xf32>
      %281 = arith.addf %279, %280 : vector<8x8xf32>
      scf.yield %199, %208, %212, %222, %231, %235, %245, %254, %258, %268, %277, %281 : vector<8x1xf32>, vector<8x1xf32>, vector<8x8xf32>, vector<8x1xf32>, vector<8x1xf32>, vector<8x8xf32>, vector<8x1xf32>, vector<8x1xf32>, vector<8x8xf32>, vector<8x1xf32>, vector<8x1xf32>, vector<8x8xf32>
    }
    %139 = vector.broadcast %138#1 : vector<8x1xf32> to vector<8x8xf32>
    %140 = arith.divf %138#2, %139 : vector<8x8xf32>
    %141 = vector.broadcast %138#4 : vector<8x1xf32> to vector<8x8xf32>
    %142 = arith.divf %138#5, %141 : vector<8x8xf32>
    %143 = vector.broadcast %138#7 : vector<8x1xf32> to vector<8x8xf32>
    %144 = arith.divf %138#8, %143 : vector<8x8xf32>
    %145 = vector.broadcast %138#10 : vector<8x1xf32> to vector<8x8xf32>
    %146 = arith.divf %138#11, %145 : vector<8x8xf32>
    %147 = tpu.concatenate %140, %142, %144, %146 in 1 : vector<8x8xf32>, vector<8x8xf32>, vector<8x8xf32>, vector<8x8xf32> -> vector<8x32xf32>
    %c0_34 = arith.constant 0 : index
    %c0_35 = arith.constant 0 : index
    %148 = vector.load %arg6[%c0_34, %c0_35] : memref<32x32xf32, #tpu.memory_space<vmem>>, vector<32x32xf32>
    %cst_36 = arith.constant dense<0.000000e+00> : vector<8x32xf32>
    %149 = tpu.matmul %147, %148, %cst_36 {dimension_numbers = #tpu.dot_dimension_numbers<[1], [0], [0], [1], [0, 0, 1, 1], [], []>} : vector<8x32xf32>, vector<32x32xf32>, vector<8x32xf32> -> vector<8x32xf32>
    %cst_37 = arith.constant 5.000000e-01 : f32
    %150 = vector.broadcast %cst_37 : f32 to vector<8x32xf32>
    %151 = arith.mulf %150, %149 : vector<8x32xf32>
    %152 = arith.addf %3, %151 : vector<8x32xf32>
    %153 = arith.mulf %152, %152 : vector<8x32xf32>
    %cst_38 = arith.constant dense<0.000000e+00> : vector<8xf32>
    %154 = vector.multi_reduction <add>, %153, %cst_38 [1] : vector<8x32xf32> to vector<8xf32>
    %155 = vector.shape_cast %154 : vector<8xf32> to vector<8x1xf32>
    %cst_39 = arith.constant 3.200000e+01 : f32
    %156 = vector.broadcast %cst_39 : f32 to vector<8x1xf32>
    %157 = arith.divf %155, %156 : vector<8x1xf32>
    %cst_40 = arith.constant 9.99999997E-7 : f32
    %158 = vector.broadcast %cst_40 : f32 to vector<8x1xf32>
    %159 = arith.addf %157, %158 : vector<8x1xf32>
    %160 = math.rsqrt %159 : vector<8x1xf32>
    %161 = vector.broadcast %160 : vector<8x1xf32> to vector<8x32xf32>
    %162 = arith.mulf %152, %161 : vector<8x32xf32>
    %cst_41 = arith.constant 0.000000e+00 : f32
    %163 = vector.broadcast %cst_41 : f32 to vector<8x32xf32>
    %c0_42 = arith.constant 0 : index
    %c0_43 = arith.constant 0 : index
    %164 = vector.load %arg7[%c0_42, %c0_43] : memref<32x128xf32, #tpu.memory_space<vmem>>, vector<32x128xf32>
    %cst_44 = arith.constant dense<0.000000e+00> : vector<8x128xf32>
    %165 = tpu.matmul %162, %164, %cst_44 {dimension_numbers = #tpu.dot_dimension_numbers<[1], [0], [0], [1], [0, 0, 1, 1], [], []>} : vector<8x32xf32>, vector<32x128xf32>, vector<8x128xf32> -> vector<8x128xf32>
    %cst_45 = arith.constant 5.000000e-01 : f32
    %166 = vector.broadcast %cst_45 : f32 to vector<8x128xf32>
    %167 = arith.mulf %166, %165 : vector<8x128xf32>
    %cst_46 = arith.constant 0.707106769 : f32
    %168 = vector.broadcast %cst_46 : f32 to vector<8x128xf32>
    %169 = arith.mulf %165, %168 : vector<8x128xf32>
    %170 = math.erf %169 : vector<8x128xf32>
    %cst_47 = arith.constant 1.000000e+00 : f32
    %171 = vector.broadcast %cst_47 : f32 to vector<8x128xf32>
    %172 = arith.addf %171, %170 : vector<8x128xf32>
    %173 = arith.mulf %167, %172 : vector<8x128xf32>
    %c0_48 = arith.constant 0 : index
    %c0_49 = arith.constant 0 : index
    %174 = vector.load %arg8[%c0_48, %c0_49] : memref<128x32xf32, #tpu.memory_space<vmem>>, vector<128x32xf32>
    %cst_50 = arith.constant dense<0.000000e+00> : vector<8x32xf32>
    %175 = tpu.matmul %173, %174, %cst_50 {dimension_numbers = #tpu.dot_dimension_numbers<[1], [0], [0], [1], [0, 0, 1, 1], [], []>} : vector<8x128xf32>, vector<128x32xf32>, vector<8x32xf32> -> vector<8x32xf32>
    %176 = arith.addf %163, %175 : vector<8x32xf32>
    %177 = arith.addf %152, %176 : vector<8x32xf32>
    %c0_51 = arith.constant 0 : index
    %c0_52 = arith.constant 0 : index
    %c0_53 = arith.constant 0 : index
    %178 = vector.load %arg9[%c0_51, %c0_52, %c0_53] : memref<1x8x32xf32, #tpu.memory_space<vmem>>, vector<1x8x32xf32>
    %179 = vector.shape_cast %178 : vector<1x8x32xf32> to vector<8x32xf32>
    %180 = vector.shape_cast %177 : vector<8x32xf32> to vector<1x8x32xf32>
    tpu.vector_store %arg9[%c0_51, %c0_52, %c0_53], %180 {strides = array<i32>} : memref<1x8x32xf32, #tpu.memory_space<vmem>>, vector<1x8x32xf32>,
    return
  }
  func.func @transform_0(%arg0: i32, %arg1: i32) -> (i32, i32, i32) {
    %c0_i32 = arith.constant 0 : i32
    %c0_i32_0 = arith.constant 0 : i32
    return %arg0, %arg1, %c0_i32 : i32, i32, i32
  }
  func.func @transform_1(%arg0: i32, %arg1: i32) -> (i32, i32) {
    %c0_i32 = arith.constant 0 : i32
    %c0_i32_0 = arith.constant 0 : i32
    return %arg1, %c0_i32 : i32, i32
  }
  func.func @transform_2(%arg0: i32, %arg1: i32) -> (i32, i32) {
    %c0_i32 = arith.constant 0 : i32
    %c0_i32_0 = arith.constant 0 : i32
    return %arg1, %c0_i32 : i32, i32
  }
  func.func @transform_3(%arg0: i32, %arg1: i32) -> (i32, i32) {
    %c0_i32 = arith.constant 0 : i32
    %c0_i32_0 = arith.constant 0 : i32
    %c0_i32_1 = arith.constant 0 : i32
    return %c0_i32, %c0_i32_0 : i32, i32
  }
  func.func @transform_4(%arg0: i32, %arg1: i32) -> (i32, i32) {
    %c0_i32 = arith.constant 0 : i32
    %c0_i32_0 = arith.constant 0 : i32
    %c0_i32_1 = arith.constant 0 : i32
    return %c0_i32, %c0_i32_0 : i32, i32
  }
  func.func @transform_5(%arg0: i32, %arg1: i32) -> (i32, i32) {
    %c0_i32 = arith.constant 0 : i32
    %c0_i32_0 = arith.constant 0 : i32
    %c0_i32_1 = arith.constant 0 : i32
    return %c0_i32, %c0_i32_0 : i32, i32
  }
  func.func @transform_6(%arg0: i32, %arg1: i32) -> (i32, i32) {
    %c0_i32 = arith.constant 0 : i32
    %c0_i32_0 = arith.constant 0 : i32
    %c0_i32_1 = arith.constant 0 : i32
    return %c0_i32, %c0_i32_0 : i32, i32
  }
  func.func @transform_7(%arg0: i32, %arg1: i32) -> (i32, i32, i32) {
    %c0_i32 = arith.constant 0 : i32
    %c0_i32_0 = arith.constant 0 : i32
    return %arg0, %arg1, %c0_i32 : i32, i32, i32
  }
}

module attributes {stable_mosaic.version = 11 : i64} {
  func.func @block_kernel(%arg0: i32, %arg1: i32, %arg2: memref<1x8x32xf32, #tpu.memory_space<vmem>>, %arg3: memref<8x4xf32, #tpu.memory_space<vmem>>, %arg4: memref<8x4xf32, #tpu.memory_space<vmem>>, %arg5: memref<32x96xf32, #tpu.memory_space<vmem>>, %arg6: memref<32x32xf32, #tpu.memory_space<vmem>>, %arg7: memref<32x128xf32, #tpu.memory_space<vmem>>, %arg8: memref<128x32xf32, #tpu.memory_space<vmem>>, %arg9: memref<1x8x32xf32, #tpu.memory_space<vmem>>, %arg10: memref<16x32xf32, #tpu.memory_space<vmem>>, %arg11: memref<16x32xf32, #tpu.memory_space<vmem>>) attributes {dimension_semantics = [#tpu.dimension_semantics<parallel>, #tpu.dimension_semantics<arbitrary>], iteration_bounds = array<i64: 2, 2>, scalar_prefetch = 0 : i64, scratch_operands = 2 : i64, tpu.core_type = #tpu.core_type<tc>, window_params = [{transform_indices = @transform_0, window_bounds = array<i64: 1, 8, 32>}, {transform_indices = @transform_1, window_bounds = array<i64: 8, 4>}, {transform_indices = @transform_2, window_bounds = array<i64: 8, 4>}, {pipeline_mode = #tpu.pipeline_mode<synchronous>, transform_indices = @transform_3, window_bounds = array<i64: 32, 96>}, {pipeline_mode = #tpu.pipeline_mode<synchronous>, transform_indices = @transform_4, window_bounds = array<i64: 32, 32>}, {pipeline_mode = #tpu.pipeline_mode<synchronous>, transform_indices = @transform_5, window_bounds = array<i64: 32, 128>}, {pipeline_mode = #tpu.pipeline_mode<synchronous>, transform_indices = @transform_6, window_bounds = array<i64: 128, 32>}, {transform_indices = @transform_7, window_bounds = array<i64: 1, 8, 32>}]} {
    %c8_i32 = arith.constant 8 : i32
    %0 = arith.muli %arg1, %c8_i32 : i32
    %1 = tpu.assume_multiple %0, 8 : i32
    %c0 = arith.constant 0 : index
    %c0_0 = arith.constant 0 : index
    %c0_1 = arith.constant 0 : index
    %2 = vector.load %arg2[%c0, %c0_0, %c0_1] : memref<1x8x32xf32, #tpu.memory_space<vmem>>, vector<1x8x32xf32>
    %3 = vector.shape_cast %2 : vector<1x8x32xf32> to vector<8x32xf32>
    %4 = arith.mulf %3, %3 : vector<8x32xf32>
    %cst = arith.constant dense<0.000000e+00> : vector<8xf32>
    %5 = vector.multi_reduction <add>, %4, %cst [1] : vector<8x32xf32> to vector<8xf32>
    %6 = vector.shape_cast %5 : vector<8xf32> to vector<8x1xf32>
    %cst_2 = arith.constant 3.200000e+01 : f32
    %7 = vector.broadcast %cst_2 : f32 to vector<8x1xf32>
    %8 = arith.divf %6, %7 : vector<8x1xf32>
    %cst_3 = arith.constant 9.99999997E-7 : f32
    %9 = vector.broadcast %cst_3 : f32 to vector<8x1xf32>
    %10 = arith.addf %8, %9 : vector<8x1xf32>
    %11 = math.rsqrt %10 : vector<8x1xf32>
    %12 = vector.broadcast %11 : vector<8x1xf32> to vector<8x32xf32>
    %13 = arith.mulf %3, %12 : vector<8x32xf32>
    %c0_4 = arith.constant 0 : index
    %c0_5 = arith.constant 0 : index
    %14 = vector.load %arg5[%c0_4, %c0_5] : memref<32x96xf32, #tpu.memory_space<vmem>>, vector<32x96xf32>
    %cst_6 = arith.constant dense<0.000000e+00> : vector<8x96xf32>
    %15 = tpu.matmul %13, %14, %cst_6 {dimension_numbers = #tpu.dot_dimension_numbers<[1], [0], [0], [1], [0, 0, 1, 1], [], []>} : vector<8x32xf32>, vector<32x96xf32>, vector<8x96xf32> -> vector<8x96xf32>
    %c0_7 = arith.constant 0 : index
    %c0_8 = arith.constant 0 : index
    %16 = vector.load %arg3[%c0_7, %c0_8] : memref<8x4xf32, #tpu.memory_space<vmem>>, vector<8x4xf32>
    %c0_9 = arith.constant 0 : index
    %c0_10 = arith.constant 0 : index
    %17 = vector.load %arg4[%c0_9, %c0_10] : memref<8x4xf32, #tpu.memory_space<vmem>>, vector<8x4xf32>
    %18 = vector.extract_strided_slice %15 {offsets = [0, 0], sizes = [8, 8], strides = [1, 1]} : vector<8x96xf32> to vector<8x8xf32>
    %19 = vector.extract_strided_slice %18 {offsets = [0, 0], sizes = [8, 4], strides = [1, 1]} : vector<8x8xf32> to vector<8x4xf32>
    %20 = vector.extract_strided_slice %18 {offsets = [0, 4], sizes = [8, 4], strides = [1, 1]} : vector<8x8xf32> to vector<8x4xf32>
    %21 = arith.mulf %19, %16 : vector<8x4xf32>
    %22 = arith.mulf %20, %17 : vector<8x4xf32>
    %23 = arith.addf %21, %22 : vector<8x4xf32>
    %cst_11 = arith.constant 0.000000e+00 : f32
    %24 = vector.broadcast %cst_11 : f32 to vector<8x4xf32>
    %25 = arith.subf %24, %19 : vector<8x4xf32>
    %26 = arith.mulf %25, %17 : vector<8x4xf32>
    %27 = arith.mulf %20, %16 : vector<8x4xf32>
    %28 = arith.addf %26, %27 : vector<8x4xf32>
    %29 = tpu.concatenate %23, %28 in 1 : vector<8x4xf32>, vector<8x4xf32> -> vector<8x8xf32>
    %30 = vector.extract_strided_slice %15 {offsets = [0, 32], sizes = [8, 8], strides = [1, 1]} : vector<8x96xf32> to vector<8x8xf32>
    %31 = vector.extract_strided_slice %30 {offsets = [0, 0], sizes = [8, 4], strides = [1, 1]} : vector<8x8xf32> to vector<8x4xf32>
    %32 = vector.extract_strided_slice %30 {offsets = [0, 4], sizes = [8, 4], strides = [1, 1]} : vector<8x8xf32> to vector<8x4xf32>
    %33 = arith.mulf %31, %16 : vector<8x4xf32>
    %34 = arith.mulf %32, %17 : vector<8x4xf32>
    %35 = arith.addf %33, %34 : vector<8x4xf32>
    %cst_12 = arith.constant 0.000000e+00 : f32
    %36 = vector.broadcast %cst_12 : f32 to vector<8x4xf32>
    %37 = arith.subf %36, %31 : vector<8x4xf32>
    %38 = arith.mulf %37, %17 : vector<8x4xf32>
    %39 = arith.mulf %32, %16 : vector<8x4xf32>
    %40 = arith.addf %38, %39 : vector<8x4xf32>
    %41 = tpu.concatenate %35, %40 in 1 : vector<8x4xf32>, vector<8x4xf32> -> vector<8x8xf32>
    %42 = vector.extract_strided_slice %15 {offsets = [0, 8], sizes = [8, 8], strides = [1, 1]} : vector<8x96xf32> to vector<8x8xf32>
    %43 = vector.extract_strided_slice %42 {offsets = [0, 0], sizes = [8, 4], strides = [1, 1]} : vector<8x8xf32> to vector<8x4xf32>
    %44 = vector.extract_strided_slice %42 {offsets = [0, 4], sizes = [8, 4], strides = [1, 1]} : vector<8x8xf32> to vector<8x4xf32>
    %45 = arith.mulf %43, %16 : vector<8x4xf32>
    %46 = arith.mulf %44, %17 : vector<8x4xf32>
    %47 = arith.addf %45, %46 : vector<8x4xf32>
    %cst_13 = arith.constant 0.000000e+00 : f32
    %48 = vector.broadcast %cst_13 : f32 to vector<8x4xf32>
    %49 = arith.subf %48, %43 : vector<8x4xf32>
    %50 = arith.mulf %49, %17 : vector<8x4xf32>
    %51 = arith.mulf %44, %16 : vector<8x4xf32>
    %52 = arith.addf %50, %51 : vector<8x4xf32>
    %53 = tpu.concatenate %47, %52 in 1 : vector<8x4xf32>, vector<8x4xf32> -> vector<8x8xf32>
    %54 = vector.extract_strided_slice %15 {offsets = [0, 40], sizes = [8, 8], strides = [1, 1]} : vector<8x96xf32> to vector<8x8xf32>
    %55 = vector.extract_strided_slice %54 {offsets = [0, 0], sizes = [8, 4], strides = [1, 1]} : vector<8x8xf32> to vector<8x4xf32>
    %56 = vector.extract_strided_slice %54 {offsets = [0, 4], sizes = [8, 4], strides = [1, 1]} : vector<8x8xf32> to vector<8x4xf32>
    %57 = arith.mulf %55, %16 : vector<8x4xf32>
    %58 = arith.mulf %56, %17 : vector<8x4xf32>
    %59 = arith.addf %57, %58 : vector<8x4xf32>
    %cst_14 = arith.constant 0.000000e+00 : f32
    %60 = vector.broadcast %cst_14 : f32 to vector<8x4xf32>
    %61 = arith.subf %60, %55 : vector<8x4xf32>
    %62 = arith.mulf %61, %17 : vector<8x4xf32>
    %63 = arith.mulf %56, %16 : vector<8x4xf32>
    %64 = arith.addf %62, %63 : vector<8x4xf32>
    %65 = tpu.concatenate %59, %64 in 1 : vector<8x4xf32>, vector<8x4xf32> -> vector<8x8xf32>
    %66 = vector.extract_strided_slice %15 {offsets = [0, 16], sizes = [8, 8], strides = [1, 1]} : vector<8x96xf32> to vector<8x8xf32>
    %67 = vector.extract_strided_slice %66 {offsets = [0, 0], sizes = [8, 4], strides = [1, 1]} : vector<8x8xf32> to vector<8x4xf32>
    %68 = vector.extract_strided_slice %66 {offsets = [0, 4], sizes = [8, 4], strides = [1, 1]} : vector<8x8xf32> to vector<8x4xf32>
    %69 = arith.mulf %67, %16 : vector<8x4xf32>
    %70 = arith.mulf %68, %17 : vector<8x4xf32>
    %71 = arith.addf %69, %70 : vector<8x4xf32>
    %cst_15 = arith.constant 0.000000e+00 : f32
    %72 = vector.broadcast %cst_15 : f32 to vector<8x4xf32>
    %73 = arith.subf %72, %67 : vector<8x4xf32>
    %74 = arith.mulf %73, %17 : vector<8x4xf32>
    %75 = arith.mulf %68, %16 : vector<8x4xf32>
    %76 = arith.addf %74, %75 : vector<8x4xf32>
    %77 = tpu.concatenate %71, %76 in 1 : vector<8x4xf32>, vector<8x4xf32> -> vector<8x8xf32>
    %78 = vector.extract_strided_slice %15 {offsets = [0, 48], sizes = [8, 8], strides = [1, 1]} : vector<8x96xf32> to vector<8x8xf32>
    %79 = vector.extract_strided_slice %78 {offsets = [0, 0], sizes = [8, 4], strides = [1, 1]} : vector<8x8xf32> to vector<8x4xf32>
    %80 = vector.extract_strided_slice %78 {offsets = [0, 4], sizes = [8, 4], strides = [1, 1]} : vector<8x8xf32> to vector<8x4xf32>
    %81 = arith.mulf %79, %16 : vector<8x4xf32>
    %82 = arith.mulf %80, %17 : vector<8x4xf32>
    %83 = arith.addf %81, %82 : vector<8x4xf32>
    %cst_16 = arith.constant 0.000000e+00 : f32
    %84 = vector.broadcast %cst_16 : f32 to vector<8x4xf32>
    %85 = arith.subf %84, %79 : vector<8x4xf32>
    %86 = arith.mulf %85, %17 : vector<8x4xf32>
    %87 = arith.mulf %80, %16 : vector<8x4xf32>
    %88 = arith.addf %86, %87 : vector<8x4xf32>
    %89 = tpu.concatenate %83, %88 in 1 : vector<8x4xf32>, vector<8x4xf32> -> vector<8x8xf32>
    %90 = vector.extract_strided_slice %15 {offsets = [0, 24], sizes = [8, 8], strides = [1, 1]} : vector<8x96xf32> to vector<8x8xf32>
    %91 = vector.extract_strided_slice %90 {offsets = [0, 0], sizes = [8, 4], strides = [1, 1]} : vector<8x8xf32> to vector<8x4xf32>
    %92 = vector.extract_strided_slice %90 {offsets = [0, 4], sizes = [8, 4], strides = [1, 1]} : vector<8x8xf32> to vector<8x4xf32>
    %93 = arith.mulf %91, %16 : vector<8x4xf32>
    %94 = arith.mulf %92, %17 : vector<8x4xf32>
    %95 = arith.addf %93, %94 : vector<8x4xf32>
    %cst_17 = arith.constant 0.000000e+00 : f32
    %96 = vector.broadcast %cst_17 : f32 to vector<8x4xf32>
    %97 = arith.subf %96, %91 : vector<8x4xf32>
    %98 = arith.mulf %97, %17 : vector<8x4xf32>
    %99 = arith.mulf %92, %16 : vector<8x4xf32>
    %100 = arith.addf %98, %99 : vector<8x4xf32>
    %101 = tpu.concatenate %95, %100 in 1 : vector<8x4xf32>, vector<8x4xf32> -> vector<8x8xf32>
    %102 = vector.extract_strided_slice %15 {offsets = [0, 56], sizes = [8, 8], strides = [1, 1]} : vector<8x96xf32> to vector<8x8xf32>
    %103 = vector.extract_strided_slice %102 {offsets = [0, 0], sizes = [8, 4], strides = [1, 1]} : vector<8x8xf32> to vector<8x4xf32>
    %104 = vector.extract_strided_slice %102 {offsets = [0, 4], sizes = [8, 4], strides = [1, 1]} : vector<8x8xf32> to vector<8x4xf32>
    %105 = arith.mulf %103, %16 : vector<8x4xf32>
    %106 = arith.mulf %104, %17 : vector<8x4xf32>
    %107 = arith.addf %105, %106 : vector<8x4xf32>
    %cst_18 = arith.constant 0.000000e+00 : f32
    %108 = vector.broadcast %cst_18 : f32 to vector<8x4xf32>
    %109 = arith.subf %108, %103 : vector<8x4xf32>
    %110 = arith.mulf %109, %17 : vector<8x4xf32>
    %111 = arith.mulf %104, %16 : vector<8x4xf32>
    %112 = arith.addf %110, %111 : vector<8x4xf32>
    %113 = tpu.concatenate %107, %112 in 1 : vector<8x4xf32>, vector<8x4xf32> -> vector<8x8xf32>
    %114 = tpu.concatenate %41, %65, %89, %113 in 1 : vector<8x8xf32>, vector<8x8xf32>, vector<8x8xf32>, vector<8x8xf32> -> vector<8x32xf32>
    %115 = arith.index_cast %1 : i32 to index
    %c0_19 = arith.constant 0 : index
    %116 = vector.load %arg10[%115, %c0_19] : memref<16x32xf32, #tpu.memory_space<vmem>>, vector<8x32xf32>
    tpu.vector_store %arg10[%115, %c0_19], %114 {strides = array<i32>} : memref<16x32xf32, #tpu.memory_space<vmem>>, vector<8x32xf32>,
    %117 = vector.extract_strided_slice %15 {offsets = [0, 64], sizes = [8, 32], strides = [1, 1]} : vector<8x96xf32> to vector<8x32xf32>
    %118 = arith.index_cast %1 : i32 to index
    %c0_20 = arith.constant 0 : index
    %119 = vector.load %arg11[%118, %c0_20] : memref<16x32xf32, #tpu.memory_space<vmem>>, vector<8x32xf32>
    tpu.vector_store %arg11[%118, %c0_20], %117 {strides = array<i32>} : memref<16x32xf32, #tpu.memory_space<vmem>>, vector<8x32xf32>,
    %120 = tpu.iota {dimensions = array<i32: 0>} : vector<8x8xi32>
    %121 = tpu.iota {dimensions = array<i32: 1>} : vector<8x8xi32>
    %122 = arith.cmpi sge, %120, %121 : vector<8x8xi32>
    %cst_21 = arith.constant -1.000000e+30 : f32
    %123 = vector.broadcast %cst_21 : f32 to vector<8x1xf32>
    %cst_22 = arith.constant 0.000000e+00 : f32
    %124 = vector.broadcast %cst_22 : f32 to vector<8x1xf32>
    %cst_23 = arith.constant 0.000000e+00 : f32
    %125 = vector.broadcast %cst_23 : f32 to vector<8x8xf32>
    %cst_24 = arith.constant -1.000000e+30 : f32
    %126 = vector.broadcast %cst_24 : f32 to vector<8x1xf32>
    %cst_25 = arith.constant 0.000000e+00 : f32
    %127 = vector.broadcast %cst_25 : f32 to vector<8x1xf32>
    %cst_26 = arith.constant 0.000000e+00 : f32
    %128 = vector.broadcast %cst_26 : f32 to vector<8x8xf32>
    %cst_27 = arith.constant -1.000000e+30 : f32
    %129 = vector.broadcast %cst_27 : f32 to vector<8x1xf32>
    %cst_28 = arith.constant 0.000000e+00 : f32
    %130 = vector.broadcast %cst_28 : f32 to vector<8x1xf32>
    %cst_29 = arith.constant 0.000000e+00 : f32
    %131 = vector.broadcast %cst_29 : f32 to vector<8x8xf32>
    %cst_30 = arith.constant -1.000000e+30 : f32
    %132 = vector.broadcast %cst_30 : f32 to vector<8x1xf32>
    %cst_31 = arith.constant 0.000000e+00 : f32
    %133 = vector.broadcast %cst_31 : f32 to vector<8x1xf32>
    %cst_32 = arith.constant 0.000000e+00 : f32
    %134 = vector.broadcast %cst_32 : f32 to vector<8x8xf32>
    %c1_i32 = arith.constant 1 : i32
    %135 = arith.addi %arg1, %c1_i32 : i32
    %c0_i32 = arith.constant 0 : i32
    %136 = arith.subi %135, %c0_i32 : i32
    %137 = arith.addi %c0_i32, %136 : i32
    %c1_i32_33 = arith.constant 1 : i32
    %138:12 = scf.for %arg12 = %c0_i32 to %137 step %c1_i32_33 iter_args(%arg13 = %123, %arg14 = %124, %arg15 = %125, %arg16 = %126, %arg17 = %127, %arg18 = %128, %arg19 = %129, %arg20 = %130, %arg21 = %131, %arg22 = %132, %arg23 = %133, %arg24 = %134) -> (vector<8x1xf32>, vector<8x1xf32>, vector<8x8xf32>, vector<8x1xf32>, vector<8x1xf32>, vector<8x8xf32>, vector<8x1xf32>, vector<8x1xf32>, vector<8x8xf32>, vector<8x1xf32>, vector<8x1xf32>, vector<8x8xf32>)  : i32 {
      %c8_i32_54 = arith.constant 8 : i32
      %181 = arith.muli %arg12, %c8_i32_54 : i32
      %182 = tpu.assume_multiple %181, 8 : i32
      %183 = arith.index_cast %182 : i32 to index
      %c0_55 = arith.constant 0 : index
      %184 = vector.load %arg10[%183, %c0_55] : memref<16x32xf32, #tpu.memory_space<vmem>>, vector<8x32xf32>
      %185 = arith.index_cast %182 : i32 to index
      %c0_56 = arith.constant 0 : index
      %186 = vector.load %arg11[%185, %c0_56] : memref<16x32xf32, #tpu.memory_space<vmem>>, vector<8x32xf32>
      %187 = arith.cmpi slt, %arg12, %arg1 : i32
      %188 = vector.broadcast %187 : i1 to vector<8x8xi1>
      %189 = arith.ori %188, %122 : vector<8x8xi1>
      %190 = vector.extract_strided_slice %184 {offsets = [0, 0], sizes = [8, 8], strides = [1, 1]} : vector<8x32xf32> to vector<8x8xf32>
      %191 = vector.extract_strided_slice %186 {offsets = [0, 0], sizes = [8, 8], strides = [1, 1]} : vector<8x32xf32> to vector<8x8xf32>
      %cst_57 = arith.constant dense<0.000000e+00> : vector<8x8xf32>
      %192 = tpu.matmul %29, %190, %cst_57 {dimension_numbers = #tpu.dot_dimension_numbers<[1], [1], [0], [0], [0, 0, 1, 0], [], []>} : vector<8x8xf32>, vector<8x8xf32>, vector<8x8xf32> -> vector<8x8xf32>
      %cst_58 = arith.constant 0.353553385 : f32
      %193 = vector.broadcast %cst_58 : f32 to vector<8x8xf32>
      %194 = arith.mulf %192, %193 : vector<8x8xf32>
      %cst_59 = arith.constant -1.000000e+30 : f32
      %195 = vector.broadcast %cst_59 : f32 to vector<8x8xf32>
      %196 = arith.select %189, %194, %195 : vector<8x8xi1>, vector<8x8xf32>
      %cst_60 = arith.constant dense<0xFF800000> : vector<8xf32>
      %197 = vector.multi_reduction <maximumf>, %196, %cst_60 [1] : vector<8x8xf32> to vector<8xf32>
      %198 = vector.shape_cast %197 : vector<8xf32> to vector<8x1xf32>
      %199 = arith.maximumf %arg13, %198 : vector<8x1xf32>
      %200 = arith.subf %arg13, %199 : vector<8x1xf32>
      %201 = math.exp %200 : vector<8x1xf32>
      %202 = vector.broadcast %199 : vector<8x1xf32> to vector<8x8xf32>
      %203 = arith.subf %196, %202 : vector<8x8xf32>
      %204 = math.exp %203 : vector<8x8xf32>
      %205 = arith.mulf %201, %arg14 : vector<8x1xf32>
      %cst_61 = arith.constant dense<0.000000e+00> : vector<8xf32>
      %206 = vector.multi_reduction <add>, %204, %cst_61 [1] : vector<8x8xf32> to vector<8xf32>
      %207 = vector.shape_cast %206 : vector<8xf32> to vector<8x1xf32>
      %208 = arith.addf %205, %207 : vector<8x1xf32>
      %209 = vector.broadcast %201 : vector<8x1xf32> to vector<8x8xf32>
      %210 = arith.mulf %209, %arg15 : vector<8x8xf32>
      %cst_62 = arith.constant dense<0.000000e+00> : vector<8x8xf32>
      %211 = tpu.matmul %204, %191, %cst_62 {dimension_numbers = #tpu.dot_dimension_numbers<[1], [0], [0], [1], [0, 0, 1, 1], [], []>} : vector<8x8xf32>, vector<8x8xf32>, vector<8x8xf32> -> vector<8x8xf32>
      %212 = arith.addf %210, %211 : vector<8x8xf32>
      %213 = vector.extract_strided_slice %184 {offsets = [0, 8], sizes = [8, 8], strides = [1, 1]} : vector<8x32xf32> to vector<8x8xf32>
      %214 = vector.extract_strided_slice %186 {offsets = [0, 8], sizes = [8, 8], strides = [1, 1]} : vector<8x32xf32> to vector<8x8xf32>
      %cst_63 = arith.constant dense<0.000000e+00> : vector<8x8xf32>
      %215 = tpu.matmul %53, %213, %cst_63 {dimension_numbers = #tpu.dot_dimension_numbers<[1], [1], [0], [0], [0, 0, 1, 0], [], []>} : vector<8x8xf32>, vector<8x8xf32>, vector<8x8xf32> -> vector<8x8xf32>
      %cst_64 = arith.constant 0.353553385 : f32
      %216 = vector.broadcast %cst_64 : f32 to vector<8x8xf32>
      %217 = arith.mulf %215, %216 : vector<8x8xf32>
      %cst_65 = arith.constant -1.000000e+30 : f32
      %218 = vector.broadcast %cst_65 : f32 to vector<8x8xf32>
      %219 = arith.select %189, %217, %218 : vector<8x8xi1>, vector<8x8xf32>
      %cst_66 = arith.constant dense<0xFF800000> : vector<8xf32>
      %220 = vector.multi_reduction <maximumf>, %219, %cst_66 [1] : vector<8x8xf32> to vector<8xf32>
      %221 = vector.shape_cast %220 : vector<8xf32> to vector<8x1xf32>
      %222 = arith.maximumf %arg16, %221 : vector<8x1xf32>
      %223 = arith.subf %arg16, %222 : vector<8x1xf32>
      %224 = math.exp %223 : vector<8x1xf32>
      %225 = vector.broadcast %222 : vector<8x1xf32> to vector<8x8xf32>
      %226 = arith.subf %219, %225 : vector<8x8xf32>
      %227 = math.exp %226 : vector<8x8xf32>
      %228 = arith.mulf %224, %arg17 : vector<8x1xf32>
      %cst_67 = arith.constant dense<0.000000e+00> : vector<8xf32>
      %229 = vector.multi_reduction <add>, %227, %cst_67 [1] : vector<8x8xf32> to vector<8xf32>
      %230 = vector.shape_cast %229 : vector<8xf32> to vector<8x1xf32>
      %231 = arith.addf %228, %230 : vector<8x1xf32>
      %232 = vector.broadcast %224 : vector<8x1xf32> to vector<8x8xf32>
      %233 = arith.mulf %232, %arg18 : vector<8x8xf32>
      %cst_68 = arith.constant dense<0.000000e+00> : vector<8x8xf32>
      %234 = tpu.matmul %227, %214, %cst_68 {dimension_numbers = #tpu.dot_dimension_numbers<[1], [0], [0], [1], [0, 0, 1, 1], [], []>} : vector<8x8xf32>, vector<8x8xf32>, vector<8x8xf32> -> vector<8x8xf32>
      %235 = arith.addf %233, %234 : vector<8x8xf32>
      %236 = vector.extract_strided_slice %184 {offsets = [0, 16], sizes = [8, 8], strides = [1, 1]} : vector<8x32xf32> to vector<8x8xf32>
      %237 = vector.extract_strided_slice %186 {offsets = [0, 16], sizes = [8, 8], strides = [1, 1]} : vector<8x32xf32> to vector<8x8xf32>
      %cst_69 = arith.constant dense<0.000000e+00> : vector<8x8xf32>
      %238 = tpu.matmul %77, %236, %cst_69 {dimension_numbers = #tpu.dot_dimension_numbers<[1], [1], [0], [0], [0, 0, 1, 0], [], []>} : vector<8x8xf32>, vector<8x8xf32>, vector<8x8xf32> -> vector<8x8xf32>
      %cst_70 = arith.constant 0.353553385 : f32
      %239 = vector.broadcast %cst_70 : f32 to vector<8x8xf32>
      %240 = arith.mulf %238, %239 : vector<8x8xf32>
      %cst_71 = arith.constant -1.000000e+30 : f32
      %241 = vector.broadcast %cst_71 : f32 to vector<8x8xf32>
      %242 = arith.select %189, %240, %241 : vector<8x8xi1>, vector<8x8xf32>
      %cst_72 = arith.constant dense<0xFF800000> : vector<8xf32>
      %243 = vector.multi_reduction <maximumf>, %242, %cst_72 [1] : vector<8x8xf32> to vector<8xf32>
      %244 = vector.shape_cast %243 : vector<8xf32> to vector<8x1xf32>
      %245 = arith.maximumf %arg19, %244 : vector<8x1xf32>
      %246 = arith.subf %arg19, %245 : vector<8x1xf32>
      %247 = math.exp %246 : vector<8x1xf32>
      %248 = vector.broadcast %245 : vector<8x1xf32> to vector<8x8xf32>
      %249 = arith.subf %242, %248 : vector<8x8xf32>
      %250 = math.exp %249 : vector<8x8xf32>
      %251 = arith.mulf %247, %arg20 : vector<8x1xf32>
      %cst_73 = arith.constant dense<0.000000e+00> : vector<8xf32>
      %252 = vector.multi_reduction <add>, %250, %cst_73 [1] : vector<8x8xf32> to vector<8xf32>
      %253 = vector.shape_cast %252 : vector<8xf32> to vector<8x1xf32>
      %254 = arith.addf %251, %253 : vector<8x1xf32>
      %255 = vector.broadcast %247 : vector<8x1xf32> to vector<8x8xf32>
      %256 = arith.mulf %255, %arg21 : vector<8x8xf32>
      %cst_74 = arith.constant dense<0.000000e+00> : vector<8x8xf32>
      %257 = tpu.matmul %250, %237, %cst_74 {dimension_numbers = #tpu.dot_dimension_numbers<[1], [0], [0], [1], [0, 0, 1, 1], [], []>} : vector<8x8xf32>, vector<8x8xf32>, vector<8x8xf32> -> vector<8x8xf32>
      %258 = arith.addf %256, %257 : vector<8x8xf32>
      %259 = vector.extract_strided_slice %184 {offsets = [0, 24], sizes = [8, 8], strides = [1, 1]} : vector<8x32xf32> to vector<8x8xf32>
      %260 = vector.extract_strided_slice %186 {offsets = [0, 24], sizes = [8, 8], strides = [1, 1]} : vector<8x32xf32> to vector<8x8xf32>
      %cst_75 = arith.constant dense<0.000000e+00> : vector<8x8xf32>
      %261 = tpu.matmul %101, %259, %cst_75 {dimension_numbers = #tpu.dot_dimension_numbers<[1], [1], [0], [0], [0, 0, 1, 0], [], []>} : vector<8x8xf32>, vector<8x8xf32>, vector<8x8xf32> -> vector<8x8xf32>
      %cst_76 = arith.constant 0.353553385 : f32
      %262 = vector.broadcast %cst_76 : f32 to vector<8x8xf32>
      %263 = arith.mulf %261, %262 : vector<8x8xf32>
      %cst_77 = arith.constant -1.000000e+30 : f32
      %264 = vector.broadcast %cst_77 : f32 to vector<8x8xf32>
      %265 = arith.select %189, %263, %264 : vector<8x8xi1>, vector<8x8xf32>
      %cst_78 = arith.constant dense<0xFF800000> : vector<8xf32>
      %266 = vector.multi_reduction <maximumf>, %265, %cst_78 [1] : vector<8x8xf32> to vector<8xf32>
      %267 = vector.shape_cast %266 : vector<8xf32> to vector<8x1xf32>
      %268 = arith.maximumf %arg22, %267 : vector<8x1xf32>
      %269 = arith.subf %arg22, %268 : vector<8x1xf32>
      %270 = math.exp %269 : vector<8x1xf32>
      %271 = vector.broadcast %268 : vector<8x1xf32> to vector<8x8xf32>
      %272 = arith.subf %265, %271 : vector<8x8xf32>
      %273 = math.exp %272 : vector<8x8xf32>
      %274 = arith.mulf %270, %arg23 : vector<8x1xf32>
      %cst_79 = arith.constant dense<0.000000e+00> : vector<8xf32>
      %275 = vector.multi_reduction <add>, %273, %cst_79 [1] : vector<8x8xf32> to vector<8xf32>
      %276 = vector.shape_cast %275 : vector<8xf32> to vector<8x1xf32>
      %277 = arith.addf %274, %276 : vector<8x1xf32>
      %278 = vector.broadcast %270 : vector<8x1xf32> to vector<8x8xf32>
      %279 = arith.mulf %278, %arg24 : vector<8x8xf32>
      %cst_80 = arith.constant dense<0.000000e+00> : vector<8x8xf32>
      %280 = tpu.matmul %273, %260, %cst_80 {dimension_numbers = #tpu.dot_dimension_numbers<[1], [0], [0], [1], [0, 0, 1, 1], [], []>} : vector<8x8xf32>, vector<8x8xf32>, vector<8x8xf32> -> vector<8x8xf32>
      %281 = arith.addf %279, %280 : vector<8x8xf32>
      scf.yield %199, %208, %212, %222, %231, %235, %245, %254, %258, %268, %277, %281 : vector<8x1xf32>, vector<8x1xf32>, vector<8x8xf32>, vector<8x1xf32>, vector<8x1xf32>, vector<8x8xf32>, vector<8x1xf32>, vector<8x1xf32>, vector<8x8xf32>, vector<8x1xf32>, vector<8x1xf32>, vector<8x8xf32>
    }
    %139 = vector.broadcast %138#1 : vector<8x1xf32> to vector<8x8xf32>
    %140 = arith.divf %138#2, %139 : vector<8x8xf32>
    %141 = vector.broadcast %138#4 : vector<8x1xf32> to vector<8x8xf32>
    %142 = arith.divf %138#5, %141 : vector<8x8xf32>
    %143 = vector.broadcast %138#7 : vector<8x1xf32> to vector<8x8xf32>
    %144 = arith.divf %138#8, %143 : vector<8x8xf32>
    %145 = vector.broadcast %138#10 : vector<8x1xf32> to vector<8x8xf32>
    %146 = arith.divf %138#11, %145 : vector<8x8xf32>
    %147 = tpu.concatenate %140, %142, %144, %146 in 1 : vector<8x8xf32>, vector<8x8xf32>, vector<8x8xf32>, vector<8x8xf32> -> vector<8x32xf32>
    %c0_34 = arith.constant 0 : index
    %c0_35 = arith.constant 0 : index
    %148 = vector.load %arg6[%c0_34, %c0_35] : memref<32x32xf32, #tpu.memory_space<vmem>>, vector<32x32xf32>
    %cst_36 = arith.constant dense<0.000000e+00> : vector<8x32xf32>
    %149 = tpu.matmul %147, %148, %cst_36 {dimension_numbers = #tpu.dot_dimension_numbers<[1], [0], [0], [1], [0, 0, 1, 1], [], []>} : vector<8x32xf32>, vector<32x32xf32>, vector<8x32xf32> -> vector<8x32xf32>
    %cst_37 = arith.constant 5.000000e-01 : f32
    %150 = vector.broadcast %cst_37 : f32 to vector<8x32xf32>
    %151 = arith.mulf %150, %149 : vector<8x32xf32>
    %152 = arith.addf %3, %151 : vector<8x32xf32>
    %153 = arith.mulf %152, %152 : vector<8x32xf32>
    %cst_38 = arith.constant dense<0.000000e+00> : vector<8xf32>
    %154 = vector.multi_reduction <add>, %153, %cst_38 [1] : vector<8x32xf32> to vector<8xf32>
    %155 = vector.shape_cast %154 : vector<8xf32> to vector<8x1xf32>
    %cst_39 = arith.constant 3.200000e+01 : f32
    %156 = vector.broadcast %cst_39 : f32 to vector<8x1xf32>
    %157 = arith.divf %155, %156 : vector<8x1xf32>
    %cst_40 = arith.constant 9.99999997E-7 : f32
    %158 = vector.broadcast %cst_40 : f32 to vector<8x1xf32>
    %159 = arith.addf %157, %158 : vector<8x1xf32>
    %160 = math.rsqrt %159 : vector<8x1xf32>
    %161 = vector.broadcast %160 : vector<8x1xf32> to vector<8x32xf32>
    %162 = arith.mulf %152, %161 : vector<8x32xf32>
    %cst_41 = arith.constant 0.000000e+00 : f32
    %163 = vector.broadcast %cst_41 : f32 to vector<8x32xf32>
    %c0_42 = arith.constant 0 : index
    %c0_43 = arith.constant 0 : index
    %164 = vector.load %arg7[%c0_42, %c0_43] : memref<32x128xf32, #tpu.memory_space<vmem>>, vector<32x128xf32>
    %cst_44 = arith.constant dense<0.000000e+00> : vector<8x128xf32>
    %165 = tpu.matmul %162, %164, %cst_44 {dimension_numbers = #tpu.dot_dimension_numbers<[1], [0], [0], [1], [0, 0, 1, 1], [], []>} : vector<8x32xf32>, vector<32x128xf32>, vector<8x128xf32> -> vector<8x128xf32>
    %cst_45 = arith.constant 5.000000e-01 : f32
    %166 = vector.broadcast %cst_45 : f32 to vector<8x128xf32>
    %167 = arith.mulf %166, %165 : vector<8x128xf32>
    %cst_46 = arith.constant 0.707106769 : f32
    %168 = vector.broadcast %cst_46 : f32 to vector<8x128xf32>
    %169 = arith.mulf %165, %168 : vector<8x128xf32>
    %170 = math.erf %169 : vector<8x128xf32>
    %cst_47 = arith.constant 1.000000e+00 : f32
    %171 = vector.broadcast %cst_47 : f32 to vector<8x128xf32>
    %172 = arith.addf %171, %170 : vector<8x128xf32>
    %173 = arith.mulf %167, %172 : vector<8x128xf32>
    %c0_48 = arith.constant 0 : index
    %c0_49 = arith.constant 0 : index
    %174 = vector.load %arg8[%c0_48, %c0_49] : memref<128x32xf32, #tpu.memory_space<vmem>>, vector<128x32xf32>
    %cst_50 = arith.constant dense<0.000000e+00> : vector<8x32xf32>
    %175 = tpu.matmul %173, %174, %cst_50 {dimension_numbers = #tpu.dot_dimension_numbers<[1], [0], [0], [1], [0, 0, 1, 1], [], []>} : vector<8x128xf32>, vector<128x32xf32>, vector<8x32xf32> -> vector<8x32xf32>
    %176 = arith.addf %163, %175 : vector<8x32xf32>
    %177 = arith.addf %152, %176 : vector<8x32xf32>
    %c0_51 = arith.constant 0 : index
    %c0_52 = arith.constant 0 : index
    %c0_53 = arith.constant 0 : index
    %178 = vector.load %arg9[%c0_51, %c0_52, %c0_53] : memref<1x8x32xf32, #tpu.memory_space<vmem>>, vector<1x8x32xf32>
    %179 = vector.shape_cast %178 : vector<1x8x32xf32> to vector<8x32xf32>
    %180 = vector.shape_cast %177 : vector<8x32xf32> to vector<1x8x32xf32>
    tpu.vector_store %arg9[%c0_51, %c0_52, %c0_53], %180 {strides = array<i32>} : memref<1x8x32xf32, #tpu.memory_space<vmem>>, vector<1x8x32xf32>,
    return
  }
  func.func @transform_0(%arg0: i32, %arg1: i32) -> (i32, i32, i32) {
    %c0_i32 = arith.constant 0 : i32
    %c0_i32_0 = arith.constant 0 : i32
    return %arg0, %arg1, %c0_i32 : i32, i32, i32
  }
  func.func @transform_1(%arg0: i32, %arg1: i32) -> (i32, i32) {
    %c0_i32 = arith.constant 0 : i32
    %c0_i32_0 = arith.constant 0 : i32
    return %arg1, %c0_i32 : i32, i32
  }
  func.func @transform_2(%arg0: i32, %arg1: i32) -> (i32, i32) {
    %c0_i32 = arith.constant 0 : i32
    %c0_i32_0 = arith.constant 0 : i32
    return %arg1, %c0_i32 : i32, i32
  }
  func.func @transform_3(%arg0: i32, %arg1: i32) -> (i32, i32) {
    %c0_i32 = arith.constant 0 : i32
    %c0_i32_0 = arith.constant 0 : i32
    %c0_i32_1 = arith.constant 0 : i32
    return %c0_i32, %c0_i32_0 : i32, i32
  }
  func.func @transform_4(%arg0: i32, %arg1: i32) -> (i32, i32) {
    %c0_i32 = arith.constant 0 : i32
    %c0_i32_0 = arith.constant 0 : i32
    %c0_i32_1 = arith.constant 0 : i32
    return %c0_i32, %c0_i32_0 : i32, i32
  }
  func.func @transform_5(%arg0: i32, %arg1: i32) -> (i32, i32) {
    %c0_i32 = arith.constant 0 : i32
    %c0_i32_0 = arith.constant 0 : i32
    %c0_i32_1 = arith.constant 0 : i32
    return %c0_i32, %c0_i32_0 : i32, i32
  }
  func.func @transform_6(%arg0: i32, %arg1: i32) -> (i32, i32) {
    %c0_i32 = arith.constant 0 : i32
    %c0_i32_0 = arith.constant 0 : i32
    %c0_i32_1 = arith.constant 0 : i32
    return %c0_i32, %c0_i32_0 : i32, i32
  }
  func.func @transform_7(%arg0: i32, %arg1: i32) -> (i32, i32, i32) {
    %c0_i32 = arith.constant 0 : i32
    %c0_i32_0 = arith.constant 0 : i32
    return %arg0, %arg1, %c0_i32 : i32, i32, i32
  }
}

</mosaic_0001>

<llo_original>
// kernel: tpu_custom_call.1
$region0: #{tpu_custom_call.1}
  #allocation0 [shape = 'u32[]', space=smem, size = 0x4, offset = 0x4, fixed_abs, tag = 'smem constant byte address 0x4 - core index']
  #allocation1 [shape = 'u32[144,128]{1,0:T(1,128)}', space=vmem, size = 0x12000, scoped, tag = 'internal scratch']
  #allocation2 [shape = 'f32[16,32]{1,0:T(8,128)}', space=vmem, size = 0x2000, scoped, tag = 'scratch operand']
  #allocation3 [shape = 'f32[16,32]{1,0:T(8,128)}', space=vmem, size = 0x2000, scoped, tag = 'scratch operand']
  %s0 = inlined_call_operand.vmem [shape: f32[2,16,32], index: 0, kind: input, shape index: {}]
  %s1 = inlined_call_operand.vmem [shape: f32[16,4], index: 1, kind: input, shape index: {}]
  %s2 = inlined_call_operand.vmem [shape: f32[16,4], index: 2, kind: input, shape index: {}]
  %s3 = inlined_call_operand.vmem [shape: f32[32,96], index: 3, kind: input, shape index: {}]
  %s4 = inlined_call_operand.vmem [shape: f32[32,32], index: 4, kind: input, shape index: {}]
  %s5 = inlined_call_operand.vmem [shape: f32[32,128], index: 5, kind: input, shape index: {}]
  %s6 = inlined_call_operand.vmem [shape: f32[128,32], index: 6, kind: input, shape index: {}]
  %s7 = inlined_call_operand.hbm [shape: f32[2,16,32], index: 7, kind: output, shape index: {}]
  %s8 = sld [smem:[#allocation0]]
  $region68: #{tpu_custom_call.1} parent=0
    _
  %s10 = ssub.s32 1, %s8
  %s11 = scalar_select 0, %s10, %s8
  $region1: #{tpu_custom_call.1} parent=0
    #allocation4 [shape = 'u8[8192]{0}', space=vmem, size = 0x2000, scoped, tag = 'output window, operand 0']
    #allocation5 [shape = 's32[2]{0}', space=sflag, size = 0x8, scoped, tag = 'scoped memory for tpu_custom_call.1']
    %12 = vsyncpa [#allocation5], 0
    %s13 = scalar_lea.sflag [#allocation5], 1
    %14 = vsyncpa %s13, 0
    loop: start=0, step=1, limit=6
    $region2: #{tpu_custom_call.1} parent=1 // loop_pre_header
      _
    $region3: #{tpu_custom_call.1} parent=1 // loop_header
      %s16 = sphi 0, %s20
      %p17 = scmp.ge.s32.totalorder %s16, 6
      %s23 = sphi 0, %s35
      %s24 = sphi 0, %s31
      %s25 = sphi 0, %s23
      %s26 = sphi 0, %s24
      %s27 = sphi 0, %s25
      %s28 = sphi 0, %s26
      %s40 = sphi 0, %s42
      %s43 = sphi 0, %s40
      %s44 = sphi 0, %s43
      %s60 = sphi 0, %s44
      %s66 = sphi 0, %s68
      %s69 = sphi 0, %s66
      %s70 = sphi 0, %s69
      %s86 = sphi 0, %s70
      %s92 = sphi 0, %s94
      %s95 = sphi 0, %s92
      %s96 = sphi 0, %s95
      %s112 = sphi 0, %s96
      %s116 = sphi 0, %s116
      %s118 = sphi 0, %s116
      %s119 = sphi 0, %s118
      %s133 = sphi 0, %s119
      %s137 = sphi 0, %s137
      %s139 = sphi 0, %s137
      %s140 = sphi 0, %s139
      %s154 = sphi 0, %s140
      %s158 = sphi 0, %s158
      %s160 = sphi 0, %s158
      %s161 = sphi 0, %s160
      %s175 = sphi 0, %s161
      %s179 = sphi 0, %s179
      %s181 = sphi 0, %s179
      %s182 = sphi 0, %s181
      %s196 = sphi 0, %s182
      %s204 = sphi 0, %s206
      %s207 = sphi 0, %s204
      %s208 = sphi 0, %s207
      %s224 = sphi 0, %s208
    $region4: #{tpu_custom_call.1} parent=1 // loop_header_branch
      %19 = sbr.rel (%p17) target = $region8
    $region5: #{tpu_custom_call.1} parent=1 // loop_body
      %s21 = ssub.s32 %s16, 1
      %s22 = ssub.s32 %s16, 2
      %s29 = sadd.s32 1, %s24
      %p30 = scmp.ge.s32.totalorder %s29, 2
      %s31 = scalar_select %p30, 0, %s29
      %s32 = sadd.s32 1, %s23
      %s33 = scalar_select %p30, %s32, %s23
      %p34 = scmp.ge.s32.totalorder %s33, 2
      %s35 = scalar_select %p34, 0, %s33
      %s36 = ssub.s32 %s23, %s35
      %s37 = ssub.s32 %s24, %s31
      %s38 = sor.u32 %s36, %s37
      %p39 = scmp.eq.s32.totalorder %s38, 0
      %s41 = sadd.s32 %s40, 1
      %s42 = scalar_select %p39, %s40, %s41
      %p45 = pneg %p39
      %p46 = scmp.eq.s32.totalorder %s16, 3
      %p47 = por %p45, %p46
      %p48 = scmp.ne.s32.totalorder %s40, %s43
      %p49 = scmp.eq.s32.totalorder %s16, 0
      %p50 = por %p48, %p49
      %p51 = scmp.ne.s32.totalorder %s40, %s43
      %p52 = scmp.eq.s32.totalorder %s21, 3
      %p53 = por %p51, %p52
      %p54 = scmp.ne.s32.totalorder %s43, %s44
      %p55 = scmp.eq.s32.totalorder %s21, 0
      %p56 = por %p54, %p55
      %p57 = scmp.ne.s32.totalorder %s43, %s44
      %p58 = scmp.eq.s32.totalorder %s22, 3
      %p59 = por %p57, %p58
      %p61 = scmp.ne.s32.totalorder %s44, %s60
      %p62 = scmp.eq.s32.totalorder %s22, 0
      %p63 = por %p61, %p62
      %s64 = ssub.s32 %s24, %s31
      %p65 = scmp.eq.s32.totalorder %s64, 0
      %s67 = sadd.s32 %s66, 1
      %s68 = scalar_select %p65, %s66, %s67
      %p71 = pneg %p65
      %p72 = scmp.eq.s32.totalorder %s16, 3
      %p73 = por %p71, %p72
      %p74 = scmp.ne.s32.totalorder %s66, %s69
      %p75 = scmp.eq.s32.totalorder %s16, 0
      %p76 = por %p74, %p75
      %p77 = scmp.ne.s32.totalorder %s66, %s69
      %p78 = scmp.eq.s32.totalorder %s21, 3
      %p79 = por %p77, %p78
      %p80 = scmp.ne.s32.totalorder %s69, %s70
      %p81 = scmp.eq.s32.totalorder %s21, 0
      %p82 = por %p80, %p81
      %p83 = scmp.ne.s32.totalorder %s69, %s70
      %p84 = scmp.eq.s32.totalorder %s22, 3
      %p85 = por %p83, %p84
      %p87 = scmp.ne.s32.totalorder %s70, %s86
      %p88 = scmp.eq.s32.totalorder %s22, 0
      %p89 = por %p87, %p88
      %s90 = ssub.s32 %s24, %s31
      %p91 = scmp.eq.s32.totalorder %s90, 0
      %s93 = sadd.s32 %s92, 1
      %s94 = scalar_select %p91, %s92, %s93
      %p97 = pneg %p91
      %p98 = scmp.eq.s32.totalorder %s16, 3
      %p99 = por %p97, %p98
      %p100 = scmp.ne.s32.totalorder %s92, %s95
      %p101 = scmp.eq.s32.totalorder %s16, 0
      %p102 = por %p100, %p101
      %p103 = scmp.ne.s32.totalorder %s92, %s95
      %p104 = scmp.eq.s32.totalorder %s21, 3
      %p105 = por %p103, %p104
      %p106 = scmp.ne.s32.totalorder %s95, %s96
      %p107 = scmp.eq.s32.totalorder %s21, 0
      %p108 = por %p106, %p107
      %p109 = scmp.ne.s32.totalorder %s95, %s96
      %p110 = scmp.eq.s32.totalorder %s22, 3
      %p111 = por %p109, %p110
      %p113 = scmp.ne.s32.totalorder %s96, %s112
      %p114 = scmp.eq.s32.totalorder %s22, 0
      %p115 = por %p113, %p114
      %s117 = sadd.s32 %s116, 1
      %p120 = scmp.eq.s32.totalorder %s16, 3
      %p121 = scmp.ne.s32.totalorder %s116, %s118
      %p122 = scmp.eq.s32.totalorder %s16, 0
      %p123 = por %p121, %p122
      %p124 = scmp.ne.s32.totalorder %s116, %s118
      %p125 = scmp.eq.s32.totalorder %s21, 3
      %p126 = por %p124, %p125
      %p127 = scmp.ne.s32.totalorder %s118, %s119
      %p128 = scmp.eq.s32.totalorder %s21, 0
      %p129 = por %p127, %p128
      %p130 = scmp.ne.s32.totalorder %s118, %s119
      %p131 = scmp.eq.s32.totalorder %s22, 3
      %p132 = por %p130, %p131
      %p134 = scmp.ne.s32.totalorder %s119, %s133
      %p135 = scmp.eq.s32.totalorder %s22, 0
      %p136 = por %p134, %p135
      %s138 = sadd.s32 %s137, 1
      %p141 = scmp.eq.s32.totalorder %s16, 3
      %p142 = scmp.ne.s32.totalorder %s137, %s139
      %p143 = scmp.eq.s32.totalorder %s16, 0
      %p144 = por %p142, %p143
      %p145 = scmp.ne.s32.totalorder %s137, %s139
      %p146 = scmp.eq.s32.totalorder %s21, 3
      %p147 = por %p145, %p146
      %p148 = scmp.ne.s32.totalorder %s139, %s140
      %p149 = scmp.eq.s32.totalorder %s21, 0
      %p150 = por %p148, %p149
      %p151 = scmp.ne.s32.totalorder %s139, %s140
      %p152 = scmp.eq.s32.totalorder %s22, 3
      %p153 = por %p151, %p152
      %p155 = scmp.ne.s32.totalorder %s140, %s154
      %p156 = scmp.eq.s32.totalorder %s22, 0
      %p157 = por %p155, %p156
      %s159 = sadd.s32 %s158, 1
      %p162 = scmp.eq.s32.totalorder %s16, 3
      %p163 = scmp.ne.s32.totalorder %s158, %s160
      %p164 = scmp.eq.s32.totalorder %s16, 0
      %p165 = por %p163, %p164
      %p166 = scmp.ne.s32.totalorder %s158, %s160
      %p167 = scmp.eq.s32.totalorder %s21, 3
      %p168 = por %p166, %p167
      %p169 = scmp.ne.s32.totalorder %s160, %s161
      %p170 = scmp.eq.s32.totalorder %s21, 0
      %p171 = por %p169, %p170
      %p172 = scmp.ne.s32.totalorder %s160, %s161
      %p173 = scmp.eq.s32.totalorder %s22, 3
      %p174 = por %p172, %p173
      %p176 = scmp.ne.s32.totalorder %s161, %s175
      %p177 = scmp.eq.s32.totalorder %s22, 0
      %p178 = por %p176, %p177
      %s180 = sadd.s32 %s179, 1
      %p183 = scmp.eq.s32.totalorder %s16, 3
      %p184 = scmp.ne.s32.totalorder %s179, %s181
      %p185 = scmp.eq.s32.totalorder %s16, 0
      %p186 = por %p184, %p185
      %p187 = scmp.ne.s32.totalorder %s179, %s181
      %p188 = scmp.eq.s32.totalorder %s21, 3
      %p189 = por %p187, %p188
      %p190 = scmp.ne.s32.totalorder %s181, %s182
      %p191 = scmp.eq.s32.totalorder %s21, 0
      %p192 = por %p190, %p191
      %p193 = scmp.ne.s32.totalorder %s181, %s182
      %p194 = scmp.eq.s32.totalorder %s22, 3
      %p195 = por %p193, %p194
      %p197 = scmp.ne.s32.totalorder %s182, %s196
      %p198 = scmp.eq.s32.totalorder %s22, 0
      %p199 = por %p197, %p198
      %s200 = ssub.s32 %s23, %s35
      %s201 = ssub.s32 %s24, %s31
      %s202 = sor.u32 %s200, %s201
      %p203 = scmp.eq.s32.totalorder %s202, 0
      %s205 = sadd.s32 %s204, 1
      %s206 = scalar_select %p203, %s204, %s205
      %p209 = pneg %p203
      %p210 = scmp.eq.s32.totalorder %s16, 3
      %p211 = por %p209, %p210
      %p212 = scmp.ne.s32.totalorder %s204, %s207
      %p213 = scmp.eq.s32.totalorder %s16, 0
      %p214 = por %p212, %p213
      %p215 = scmp.ne.s32.totalorder %s204, %s207
      %p216 = scmp.eq.s32.totalorder %s21, 3
      %p217 = por %p215, %p216
      %p218 = scmp.ne.s32.totalorder %s207, %s208
      %p219 = scmp.eq.s32.totalorder %s21, 0
      %p220 = por %p218, %p219
      %p221 = scmp.ne.s32.totalorder %s207, %s208
      %p222 = scmp.eq.s32.totalorder %s22, 3
      %p223 = por %p221, %p222
      %p225 = scmp.ne.s32.totalorder %s208, %s224
      %p226 = scmp.eq.s32.totalorder %s22, 0
      %p227 = por %p225, %p226
      %p228 = scmp.le.s32.totalorder 1, %s16
      %p229 = scmp.lt.s32.totalorder %s16, 5
      %p230 = pnand %p228, %p229
      %p231 = pneg %p230
      // Predicated region
      $region9: #{tpu_custom_call.1} parent=5 // pred_check
        _
      $region10: #{tpu_custom_call.1} parent=5 // pred_check_branch
        %233 = sbr.rel (%p230) target = $region12
      $region11: #{tpu_custom_call.1} parent=5 // pred_region
        %s234 = ssub.s32 %s16, 1
        // Predicated region
        $region13: #{tpu_custom_call.1} parent=11 // pred_check
          %p235 = pneg %p129
        $region14: #{tpu_custom_call.1} parent=11 // pred_check_branch
          %237 = sbr.rel (%p235) target = $region16
        $region15: #{tpu_custom_call.1} parent=11 // pred_region
          _
        $region16: #{tpu_custom_call.1} parent=11 // pred_fallthru
          _
        // Predicated region
        $region17: #{tpu_custom_call.1} parent=11 // pred_check
          %p238 = pneg %p150
        $region18: #{tpu_custom_call.1} parent=11 // pred_check_branch
          %240 = sbr.rel (%p238) target = $region20
        $region19: #{tpu_custom_call.1} parent=11 // pred_region
          _
        $region20: #{tpu_custom_call.1} parent=11 // pred_fallthru
          _
        // Predicated region
        $region21: #{tpu_custom_call.1} parent=11 // pred_check
          %p241 = pneg %p171
        $region22: #{tpu_custom_call.1} parent=11 // pred_check_branch
          %243 = sbr.rel (%p241) target = $region24
        $region23: #{tpu_custom_call.1} parent=11 // pred_region
          _
        $region24: #{tpu_custom_call.1} parent=11 // pred_fallthru
          _
        // Predicated region
        $region25: #{tpu_custom_call.1} parent=11 // pred_check
          %p244 = pneg %p192
        $region26: #{tpu_custom_call.1} parent=11 // pred_check_branch
          %246 = sbr.rel (%p244) target = $region28
        $region27: #{tpu_custom_call.1} parent=11 // pred_region
          _
        $region28: #{tpu_custom_call.1} parent=11 // pred_fallthru
          _
      $region12: #{tpu_custom_call.1} parent=5 // pred_fallthru
        _
      %p247 = scmp.lt.s32.totalorder %s16, 4
      // Predicated region
      $region29: #{tpu_custom_call.1} parent=5 // pred_check
        %p248 = pneg %p247
      $region30: #{tpu_custom_call.1} parent=5 // pred_check_branch
        %250 = sbr.rel (%p248) target = $region32
      $region31: #{tpu_custom_call.1} parent=5 // pred_region
        // Predicated region
        $region33: #{tpu_custom_call.1} parent=31 // pred_check
          %p251 = pneg %p50
        $region34: #{tpu_custom_call.1} parent=31 // pred_check_branch
          %253 = sbr.rel (%p251) target = $region36
        $region35: #{tpu_custom_call.1} parent=31 // pred_region
          %p254 = scmp.lt.s32.totalorder %s23, 1
          %s255 = scalar_select %p254, %s23, 1
          %p256 = scmp.lt.s32.totalorder %s24, 1
          %s257 = scalar_select %p256, %s24, 1
          %s258 = smul.addr %s255, 2
          %s259 = sadd.s32 %s257, %s258
          %s260 = smul.addr %s259, 8
          %s261 = scalar_lea.vmem %s0, %s260
        $region36: #{tpu_custom_call.1} parent=31 // pred_fallthru
          _
        // Predicated region
        $region37: #{tpu_custom_call.1} parent=31 // pred_check
          %p262 = pneg %p76
        $region38: #{tpu_custom_call.1} parent=31 // pred_check_branch
          %264 = sbr.rel (%p262) target = $region40
        $region39: #{tpu_custom_call.1} parent=31 // pred_region
          %p265 = scmp.lt.s32.totalorder %s24, 1
          %s266 = scalar_select %p265, %s24, 1
          %s267 = smul.addr %s266, 8
          %s268 = scalar_lea.vmem %s1, %s267
        $region40: #{tpu_custom_call.1} parent=31 // pred_fallthru
          _
        // Predicated region
        $region41: #{tpu_custom_call.1} parent=31 // pred_check
          %p269 = pneg %p102
        $region42: #{tpu_custom_call.1} parent=31 // pred_check_branch
          %271 = sbr.rel (%p269) target = $region44
        $region43: #{tpu_custom_call.1} parent=31 // pred_region
          %p272 = scmp.lt.s32.totalorder %s24, 1
          %s273 = scalar_select %p272, %s24, 1
          %s274 = smul.addr %s273, 8
          %s275 = scalar_lea.vmem %s2, %s274
        $region44: #{tpu_custom_call.1} parent=31 // pred_fallthru
          _
      $region32: #{tpu_custom_call.1} parent=5 // pred_fallthru
        _
      %p276 = scmp.le.s32.totalorder 1, %s16
      %p277 = scmp.lt.s32.totalorder %s16, 5
      %p278 = pnand %p276, %p277
      %p279 = pneg %p278
      // Predicated region
      $region45: #{tpu_custom_call.1} parent=5 // pred_check
        _
      $region46: #{tpu_custom_call.1} parent=5 // pred_check_branch
        %281 = sbr.rel (%p278) target = $region48
      $region47: #{tpu_custom_call.1} parent=5 // pred_region
        %s282 = ssub.s32 %s16, 1
        %p283 = scmp.lt.s32.totalorder %s25, 1
        %s284 = scalar_select %p283, %s25, 1
        %p285 = scmp.lt.s32.totalorder %s26, 1
        %s286 = scalar_select %p285, %s26, 1
        %s287 = smul.addr %s284, 2
        %s288 = sadd.s32 %s286, %s287
        %s289 = smul.addr %s288, 8
        %s290 = scalar_lea.vmem %s0, %s289
        %p291 = pneg %p56
        %p292 = pneg %p53
        %p293 = scmp.lt.s32.totalorder %s26, 1
        %s294 = scalar_select %p293, %s26, 1
        %s295 = smul.addr %s294, 8
        %s296 = scalar_lea.vmem %s1, %s295
        %p297 = pneg %p82
        %p298 = pneg %p79
        %p299 = scmp.lt.s32.totalorder %s26, 1
        %s300 = scalar_select %p299, %s26, 1
        %s301 = smul.addr %s300, 8
        %s302 = scalar_lea.vmem %s2, %s301
        %p303 = pneg %p108
        %p304 = pneg %p105
        %p305 = pneg %p129
        %p306 = pneg %p126
        %p307 = pneg %p150
        %p308 = pneg %p147
        %p309 = pneg %p171
        %p310 = pneg %p168
        %p311 = pneg %p192
        %p312 = pneg %p189
        %p313 = pneg %p220
        %p314 = pneg %p217
        %s315 = sand.u32 %s207, 1
        %s316 = scalar_lea.sflag [#allocation5], %s315
        %s317 = sand.u32 %s207, 1
        %s318 = smul.addr %s317, 8
        %s319 = scalar_lea.vmem [#allocation4], %s318
        %p320 = scmp.lt.s32.totalorder %s25, 1
        %s321 = scalar_select %p320, %s25, 1
        %p322 = scmp.lt.s32.totalorder %s26, 1
        %s323 = scalar_select %p322, %s26, 1
        %s324 = smul.addr %s321, 2
        %s325 = sadd.s32 %s323, %s324
        %s326 = smul.addr %s325, 8
        %s327 = scalar_lea.vmem %s0, %s326
        %p328 = scmp.lt.s32.totalorder %s26, 1
        %s329 = scalar_select %p328, %s26, 1
        %s330 = smul.addr %s329, 8
        %s331 = scalar_lea.vmem %s1, %s330
        %p332 = scmp.lt.s32.totalorder %s26, 1
        %s333 = scalar_select %p332, %s26, 1
        %s334 = smul.addr %s333, 8
        %s335 = scalar_lea.vmem %s2, %s334
        %s336 = smul.u32 %s26, 8
        %v337 = vld [vmem:[%s327] sm:$0xff]
        %v338 = vmul.f32 %v337, %v337
        %vm339 = vcmask 261120
        %v340 = vsel %vm339, %v338, 0.0
        %341 = vadd.xlane.f32.xlu0 %v340
        %v342 = vpop.xlane.xlu0 %341
        %v343 = vrcp.pop 32.0
        %v344 = vmul.f32 %v342, %v343
        %v345 = vadd.f32 %v344, 1e-06
        %v346 = vrsqrt.pop %v345
        %v347 = vmul.f32 %v337, %v346
        %v348 = vld [vmem:[%s3] sm:$0xff]
        %v349 = vld [vmem:[%s3 + $0x8] sm:$0xff]
        %v350 = vld [vmem:[%s3 + $0x10] sm:$0xff]
        %v351 = vld [vmem:[%s3 + $0x18] sm:$0xff]
        %v353 = vsel %vm339, %v347, 0
        %355 = vmatprep.subr.mxu0 0.0
        %356 = vmatpush1.msra.mxu0 %v348
        %357 = vmatprep.subr.mxu0 0.0
        %358 = vmatpush1.msra.mxu0 %v349
        %359 = vmatprep.subr.mxu0 0.0
        %360 = vmatpush1.msra.mxu0 %v350
        %361 = vmatprep.subr.mxu0 0.0
        %362 = vmatpush1.msra.mxu0 %v351
        %363 = vmatprep.subr.mxu0 0.0
        %364 = vmatpush1.msra.mxu0 0.0
        %365 = vmatprep.subr.mxu0 0.0
        %366 = vmatpush1.msra.mxu0 0.0
        %367 = vmatprep.subr.mxu0 0.0
        %368 = vmatpush1.msra.mxu0 0.0
        %369 = vmatprep.subr.mxu0 0.0
        %370 = vmatpush1.msra.mxu0 0.0
        %371 = vmatprep.subr.mxu0 0.0
        %372 = vmatpush1.msra.mxu0 0.0
        %373 = vmatprep.subr.mxu0 0.0
        %374 = vmatpush1.msra.mxu0 0.0
        %375 = vmatprep.subr.mxu0 0.0
        %376 = vmatpush1.msra.mxu0 0.0
        %377 = vmatprep.subr.mxu0 0.0
        %378 = vmatpush1.msra.mxu0 0.0
        %379 = vmatprep.subr.mxu0 0.0
        %380 = vmatpush1.msra.mxu0 0.0
        %381 = vmatprep.subr.mxu0 0.0
        %382 = vmatpush1.msra.mxu0 0.0
        %383 = vmatprep.subr.mxu0 0.0
        %384 = vmatpush1.msra.mxu0 0.0
        %385 = vmatprep.subr.mxu0 0.0
        %386 = vmatpush1.msra.mxu0 0.0
        %387 = vmatprep.subr.mxu0 0.0
        %388 = vmatpush1.msra.mxu0 0.0
        %389 = vmatprep.subr.mxu0 0.0
        %390 = vmatpush1.msra.mxu0 0.0
        %391 = vmatprep.subr.mxu0 0.0
        %392 = vmatpush1.msra.mxu0 0.0
        %393 = vmatprep.subr.mxu0 0.0
        %394 = vmatpush1.msra.mxu0 0.0
        %395 = vmatprep.subr.mxu0 0.0
        %396 = vmatpush1.msra.mxu0 0.0
        %397 = vmatprep.subr.mxu0 0.0
        %398 = vmatpush1.msra.mxu0 0.0
        %399 = vmatprep.subr.mxu0 0.0
        %400 = vmatpush1.msra.mxu0 0.0
        %401 = vmatprep.subr.mxu0 0.0
        %402 = vmatpush1.msra.mxu0 0.0
        %403 = vmatprep.subr.mxu0 0.0
        %404 = vmatpush1.msra.mxu0 0.0
        %405 = vmatprep.subr.mxu0 0.0
        %406 = vmatpush1.msra.mxu0 0.0
        %407 = vmatprep.subr.mxu0 0.0
        %408 = vmatpush1.msra.mxu0 0.0
        %409 = vmatprep.subr.mxu0 0.0
        %410 = vmatpush1.msra.mxu0 0.0
        %411 = vmatprep.subr.mxu0 0.0
        %412 = vmatpush1.msra.mxu0 0.0
        %413 = vmatprep.subr.mxu0 0.0
        %414 = vmatpush1.msra.mxu0 0.0
        %415 = vmatprep.subr.mxu0 0.0
        %416 = vmatpush1.msra.mxu0 0.0
        %417 = vmatprep.subr.mxu0 0.0
        %418 = vmatpush1.msra.mxu0 0.0
        %419 = vmatprep.mubr.f32.mxu0 0.0
        %420 = vmatmul.mubr.f32.gmra.mrb[0].mxu0 %v353
        %v421 = vpop.f32.mrb[0].mxu0
        %v422 = vadd.f32 0.0, %v421
        %v423 = vpop.f32.mrb[0].mxu0
        %424 = vdwg.mxu0
        %v425 = vld [vmem:[%s331] sm:$0xff]
        %v426 = vld [vmem:[%s335] sm:$0xff]
        %v427 = vmul.f32 %v422, %v425
        %429 = vrot.lane.b32.xlu0 %v426, 4
        %v430 = vpop.permute.xlu0 %429
        %v432 = vmul.f32 %v422, %v430
        %434 = vrot.lane.b32.xlu0 %v432, 124
        %v435 = vpop.permute.xlu0 %434
        %v437 = vadd.f32 %v427, %v435
        %v438 = vsub.f32 0.0, %v422
        %v439 = vmul.f32 %v438, %v426
        %441 = vrot.lane.b32.xlu0 %v425, 4
        %v442 = vpop.permute.xlu0 %441
        %v444 = vmul.f32 %v422, %v442
        %446 = vrot.lane.b32.xlu0 %v444, 124
        %v447 = vpop.permute.xlu0 %446
        %v449 = vadd.f32 %v439, %v447
        %451 = vrot.lane.b32.xlu0 %v449, 4
        %v452 = vpop.permute.xlu0 %451
        %vm454 = vcmask 31744
        %v455 = vsel %vm454, %v437, %v452
        %456 = vrot.lane.b32.xlu0 %v425, 32
        %v457 = vpop.permute.xlu0 %456
        %v459 = vmul.f32 %v422, %v457
        %460 = vrot.lane.b32.xlu0 %v426, 36
        %v461 = vpop.permute.xlu0 %460
        %v463 = vmul.f32 %v422, %v461
        %465 = vrot.lane.b32.xlu0 %v463, 124
        %v466 = vpop.permute.xlu0 %465
        %v468 = vadd.f32 %v459, %v466
        %469 = vrot.lane.b32.xlu0 %v426, 32
        %v470 = vpop.permute.xlu0 %469
        %v472 = vmul.f32 %v438, %v470
        %473 = vrot.lane.b32.xlu0 %v425, 36
        %v474 = vpop.permute.xlu0 %473
        %v476 = vmul.f32 %v422, %v474
        %478 = vrot.lane.b32.xlu0 %v476, 124
        %v479 = vpop.permute.xlu0 %478
        %v481 = vadd.f32 %v472, %v479
        %483 = vrot.lane.b32.xlu0 %v468, 96
        %v484 = vpop.permute.xlu0 %483
        %487 = vrot.lane.b32.xlu0 %v481, 100
        %v488 = vpop.permute.xlu0 %487
        %v490 = vsel %vm454, %v484, %v488
        %491 = vrot.lane.b32.xlu0 %v425, 8
        %v492 = vpop.permute.xlu0 %491
        %v494 = vmul.f32 %v422, %v492
        %495 = vrot.lane.b32.xlu0 %v426, 12
        %v496 = vpop.permute.xlu0 %495
        %v498 = vmul.f32 %v422, %v496
        %500 = vrot.lane.b32.xlu0 %v498, 124
        %v501 = vpop.permute.xlu0 %500
        %v503 = vadd.f32 %v494, %v501
        %504 = vrot.lane.b32.xlu0 %v426, 8
        %v505 = vpop.permute.xlu0 %504
        %v507 = vmul.f32 %v438, %v505
        %508 = vrot.lane.b32.xlu0 %v425, 12
        %v509 = vpop.permute.xlu0 %508
        %v511 = vmul.f32 %v422, %v509
        %513 = vrot.lane.b32.xlu0 %v511, 124
        %v514 = vpop.permute.xlu0 %513
        %v516 = vadd.f32 %v507, %v514
        %518 = vrot.lane.b32.xlu0 %v503, 120
        %v519 = vpop.permute.xlu0 %518
        %522 = vrot.lane.b32.xlu0 %v516, 124
        %v523 = vpop.permute.xlu0 %522
        %v525 = vsel %vm454, %v519, %v523
        %526 = vrot.lane.b32.xlu0 %v425, 40
        %v527 = vpop.permute.xlu0 %526
        %v529 = vmul.f32 %v422, %v527
        %530 = vrot.lane.b32.xlu0 %v426, 44
        %v531 = vpop.permute.xlu0 %530
        %v533 = vmul.f32 %v422, %v531
        %535 = vrot.lane.b32.xlu0 %v533, 124
        %v536 = vpop.permute.xlu0 %535
        %v538 = vadd.f32 %v529, %v536
        %539 = vrot.lane.b32.xlu0 %v426, 40
        %v540 = vpop.permute.xlu0 %539
        %v542 = vmul.f32 %v438, %v540
        %543 = vrot.lane.b32.xlu0 %v425, 44
        %v544 = vpop.permute.xlu0 %543
        %v546 = vmul.f32 %v422, %v544
        %548 = vrot.lane.b32.xlu0 %v546, 124
        %v549 = vpop.permute.xlu0 %548
        %v551 = vadd.f32 %v542, %v549
        %553 = vrot.lane.b32.xlu0 %v538, 88
        %v554 = vpop.permute.xlu0 %553
        %557 = vrot.lane.b32.xlu0 %v551, 92
        %v558 = vpop.permute.xlu0 %557
        %v560 = vsel %vm454, %v554, %v558
        %561 = vrot.lane.b32.xlu0 %v425, 16
        %v562 = vpop.permute.xlu0 %561
        %v564 = vmul.f32 %v422, %v562
        %565 = vrot.lane.b32.xlu0 %v426, 20
        %v566 = vpop.permute.xlu0 %565
        %v568 = vmul.f32 %v422, %v566
        %570 = vrot.lane.b32.xlu0 %v568, 124
        %v571 = vpop.permute.xlu0 %570
        %v573 = vadd.f32 %v564, %v571
        %574 = vrot.lane.b32.xlu0 %v426, 16
        %v575 = vpop.permute.xlu0 %574
        %v577 = vmul.f32 %v438, %v575
        %578 = vrot.lane.b32.xlu0 %v425, 20
        %v579 = vpop.permute.xlu0 %578
        %v581 = vmul.f32 %v422, %v579
        %583 = vrot.lane.b32.xlu0 %v581, 124
        %v584 = vpop.permute.xlu0 %583
        %v586 = vadd.f32 %v577, %v584
        %588 = vrot.lane.b32.xlu0 %v573, 112
        %v589 = vpop.permute.xlu0 %588
        %592 = vrot.lane.b32.xlu0 %v586, 116
        %v593 = vpop.permute.xlu0 %592
        %v595 = vsel %vm454, %v589, %v593
        %596 = vrot.lane.b32.xlu0 %v425, 48
        %v597 = vpop.permute.xlu0 %596
        %v599 = vmul.f32 %v422, %v597
        %600 = vrot.lane.b32.xlu0 %v426, 52
        %v601 = vpop.permute.xlu0 %600
        %v603 = vmul.f32 %v422, %v601
        %605 = vrot.lane.b32.xlu0 %v603, 124
        %v606 = vpop.permute.xlu0 %605
        %v608 = vadd.f32 %v599, %v606
        %609 = vrot.lane.b32.xlu0 %v426, 48
        %v610 = vpop.permute.xlu0 %609
        %v612 = vmul.f32 %v438, %v610
        %613 = vrot.lane.b32.xlu0 %v425, 52
        %v614 = vpop.permute.xlu0 %613
        %v616 = vmul.f32 %v422, %v614
        %618 = vrot.lane.b32.xlu0 %v616, 124
        %v619 = vpop.permute.xlu0 %618
        %v621 = vadd.f32 %v612, %v619
        %623 = vrot.lane.b32.xlu0 %v608, 80
        %v624 = vpop.permute.xlu0 %623
        %627 = vrot.lane.b32.xlu0 %v621, 84
        %v628 = vpop.permute.xlu0 %627
        %v630 = vsel %vm454, %v624, %v628
        %631 = vrot.lane.b32.xlu0 %v425, 24
        %v632 = vpop.permute.xlu0 %631
        %v634 = vmul.f32 %v422, %v632
        %635 = vrot.lane.b32.xlu0 %v426, 28
        %v636 = vpop.permute.xlu0 %635
        %v638 = vmul.f32 %v422, %v636
        %640 = vrot.lane.b32.xlu0 %v638, 124
        %v641 = vpop.permute.xlu0 %640
        %v643 = vadd.f32 %v634, %v641
        %644 = vrot.lane.b32.xlu0 %v426, 24
        %v645 = vpop.permute.xlu0 %644
        %v647 = vmul.f32 %v438, %v645
        %648 = vrot.lane.b32.xlu0 %v425, 28
        %v649 = vpop.permute.xlu0 %648
        %v651 = vmul.f32 %v422, %v649
        %653 = vrot.lane.b32.xlu0 %v651, 124
        %v654 = vpop.permute.xlu0 %653
        %v656 = vadd.f32 %v647, %v654
        %658 = vrot.lane.b32.xlu0 %v643, 104
        %v659 = vpop.permute.xlu0 %658
        %662 = vrot.lane.b32.xlu0 %v656, 108
        %v663 = vpop.permute.xlu0 %662
        %v665 = vsel %vm454, %v659, %v663
        %666 = vrot.lane.b32.xlu0 %v425, 56
        %v667 = vpop.permute.xlu0 %666
        %v669 = vmul.f32 %v422, %v667
        %670 = vrot.lane.b32.xlu0 %v426, 60
        %v671 = vpop.permute.xlu0 %670
        %v673 = vmul.f32 %v422, %v671
        %675 = vrot.lane.b32.xlu0 %v673, 124
        %v676 = vpop.permute.xlu0 %675
        %v678 = vadd.f32 %v669, %v676
        %679 = vrot.lane.b32.xlu0 %v426, 56
        %v680 = vpop.permute.xlu0 %679
        %v682 = vmul.f32 %v438, %v680
        %683 = vrot.lane.b32.xlu0 %v425, 60
        %v684 = vpop.permute.xlu0 %683
        %v686 = vmul.f32 %v422, %v684
        %688 = vrot.lane.b32.xlu0 %v686, 124
        %v689 = vpop.permute.xlu0 %688
        %v691 = vadd.f32 %v682, %v689
        %693 = vrot.lane.b32.xlu0 %v678, 72
        %v694 = vpop.permute.xlu0 %693
        %697 = vrot.lane.b32.xlu0 %v691, 76
        %v698 = vpop.permute.xlu0 %697
        %v700 = vsel %vm454, %v694, %v698
        %702 = vrot.lane.b32.xlu0 %v560, 8
        %v703 = vpop.permute.xlu0 %702
        %706 = vrot.lane.b32.xlu0 %v630, 16
        %v707 = vpop.permute.xlu0 %706
        %710 = vrot.lane.b32.xlu0 %v700, 24
        %v711 = vpop.permute.xlu0 %710
        %vm713 = vcmask 64512
        %v714 = vsel %vm713, %v490, %v703
        %vm715 = vcmask 130048
        %v716 = vsel %vm715, %v714, %v707
        %vm717 = vcmask 195584
        %v718 = vsel %vm717, %v716, %v711
        %s719 = scalar_lea.vmem [#allocation2], %s336
        %720 = vst.msk [vmem:[%s719] sm:$0xff] %vm339, %v718
        %722 = vrot.lane.b32.xlu0 %v422, 64
        %v723 = vpop.permute.xlu0 %722
        %s725 = scalar_lea.vmem [#allocation3], %s336
        %726 = vst.msk [vmem:[%s725] sm:$0xff] %vm339, %v723
        %v727 = vlaneseq
        %v728 = vshrl.u32 %v727, 7
        %v729 = vlaneseq
        %v730 = vand.u32 %v729, 127
        %vm731 = vcmp.ge.s32.totalorder %v728, %v730
        %s732 = sadd.s32 %s26, 1
        // While loop
        $region49: #{tpu_custom_call.1} parent=47 // loop_pre_header
          _
        $region50: #{tpu_custom_call.1} parent=47 // loop_header
          %s734 = sphi 0, %s736
          %p735 = scmp.ge.s32.totalorder %s734, %s732
          %v739 = vphi -1e+30, %v842
          %v740 = vphi 0.0, %v853
          %v741 = vphi 0.0, %v928
          %v742 = vphi -1e+30, %v1011
          %v743 = vphi 0.0, %v1022
          %v744 = vphi 0.0, %v1101
          %v745 = vphi -1e+30, %v1184
          %v746 = vphi 0.0, %v1195
          %v747 = vphi 0.0, %v1273
          %v748 = vphi -1e+30, %v1356
          %v749 = vphi 0.0, %v1367
          %v750 = vphi 0.0, %v1445
        $region51: #{tpu_custom_call.1} parent=47 // loop_header_branch
          %738 = sbr.rel (%p735) target = $region55
        $region52: #{tpu_custom_call.1} parent=47 // loop_body
          %s751 = smul.u32 %s734, 8
          %s752 = scalar_lea.vmem [#allocation2], %s751
          %v753 = vld [vmem:[%s752] sm:$0xff]
          %s754 = scalar_lea.vmem [#allocation3], %s751
          %v755 = vld [vmem:[%s754] sm:$0xff]
          %p756 = scmp.lt.s32.totalorder %s734, %s26
          %s757 = scalar_select %p756, 1, 0
          %v758 = vstv %s757
          %vm759 = vcmp.eq.s32.totalorder %v758, 1
          %vm760 = vmor %vm759, %vm731
          %v762 = vsel %vm713, %v455, 0
          %v765 = vsel %vm713, %v753, 0
          %767 = vmatprep.subr.mxu0 0.0
          %768 = vmatpush1.xpose.msra.mxu0 %v765
          %769 = vmatprep.subr.mxu0 0.0
          %770 = vmatpush1.xpose.msra.mxu0 0.0
          %771 = vmatprep.subr.mxu0 0.0
          %772 = vmatpush1.xpose.msra.mxu0 0.0
          %773 = vmatprep.subr.mxu0 0.0
          %774 = vmatpush1.xpose.msra.mxu0 0.0
          %775 = vmatprep.subr.mxu0 0.0
          %776 = vmatpush1.xpose.msra.mxu0 0.0
          %777 = vmatprep.subr.mxu0 0.0
          %778 = vmatpush1.xpose.msra.mxu0 0.0
          %779 = vmatprep.subr.mxu0 0.0
          %780 = vmatpush1.xpose.msra.mxu0 0.0
          %781 = vmatprep.subr.mxu0 0.0
          %782 = vmatpush1.xpose.msra.mxu0 0.0
          %783 = vmatprep.subr.mxu0 0.0
          %784 = vmatpush1.xpose.msra.mxu0 0.0
          %785 = vmatprep.subr.mxu0 0.0
          %786 = vmatpush1.xpose.msra.mxu0 0.0
          %787 = vmatprep.subr.mxu0 0.0
          %788 = vmatpush1.xpose.msra.mxu0 0.0
          %789 = vmatprep.subr.mxu0 0.0
          %790 = vmatpush1.xpose.msra.mxu0 0.0
          %791 = vmatprep.subr.mxu0 0.0
          %792 = vmatpush1.xpose.msra.mxu0 0.0
          %793 = vmatprep.subr.mxu0 0.0
          %794 = vmatpush1.xpose.msra.mxu0 0.0
          %795 = vmatprep.subr.mxu0 0.0
          %796 = vmatpush1.xpose.msra.mxu0 0.0
          %797 = vmatprep.subr.mxu0 0.0
          %798 = vmatpush1.xpose.msra.mxu0 0.0
          %799 = vmatprep.subr.mxu0 0.0
          %800 = vmatpush1.xpose.msra.mxu0 0.0
          %801 = vmatprep.subr.mxu0 0.0
          %802 = vmatpush1.xpose.msra.mxu0 0.0
          %803 = vmatprep.subr.mxu0 0.0
          %804 = vmatpush1.xpose.msra.mxu0 0.0
          %805 = vmatprep.subr.mxu0 0.0
          %806 = vmatpush1.xpose.msra.mxu0 0.0
          %807 = vmatprep.subr.mxu0 0.0
          %808 = vmatpush1.xpose.msra.mxu0 0.0
          %809 = vmatprep.subr.mxu0 0.0
          %810 = vmatpush1.xpose.msra.mxu0 0.0
          %811 = vmatprep.subr.mxu0 0.0
          %812 = vmatpush1.xpose.msra.mxu0 0.0
          %813 = vmatprep.subr.mxu0 0.0
          %814 = vmatpush1.xpose.msra.mxu0 0.0
          %815 = vmatprep.subr.mxu0 0.0
          %816 = vmatpush1.xpose.msra.mxu0 0.0
          %817 = vmatprep.subr.mxu0 0.0
          %818 = vmatpush1.xpose.msra.mxu0 0.0
          %819 = vmatprep.subr.mxu0 0.0
          %820 = vmatpush1.xpose.msra.mxu0 0.0
          %821 = vmatprep.subr.mxu0 0.0
          %822 = vmatpush1.xpose.msra.mxu0 0.0
          %823 = vmatprep.subr.mxu0 0.0
          %824 = vmatpush1.xpose.msra.mxu0 0.0
          %825 = vmatprep.subr.mxu0 0.0
          %826 = vmatpush1.xpose.msra.mxu0 0.0
          %827 = vmatprep.subr.mxu0 0.0
          %828 = vmatpush1.xpose.msra.mxu0 0.0
          %829 = vmatprep.subr.mxu0 0.0
          %830 = vmatpush1.xpose.msra.mxu0 0.0
          %831 = vmatprep.mubr.f32.mxu0 0.0
          %832 = vmatmul.mubr.f32.gmra.mrb[0].mxu0 %v762
          %v833 = vpop.f32.mrb[0].mxu0
          %v834 = vadd.f32 0.0, %v833
          %v835 = vpop.f32.mrb[0].mxu0
          %836 = vdwg.mxu0
          %v837 = vmul.f32 %v834, 0.35355338
          %v838 = vsel %vm760, %v837, -1e+30
          %v839 = vsel %vm713, %v838, -inf
          %840 = vmax.xlane.f32.xlu0 %v839
          %v841 = vpop.xlane.xlu0 %840
          %v842 = vmax.f32 %v739, %v841
          %v843 = vsub.f32 %v739, %v842
          %v844 = vmul.f32 %v843, 1.442695
          %v845 = vpow.pop %v844
          %v846 = vsub.f32 %v838, %v842
          %v847 = vmul.f32 %v846, 1.442695
          %v848 = vpow.pop %v847
          %v849 = vmul.f32 %v845, %v740
          %v850 = vsel %vm713, %v848, 0.0
          %851 = vadd.xlane.f32.xlu0 %v850
          %v852 = vpop.xlane.xlu0 %851
          %v853 = vadd.f32 %v849, %v852
          %v854 = vmul.f32 %v845, %v741
          %v856 = vsel %vm713, %v848, 0
          %858 = vmatprep.subr.mxu0 0.0
          %859 = vmatpush1.msra.mxu0 %v755
          %860 = vmatprep.subr.mxu0 0.0
          %861 = vmatpush1.msra.mxu0 0.0
          %862 = vmatprep.subr.mxu0 0.0
          %863 = vmatpush1.msra.mxu0 0.0
          %864 = vmatprep.subr.mxu0 0.0
          %865 = vmatpush1.msra.mxu0 0.0
          %866 = vmatprep.subr.mxu0 0.0
          %867 = vmatpush1.msra.mxu0 0.0
          %868 = vmatprep.subr.mxu0 0.0
          %869 = vmatpush1.msra.mxu0 0.0
          %870 = vmatprep.subr.mxu0 0.0
          %871 = vmatpush1.msra.mxu0 0.0
          %872 = vmatprep.subr.mxu0 0.0
          %873 = vmatpush1.msra.mxu0 0.0
          %874 = vmatprep.subr.mxu0 0.0
          %875 = vmatpush1.msra.mxu0 0.0
          %876 = vmatprep.subr.mxu0 0.0
          %877 = vmatpush1.msra.mxu0 0.0
          %878 = vmatprep.subr.mxu0 0.0
          %879 = vmatpush1.msra.mxu0 0.0
          %880 = vmatprep.subr.mxu0 0.0
          %881 = vmatpush1.msra.mxu0 0.0
          %882 = vmatprep.subr.mxu0 0.0
          %883 = vmatpush1.msra.mxu0 0.0
          %884 = vmatprep.subr.mxu0 0.0
          %885 = vmatpush1.msra.mxu0 0.0
          %886 = vmatprep.subr.mxu0 0.0
          %887 = vmatpush1.msra.mxu0 0.0
          %888 = vmatprep.subr.mxu0 0.0
          %889 = vmatpush1.msra.mxu0 0.0
          %890 = vmatprep.subr.mxu0 0.0
          %891 = vmatpush1.msra.mxu0 0.0
          %892 = vmatprep.subr.mxu0 0.0
          %893 = vmatpush1.msra.mxu0 0.0
          %894 = vmatprep.subr.mxu0 0.0
          %895 = vmatpush1.msra.mxu0 0.0
          %896 = vmatprep.subr.mxu0 0.0
          %897 = vmatpush1.msra.mxu0 0.0
          %898 = vmatprep.subr.mxu0 0.0
          %899 = vmatpush1.msra.mxu0 0.0
          %900 = vmatprep.subr.mxu0 0.0
          %901 = vmatpush1.msra.mxu0 0.0
          %902 = vmatprep.subr.mxu0 0.0
          %903 = vmatpush1.msra.mxu0 0.0
          %904 = vmatprep.subr.mxu0 0.0
          %905 = vmatpush1.msra.mxu0 0.0
          %906 = vmatprep.subr.mxu0 0.0
          %907 = vmatpush1.msra.mxu0 0.0
          %908 = vmatprep.subr.mxu0 0.0
          %909 = vmatpush1.msra.mxu0 0.0
          %910 = vmatprep.subr.mxu0 0.0
          %911 = vmatpush1.msra.mxu0 0.0
          %912 = vmatprep.subr.mxu0 0.0
          %913 = vmatpush1.msra.mxu0 0.0
          %914 = vmatprep.subr.mxu0 0.0
          %915 = vmatpush1.msra.mxu0 0.0
          %916 = vmatprep.subr.mxu0 0.0
          %917 = vmatpush1.msra.mxu0 0.0
          %918 = vmatprep.subr.mxu0 0.0
          %919 = vmatpush1.msra.mxu0 0.0
          %920 = vmatprep.subr.mxu0 0.0
          %921 = vmatpush1.msra.mxu0 0.0
          %922 = vmatprep.mubr.f32.mxu0 0.0
          %923 = vmatmul.mubr.f32.gmra.mrb[0].mxu0 %v856
          %v924 = vpop.f32.mrb[0].mxu0
          %v925 = vadd.f32 0.0, %v924
          %v926 = vpop.f32.mrb[0].mxu0
          %927 = vdwg.mxu0
          %v928 = vadd.f32 %v854, %v925
          %929 = vrot.lane.b32.xlu0 %v753, 120
          %v930 = vpop.permute.xlu0 %929
          %v932 = vsel %vm713, %v525, 0
          %v934 = vsel %vm713, %v930, 0
          %936 = vmatprep.subr.mxu0 0.0
          %937 = vmatpush1.xpose.msra.mxu0 %v934
          %938 = vmatprep.subr.mxu0 0.0
          %939 = vmatpush1.xpose.msra.mxu0 0.0
          %940 = vmatprep.subr.mxu0 0.0
          %941 = vmatpush1.xpose.msra.mxu0 0.0
          %942 = vmatprep.subr.mxu0 0.0
          %943 = vmatpush1.xpose.msra.mxu0 0.0
          %944 = vmatprep.subr.mxu0 0.0
          %945 = vmatpush1.xpose.msra.mxu0 0.0
          %946 = vmatprep.subr.mxu0 0.0
          %947 = vmatpush1.xpose.msra.mxu0 0.0
          %948 = vmatprep.subr.mxu0 0.0
          %949 = vmatpush1.xpose.msra.mxu0 0.0
          %950 = vmatprep.subr.mxu0 0.0
          %951 = vmatpush1.xpose.msra.mxu0 0.0
          %952 = vmatprep.subr.mxu0 0.0
          %953 = vmatpush1.xpose.msra.mxu0 0.0
          %954 = vmatprep.subr.mxu0 0.0
          %955 = vmatpush1.xpose.msra.mxu0 0.0
          %956 = vmatprep.subr.mxu0 0.0
          %957 = vmatpush1.xpose.msra.mxu0 0.0
          %958 = vmatprep.subr.mxu0 0.0
          %959 = vmatpush1.xpose.msra.mxu0 0.0
          %960 = vmatprep.subr.mxu0 0.0
          %961 = vmatpush1.xpose.msra.mxu0 0.0
          %962 = vmatprep.subr.mxu0 0.0
          %963 = vmatpush1.xpose.msra.mxu0 0.0
          %964 = vmatprep.subr.mxu0 0.0
          %965 = vmatpush1.xpose.msra.mxu0 0.0
          %966 = vmatprep.subr.mxu0 0.0
          %967 = vmatpush1.xpose.msra.mxu0 0.0
          %968 = vmatprep.subr.mxu0 0.0
          %969 = vmatpush1.xpose.msra.mxu0 0.0
          %970 = vmatprep.subr.mxu0 0.0
          %971 = vmatpush1.xpose.msra.mxu0 0.0
          %972 = vmatprep.subr.mxu0 0.0
          %973 = vmatpush1.xpose.msra.mxu0 0.0
          %974 = vmatprep.subr.mxu0 0.0
          %975 = vmatpush1.xpose.msra.mxu0 0.0
          %976 = vmatprep.subr.mxu0 0.0
          %977 = vmatpush1.xpose.msra.mxu0 0.0
          %978 = vmatprep.subr.mxu0 0.0
          %979 = vmatpush1.xpose.msra.mxu0 0.0
          %980 = vmatprep.subr.mxu0 0.0
          %981 = vmatpush1.xpose.msra.mxu0 0.0
          %982 = vmatprep.subr.mxu0 0.0
          %983 = vmatpush1.xpose.msra.mxu0 0.0
          %984 = vmatprep.subr.mxu0 0.0
          %985 = vmatpush1.xpose.msra.mxu0 0.0
          %986 = vmatprep.subr.mxu0 0.0
          %987 = vmatpush1.xpose.msra.mxu0 0.0
          %988 = vmatprep.subr.mxu0 0.0
          %989 = vmatpush1.xpose.msra.mxu0 0.0
          %990 = vmatprep.subr.mxu0 0.0
          %991 = vmatpush1.xpose.msra.mxu0 0.0
          %992 = vmatprep.subr.mxu0 0.0
          %993 = vmatpush1.xpose.msra.mxu0 0.0
          %994 = vmatprep.subr.mxu0 0.0
          %995 = vmatpush1.xpose.msra.mxu0 0.0
          %996 = vmatprep.subr.mxu0 0.0
          %997 = vmatpush1.xpose.msra.mxu0 0.0
          %998 = vmatprep.subr.mxu0 0.0
          %999 = vmatpush1.xpose.msra.mxu0 0.0
          %1000 = vmatprep.mubr.f32.mxu0 0.0
          %1001 = vmatmul.mubr.f32.gmra.mrb[0].mxu0 %v932
          %v1002 = vpop.f32.mrb[0].mxu0
          %v1003 = vadd.f32 0.0, %v1002
          %v1004 = vpop.f32.mrb[0].mxu0
          %1005 = vdwg.mxu0
          %v1006 = vmul.f32 %v1003, 0.35355338
          %v1007 = vsel %vm760, %v1006, -1e+30
          %v1008 = vsel %vm713, %v1007, -inf
          %1009 = vmax.xlane.f32.xlu0 %v1008
          %v1010 = vpop.xlane.xlu0 %1009
          %v1011 = vmax.f32 %v742, %v1010
          %v1012 = vsub.f32 %v742, %v1011
          %v1013 = vmul.f32 %v1012, 1.442695
          %v1014 = vpow.pop %v1013
          %v1015 = vsub.f32 %v1007, %v1011
          %v1016 = vmul.f32 %v1015, 1.442695
          %v1017 = vpow.pop %v1016
          %v1018 = vmul.f32 %v1014, %v743
          %v1019 = vsel %vm713, %v1017, 0.0
          %1020 = vadd.xlane.f32.xlu0 %v1019
          %v1021 = vpop.xlane.xlu0 %1020
          %v1022 = vadd.f32 %v1018, %v1021
          %v1023 = vmul.f32 %v1014, %v744
          %1025 = vrot.lane.b32.xlu0 %v755, 120
          %v1026 = vpop.permute.xlu0 %1025
          %v1029 = vsel %vm713, %v1017, 0
          %1031 = vmatprep.subr.mxu0 0.0
          %1032 = vmatpush1.msra.mxu0 %v1026
          %1033 = vmatprep.subr.mxu0 0.0
          %1034 = vmatpush1.msra.mxu0 0.0
          %1035 = vmatprep.subr.mxu0 0.0
          %1036 = vmatpush1.msra.mxu0 0.0
          %1037 = vmatprep.subr.mxu0 0.0
          %1038 = vmatpush1.msra.mxu0 0.0
          %1039 = vmatprep.subr.mxu0 0.0
          %1040 = vmatpush1.msra.mxu0 0.0
          %1041 = vmatprep.subr.mxu0 0.0
          %1042 = vmatpush1.msra.mxu0 0.0
          %1043 = vmatprep.subr.mxu0 0.0
          %1044 = vmatpush1.msra.mxu0 0.0
          %1045 = vmatprep.subr.mxu0 0.0
          %1046 = vmatpush1.msra.mxu0 0.0
          %1047 = vmatprep.subr.mxu0 0.0
          %1048 = vmatpush1.msra.mxu0 0.0
          %1049 = vmatprep.subr.mxu0 0.0
          %1050 = vmatpush1.msra.mxu0 0.0
          %1051 = vmatprep.subr.mxu0 0.0
          %1052 = vmatpush1.msra.mxu0 0.0
          %1053 = vmatprep.subr.mxu0 0.0
          %1054 = vmatpush1.msra.mxu0 0.0
          %1055 = vmatprep.subr.mxu0 0.0
          %1056 = vmatpush1.msra.mxu0 0.0
          %1057 = vmatprep.subr.mxu0 0.0
          %1058 = vmatpush1.msra.mxu0 0.0
          %1059 = vmatprep.subr.mxu0 0.0
          %1060 = vmatpush1.msra.mxu0 0.0
          %1061 = vmatprep.subr.mxu0 0.0
          %1062 = vmatpush1.msra.mxu0 0.0
          %1063 = vmatprep.subr.mxu0 0.0
          %1064 = vmatpush1.msra.mxu0 0.0
          %1065 = vmatprep.subr.mxu0 0.0
          %1066 = vmatpush1.msra.mxu0 0.0
          %1067 = vmatprep.subr.mxu0 0.0
          %1068 = vmatpush1.msra.mxu0 0.0
          %1069 = vmatprep.subr.mxu0 0.0
          %1070 = vmatpush1.msra.mxu0 0.0
          %1071 = vmatprep.subr.mxu0 0.0
          %1072 = vmatpush1.msra.mxu0 0.0
          %1073 = vmatprep.subr.mxu0 0.0
          %1074 = vmatpush1.msra.mxu0 0.0
          %1075 = vmatprep.subr.mxu0 0.0
          %1076 = vmatpush1.msra.mxu0 0.0
          %1077 = vmatprep.subr.mxu0 0.0
          %1078 = vmatpush1.msra.mxu0 0.0
          %1079 = vmatprep.subr.mxu0 0.0
          %1080 = vmatpush1.msra.mxu0 0.0
          %1081 = vmatprep.subr.mxu0 0.0
          %1082 = vmatpush1.msra.mxu0 0.0
          %1083 = vmatprep.subr.mxu0 0.0
          %1084 = vmatpush1.msra.mxu0 0.0
          %1085 = vmatprep.subr.mxu0 0.0
          %1086 = vmatpush1.msra.mxu0 0.0
          %1087 = vmatprep.subr.mxu0 0.0
          %1088 = vmatpush1.msra.mxu0 0.0
          %1089 = vmatprep.subr.mxu0 0.0
          %1090 = vmatpush1.msra.mxu0 0.0
          %1091 = vmatprep.subr.mxu0 0.0
          %1092 = vmatpush1.msra.mxu0 0.0
          %1093 = vmatprep.subr.mxu0 0.0
          %1094 = vmatpush1.msra.mxu0 0.0
          %1095 = vmatprep.mubr.f32.mxu0 0.0
          %1096 = vmatmul.mubr.f32.gmra.mrb[0].mxu0 %v1029
          %v1097 = vpop.f32.mrb[0].mxu0
          %v1098 = vadd.f32 0.0, %v1097
          %v1099 = vpop.f32.mrb[0].mxu0
          %1100 = vdwg.mxu0
          %v1101 = vadd.f32 %v1023, %v1098
          %1102 = vrot.lane.b32.xlu0 %v753, 112
          %v1103 = vpop.permute.xlu0 %1102
          %v1105 = vsel %vm713, %v595, 0
          %v1107 = vsel %vm713, %v1103, 0
          %1109 = vmatprep.subr.mxu0 0.0
          %1110 = vmatpush1.xpose.msra.mxu0 %v1107
          %1111 = vmatprep.subr.mxu0 0.0
          %1112 = vmatpush1.xpose.msra.mxu0 0.0
          %1113 = vmatprep.subr.mxu0 0.0
          %1114 = vmatpush1.xpose.msra.mxu0 0.0
          %1115 = vmatprep.subr.mxu0 0.0
          %1116 = vmatpush1.xpose.msra.mxu0 0.0
          %1117 = vmatprep.subr.mxu0 0.0
          %1118 = vmatpush1.xpose.msra.mxu0 0.0
          %1119 = vmatprep.subr.mxu0 0.0
          %1120 = vmatpush1.xpose.msra.mxu0 0.0
          %1121 = vmatprep.subr.mxu0 0.0
          %1122 = vmatpush1.xpose.msra.mxu0 0.0
          %1123 = vmatprep.subr.mxu0 0.0
          %1124 = vmatpush1.xpose.msra.mxu0 0.0
          %1125 = vmatprep.subr.mxu0 0.0
          %1126 = vmatpush1.xpose.msra.mxu0 0.0
          %1127 = vmatprep.subr.mxu0 0.0
          %1128 = vmatpush1.xpose.msra.mxu0 0.0
          %1129 = vmatprep.subr.mxu0 0.0
          %1130 = vmatpush1.xpose.msra.mxu0 0.0
          %1131 = vmatprep.subr.mxu0 0.0
          %1132 = vmatpush1.xpose.msra.mxu0 0.0
          %1133 = vmatprep.subr.mxu0 0.0
          %1134 = vmatpush1.xpose.msra.mxu0 0.0
          %1135 = vmatprep.subr.mxu0 0.0
          %1136 = vmatpush1.xpose.msra.mxu0 0.0
          %1137 = vmatprep.subr.mxu0 0.0
          %1138 = vmatpush1.xpose.msra.mxu0 0.0
          %1139 = vmatprep.subr.mxu0 0.0
          %1140 = vmatpush1.xpose.msra.mxu0 0.0
          %1141 = vmatprep.subr.mxu0 0.0
          %1142 = vmatpush1.xpose.msra.mxu0 0.0
          %1143 = vmatprep.subr.mxu0 0.0
          %1144 = vmatpush1.xpose.msra.mxu0 0.0
          %1145 = vmatprep.subr.mxu0 0.0
          %1146 = vmatpush1.xpose.msra.mxu0 0.0
          %1147 = vmatprep.subr.mxu0 0.0
          %1148 = vmatpush1.xpose.msra.mxu0 0.0
          %1149 = vmatprep.subr.mxu0 0.0
          %1150 = vmatpush1.xpose.msra.mxu0 0.0
          %1151 = vmatprep.subr.mxu0 0.0
          %1152 = vmatpush1.xpose.msra.mxu0 0.0
          %1153 = vmatprep.subr.mxu0 0.0
          %1154 = vmatpush1.xpose.msra.mxu0 0.0
          %1155 = vmatprep.subr.mxu0 0.0
          %1156 = vmatpush1.xpose.msra.mxu0 0.0
          %1157 = vmatprep.subr.mxu0 0.0
          %1158 = vmatpush1.xpose.msra.mxu0 0.0
          %1159 = vmatprep.subr.mxu0 0.0
          %1160 = vmatpush1.xpose.msra.mxu0 0.0
          %1161 = vmatprep.subr.mxu0 0.0
          %1162 = vmatpush1.xpose.msra.mxu0 0.0
          %1163 = vmatprep.subr.mxu0 0.0
          %1164 = vmatpush1.xpose.msra.mxu0 0.0
          %1165 = vmatprep.subr.mxu0 0.0
          %1166 = vmatpush1.xpose.msra.mxu0 0.0
          %1167 = vmatprep.subr.mxu0 0.0
          %1168 = vmatpush1.xpose.msra.mxu0 0.0
          %1169 = vmatprep.subr.mxu0 0.0
          %1170 = vmatpush1.xpose.msra.mxu0 0.0
          %1171 = vmatprep.subr.mxu0 0.0
          %1172 = vmatpush1.xpose.msra.mxu0 0.0
          %1173 = vmatprep.mubr.f32.mxu0 0.0
          %1174 = vmatmul.mubr.f32.gmra.mrb[0].mxu0 %v1105
          %v1175 = vpop.f32.mrb[0].mxu0
          %v1176 = vadd.f32 0.0, %v1175
          %v1177 = vpop.f32.mrb[0].mxu0
          %1178 = vdwg.mxu0
          %v1179 = vmul.f32 %v1176, 0.35355338
          %v1180 = vsel %vm760, %v1179, -1e+30
          %v1181 = vsel %vm713, %v1180, -inf
          %1182 = vmax.xlane.f32.xlu0 %v1181
          %v1183 = vpop.xlane.xlu0 %1182
          %v1184 = vmax.f32 %v745, %v1183
          %v1185 = vsub.f32 %v745, %v1184
          %v1186 = vmul.f32 %v1185, 1.442695
          %v1187 = vpow.pop %v1186
          %v1188 = vsub.f32 %v1180, %v1184
          %v1189 = vmul.f32 %v1188, 1.442695
          %v1190 = vpow.pop %v1189
          %v1191 = vmul.f32 %v1187, %v746
          %v1192 = vsel %vm713, %v1190, 0.0
          %1193 = vadd.xlane.f32.xlu0 %v1192
          %v1194 = vpop.xlane.xlu0 %1193
          %v1195 = vadd.f32 %v1191, %v1194
          %v1196 = vmul.f32 %v1187, %v747
          %1197 = vrot.lane.b32.xlu0 %v755, 112
          %v1198 = vpop.permute.xlu0 %1197
          %v1201 = vsel %vm713, %v1190, 0
          %1203 = vmatprep.subr.mxu0 0.0
          %1204 = vmatpush1.msra.mxu0 %v1198
          %1205 = vmatprep.subr.mxu0 0.0
          %1206 = vmatpush1.msra.mxu0 0.0
          %1207 = vmatprep.subr.mxu0 0.0
          %1208 = vmatpush1.msra.mxu0 0.0
          %1209 = vmatprep.subr.mxu0 0.0
          %1210 = vmatpush1.msra.mxu0 0.0
          %1211 = vmatprep.subr.mxu0 0.0
          %1212 = vmatpush1.msra.mxu0 0.0
          %1213 = vmatprep.subr.mxu0 0.0
          %1214 = vmatpush1.msra.mxu0 0.0
          %1215 = vmatprep.subr.mxu0 0.0
          %1216 = vmatpush1.msra.mxu0 0.0
          %1217 = vmatprep.subr.mxu0 0.0
          %1218 = vmatpush1.msra.mxu0 0.0
          %1219 = vmatprep.subr.mxu0 0.0
          %1220 = vmatpush1.msra.mxu0 0.0
          %1221 = vmatprep.subr.mxu0 0.0
          %1222 = vmatpush1.msra.mxu0 0.0
          %1223 = vmatprep.subr.mxu0 0.0
          %1224 = vmatpush1.msra.mxu0 0.0
          %1225 = vmatprep.subr.mxu0 0.0
          %1226 = vmatpush1.msra.mxu0 0.0
          %1227 = vmatprep.subr.mxu0 0.0
          %1228 = vmatpush1.msra.mxu0 0.0
          %1229 = vmatprep.subr.mxu0 0.0
          %1230 = vmatpush1.msra.mxu0 0.0
          %1231 = vmatprep.subr.mxu0 0.0
          %1232 = vmatpush1.msra.mxu0 0.0
          %1233 = vmatprep.subr.mxu0 0.0
          %1234 = vmatpush1.msra.mxu0 0.0
          %1235 = vmatprep.subr.mxu0 0.0
          %1236 = vmatpush1.msra.mxu0 0.0
          %1237 = vmatprep.subr.mxu0 0.0
          %1238 = vmatpush1.msra.mxu0 0.0
          %1239 = vmatprep.subr.mxu0 0.0
          %1240 = vmatpush1.msra.mxu0 0.0
          %1241 = vmatprep.subr.mxu0 0.0
          %1242 = vmatpush1.msra.mxu0 0.0
          %1243 = vmatprep.subr.mxu0 0.0
          %1244 = vmatpush1.msra.mxu0 0.0
          %1245 = vmatprep.subr.mxu0 0.0
          %1246 = vmatpush1.msra.mxu0 0.0
          %1247 = vmatprep.subr.mxu0 0.0
          %1248 = vmatpush1.msra.mxu0 0.0
          %1249 = vmatprep.subr.mxu0 0.0
          %1250 = vmatpush1.msra.mxu0 0.0
          %1251 = vmatprep.subr.mxu0 0.0
          %1252 = vmatpush1.msra.mxu0 0.0
          %1253 = vmatprep.subr.mxu0 0.0
          %1254 = vmatpush1.msra.mxu0 0.0
          %1255 = vmatprep.subr.mxu0 0.0
          %1256 = vmatpush1.msra.mxu0 0.0
          %1257 = vmatprep.subr.mxu0 0.0
          %1258 = vmatpush1.msra.mxu0 0.0
          %1259 = vmatprep.subr.mxu0 0.0
          %1260 = vmatpush1.msra.mxu0 0.0
          %1261 = vmatprep.subr.mxu0 0.0
          %1262 = vmatpush1.msra.mxu0 0.0
          %1263 = vmatprep.subr.mxu0 0.0
          %1264 = vmatpush1.msra.mxu0 0.0
          %1265 = vmatprep.subr.mxu0 0.0
          %1266 = vmatpush1.msra.mxu0 0.0
          %1267 = vmatprep.mubr.f32.mxu0 0.0
          %1268 = vmatmul.mubr.f32.gmra.mrb[0].mxu0 %v1201
          %v1269 = vpop.f32.mrb[0].mxu0
          %v1270 = vadd.f32 0.0, %v1269
          %v1271 = vpop.f32.mrb[0].mxu0
          %1272 = vdwg.mxu0
          %v1273 = vadd.f32 %v1196, %v1270
          %1274 = vrot.lane.b32.xlu0 %v753, 104
          %v1275 = vpop.permute.xlu0 %1274
          %v1277 = vsel %vm713, %v665, 0
          %v1279 = vsel %vm713, %v1275, 0
          %1281 = vmatprep.subr.mxu0 0.0
          %1282 = vmatpush1.xpose.msra.mxu0 %v1279
          %1283 = vmatprep.subr.mxu0 0.0
          %1284 = vmatpush1.xpose.msra.mxu0 0.0
          %1285 = vmatprep.subr.mxu0 0.0
          %1286 = vmatpush1.xpose.msra.mxu0 0.0
          %1287 = vmatprep.subr.mxu0 0.0
          %1288 = vmatpush1.xpose.msra.mxu0 0.0
          %1289 = vmatprep.subr.mxu0 0.0
          %1290 = vmatpush1.xpose.msra.mxu0 0.0
          %1291 = vmatprep.subr.mxu0 0.0
          %1292 = vmatpush1.xpose.msra.mxu0 0.0
          %1293 = vmatprep.subr.mxu0 0.0
          %1294 = vmatpush1.xpose.msra.mxu0 0.0
          %1295 = vmatprep.subr.mxu0 0.0
          %1296 = vmatpush1.xpose.msra.mxu0 0.0
          %1297 = vmatprep.subr.mxu0 0.0
          %1298 = vmatpush1.xpose.msra.mxu0 0.0
          %1299 = vmatprep.subr.mxu0 0.0
          %1300 = vmatpush1.xpose.msra.mxu0 0.0
          %1301 = vmatprep.subr.mxu0 0.0
          %1302 = vmatpush1.xpose.msra.mxu0 0.0
          %1303 = vmatprep.subr.mxu0 0.0
          %1304 = vmatpush1.xpose.msra.mxu0 0.0
          %1305 = vmatprep.subr.mxu0 0.0
          %1306 = vmatpush1.xpose.msra.mxu0 0.0
          %1307 = vmatprep.subr.mxu0 0.0
          %1308 = vmatpush1.xpose.msra.mxu0 0.0
          %1309 = vmatprep.subr.mxu0 0.0
          %1310 = vmatpush1.xpose.msra.mxu0 0.0
          %1311 = vmatprep.subr.mxu0 0.0
          %1312 = vmatpush1.xpose.msra.mxu0 0.0
          %1313 = vmatprep.subr.mxu0 0.0
          %1314 = vmatpush1.xpose.msra.mxu0 0.0
          %1315 = vmatprep.subr.mxu0 0.0
          %1316 = vmatpush1.xpose.msra.mxu0 0.0
          %1317 = vmatprep.subr.mxu0 0.0
          %1318 = vmatpush1.xpose.msra.mxu0 0.0
          %1319 = vmatprep.subr.mxu0 0.0
          %1320 = vmatpush1.xpose.msra.mxu0 0.0
          %1321 = vmatprep.subr.mxu0 0.0
          %1322 = vmatpush1.xpose.msra.mxu0 0.0
          %1323 = vmatprep.subr.mxu0 0.0
          %1324 = vmatpush1.xpose.msra.mxu0 0.0
          %1325 = vmatprep.subr.mxu0 0.0
          %1326 = vmatpush1.xpose.msra.mxu0 0.0
          %1327 = vmatprep.subr.mxu0 0.0
          %1328 = vmatpush1.xpose.msra.mxu0 0.0
          %1329 = vmatprep.subr.mxu0 0.0
          %1330 = vmatpush1.xpose.msra.mxu0 0.0
          %1331 = vmatprep.subr.mxu0 0.0
          %1332 = vmatpush1.xpose.msra.mxu0 0.0
          %1333 = vmatprep.subr.mxu0 0.0
          %1334 = vmatpush1.xpose.msra.mxu0 0.0
          %1335 = vmatprep.subr.mxu0 0.0
          %1336 = vmatpush1.xpose.msra.mxu0 0.0
          %1337 = vmatprep.subr.mxu0 0.0
          %1338 = vmatpush1.xpose.msra.mxu0 0.0
          %1339 = vmatprep.subr.mxu0 0.0
          %1340 = vmatpush1.xpose.msra.mxu0 0.0
          %1341 = vmatprep.subr.mxu0 0.0
          %1342 = vmatpush1.xpose.msra.mxu0 0.0
          %1343 = vmatprep.subr.mxu0 0.0
          %1344 = vmatpush1.xpose.msra.mxu0 0.0
          %1345 = vmatprep.mubr.f32.mxu0 0.0
          %1346 = vmatmul.mubr.f32.gmra.mrb[0].mxu0 %v1277
          %v1347 = vpop.f32.mrb[0].mxu0
          %v1348 = vadd.f32 0.0, %v1347
          %v1349 = vpop.f32.mrb[0].mxu0
          %1350 = vdwg.mxu0
          %v1351 = vmul.f32 %v1348, 0.35355338
          %v1352 = vsel %vm760, %v1351, -1e+30
          %v1353 = vsel %vm713, %v1352, -inf
          %1354 = vmax.xlane.f32.xlu0 %v1353
          %v1355 = vpop.xlane.xlu0 %1354
          %v1356 = vmax.f32 %v748, %v1355
          %v1357 = vsub.f32 %v748, %v1356
          %v1358 = vmul.f32 %v1357, 1.442695
          %v1359 = vpow.pop %v1358
          %v1360 = vsub.f32 %v1352, %v1356
          %v1361 = vmul.f32 %v1360, 1.442695
          %v1362 = vpow.pop %v1361
          %v1363 = vmul.f32 %v1359, %v749
          %v1364 = vsel %vm713, %v1362, 0.0
          %1365 = vadd.xlane.f32.xlu0 %v1364
          %v1366 = vpop.xlane.xlu0 %1365
          %v1367 = vadd.f32 %v1363, %v1366
          %v1368 = vmul.f32 %v1359, %v750
          %1369 = vrot.lane.b32.xlu0 %v755, 104
          %v1370 = vpop.permute.xlu0 %1369
          %v1373 = vsel %vm713, %v1362, 0
          %1375 = vmatprep.subr.mxu0 0.0
          %1376 = vmatpush1.msra.mxu0 %v1370
          %1377 = vmatprep.subr.mxu0 0.0
          %1378 = vmatpush1.msra.mxu0 0.0
          %1379 = vmatprep.subr.mxu0 0.0
          %1380 = vmatpush1.msra.mxu0 0.0
          %1381 = vmatprep.subr.mxu0 0.0
          %1382 = vmatpush1.msra.mxu0 0.0
          %1383 = vmatprep.subr.mxu0 0.0
          %1384 = vmatpush1.msra.mxu0 0.0
          %1385 = vmatprep.subr.mxu0 0.0
          %1386 = vmatpush1.msra.mxu0 0.0
          %1387 = vmatprep.subr.mxu0 0.0
          %1388 = vmatpush1.msra.mxu0 0.0
          %1389 = vmatprep.subr.mxu0 0.0
          %1390 = vmatpush1.msra.mxu0 0.0
          %1391 = vmatprep.subr.mxu0 0.0
          %1392 = vmatpush1.msra.mxu0 0.0
          %1393 = vmatprep.subr.mxu0 0.0
          %1394 = vmatpush1.msra.mxu0 0.0
          %1395 = vmatprep.subr.mxu0 0.0
          %1396 = vmatpush1.msra.mxu0 0.0
          %1397 = vmatprep.subr.mxu0 0.0
          %1398 = vmatpush1.msra.mxu0 0.0
          %1399 = vmatprep.subr.mxu0 0.0
          %1400 = vmatpush1.msra.mxu0 0.0
          %1401 = vmatprep.subr.mxu0 0.0
          %1402 = vmatpush1.msra.mxu0 0.0
          %1403 = vmatprep.subr.mxu0 0.0
          %1404 = vmatpush1.msra.mxu0 0.0
          %1405 = vmatprep.subr.mxu0 0.0
          %1406 = vmatpush1.msra.mxu0 0.0
          %1407 = vmatprep.subr.mxu0 0.0
          %1408 = vmatpush1.msra.mxu0 0.0
          %1409 = vmatprep.subr.mxu0 0.0
          %1410 = vmatpush1.msra.mxu0 0.0
          %1411 = vmatprep.subr.mxu0 0.0
          %1412 = vmatpush1.msra.mxu0 0.0
          %1413 = vmatprep.subr.mxu0 0.0
          %1414 = vmatpush1.msra.mxu0 0.0
          %1415 = vmatprep.subr.mxu0 0.0
          %1416 = vmatpush1.msra.mxu0 0.0
          %1417 = vmatprep.subr.mxu0 0.0
          %1418 = vmatpush1.msra.mxu0 0.0
          %1419 = vmatprep.subr.mxu0 0.0
          %1420 = vmatpush1.msra.mxu0 0.0
          %1421 = vmatprep.subr.mxu0 0.0
          %1422 = vmatpush1.msra.mxu0 0.0
          %1423 = vmatprep.subr.mxu0 0.0
          %1424 = vmatpush1.msra.mxu0 0.0
          %1425 = vmatprep.subr.mxu0 0.0
          %1426 = vmatpush1.msra.mxu0 0.0
          %1427 = vmatprep.subr.mxu0 0.0
          %1428 = vmatpush1.msra.mxu0 0.0
          %1429 = vmatprep.subr.mxu0 0.0
          %1430 = vmatpush1.msra.mxu0 0.0
          %1431 = vmatprep.subr.mxu0 0.0
          %1432 = vmatpush1.msra.mxu0 0.0
          %1433 = vmatprep.subr.mxu0 0.0
          %1434 = vmatpush1.msra.mxu0 0.0
          %1435 = vmatprep.subr.mxu0 0.0
          %1436 = vmatpush1.msra.mxu0 0.0
          %1437 = vmatprep.subr.mxu0 0.0
          %1438 = vmatpush1.msra.mxu0 0.0
          %1439 = vmatprep.mubr.f32.mxu0 0.0
          %1440 = vmatmul.mubr.f32.gmra.mrb[0].mxu0 %v1373
          %v1441 = vpop.f32.mrb[0].mxu0
          %v1442 = vadd.f32 0.0, %v1441
          %v1443 = vpop.f32.mrb[0].mxu0
          %1444 = vdwg.mxu0
          %v1445 = vadd.f32 %v1368, %v1442
        $region53: #{tpu_custom_call.1} parent=47 // loop_footer
          %s736 = sadd.s32 %s734, 1
        $region54: #{tpu_custom_call.1} parent=47 // loop_footer_branch
          %733 = sbr.rel target = $region50
        $region55: #{tpu_custom_call.1} parent=47 // loop_exit
          _
        %v1446 = vrcp.pop %v740
        %v1447 = vmul.f32 %v741, %v1446
        %v1448 = vrcp.pop %v743
        %v1449 = vmul.f32 %v744, %v1448
        %v1450 = vrcp.pop %v746
        %v1451 = vmul.f32 %v747, %v1450
        %v1452 = vrcp.pop %v749
        %v1453 = vmul.f32 %v750, %v1452
        %1455 = vrot.lane.b32.xlu0 %v1449, 8
        %v1456 = vpop.permute.xlu0 %1455
        %1459 = vrot.lane.b32.xlu0 %v1451, 16
        %v1460 = vpop.permute.xlu0 %1459
        %1463 = vrot.lane.b32.xlu0 %v1453, 24
        %v1464 = vpop.permute.xlu0 %1463
        %v1466 = vsel %vm713, %v1447, %v1456
        %v1467 = vsel %vm715, %v1466, %v1460
        %v1468 = vsel %vm717, %v1467, %v1464
        %v1469 = vld [vmem:[%s4] sm:$0xff]
        %v1470 = vld [vmem:[%s4 + $0x8] sm:$0xff]
        %v1471 = vld [vmem:[%s4 + $0x10] sm:$0xff]
        %v1472 = vld [vmem:[%s4 + $0x18] sm:$0xff]
        %v1474 = vsel %vm339, %v1468, 0
        %1476 = vmatprep.subr.mxu0 0.0
        %1477 = vmatpush1.msra.mxu0 %v1469
        %1478 = vmatprep.subr.mxu0 0.0
        %1479 = vmatpush1.msra.mxu0 %v1470
        %1480 = vmatprep.subr.mxu0 0.0
        %1481 = vmatpush1.msra.mxu0 %v1471
        %1482 = vmatprep.subr.mxu0 0.0
        %1483 = vmatpush1.msra.mxu0 %v1472
        %1484 = vmatprep.subr.mxu0 0.0
        %1485 = vmatpush1.msra.mxu0 0.0
        %1486 = vmatprep.subr.mxu0 0.0
        %1487 = vmatpush1.msra.mxu0 0.0
        %1488 = vmatprep.subr.mxu0 0.0
        %1489 = vmatpush1.msra.mxu0 0.0
        %1490 = vmatprep.subr.mxu0 0.0
        %1491 = vmatpush1.msra.mxu0 0.0
        %1492 = vmatprep.subr.mxu0 0.0
        %1493 = vmatpush1.msra.mxu0 0.0
        %1494 = vmatprep.subr.mxu0 0.0
        %1495 = vmatpush1.msra.mxu0 0.0
        %1496 = vmatprep.subr.mxu0 0.0
        %1497 = vmatpush1.msra.mxu0 0.0
        %1498 = vmatprep.subr.mxu0 0.0
        %1499 = vmatpush1.msra.mxu0 0.0
        %1500 = vmatprep.subr.mxu0 0.0
        %1501 = vmatpush1.msra.mxu0 0.0
        %1502 = vmatprep.subr.mxu0 0.0
        %1503 = vmatpush1.msra.mxu0 0.0
        %1504 = vmatprep.subr.mxu0 0.0
        %1505 = vmatpush1.msra.mxu0 0.0
        %1506 = vmatprep.subr.mxu0 0.0
        %1507 = vmatpush1.msra.mxu0 0.0
        %1508 = vmatprep.subr.mxu0 0.0
        %1509 = vmatpush1.msra.mxu0 0.0
        %1510 = vmatprep.subr.mxu0 0.0
        %1511 = vmatpush1.msra.mxu0 0.0
        %1512 = vmatprep.subr.mxu0 0.0
        %1513 = vmatpush1.msra.mxu0 0.0
        %1514 = vmatprep.subr.mxu0 0.0
        %1515 = vmatpush1.msra.mxu0 0.0
        %1516 = vmatprep.subr.mxu0 0.0
        %1517 = vmatpush1.msra.mxu0 0.0
        %1518 = vmatprep.subr.mxu0 0.0
        %1519 = vmatpush1.msra.mxu0 0.0
        %1520 = vmatprep.subr.mxu0 0.0
        %1521 = vmatpush1.msra.mxu0 0.0
        %1522 = vmatprep.subr.mxu0 0.0
        %1523 = vmatpush1.msra.mxu0 0.0
        %1524 = vmatprep.subr.mxu0 0.0
        %1525 = vmatpush1.msra.mxu0 0.0
        %1526 = vmatprep.subr.mxu0 0.0
        %1527 = vmatpush1.msra.mxu0 0.0
        %1528 = vmatprep.subr.mxu0 0.0
        %1529 = vmatpush1.msra.mxu0 0.0
        %1530 = vmatprep.subr.mxu0 0.0
        %1531 = vmatpush1.msra.mxu0 0.0
        %1532 = vmatprep.subr.mxu0 0.0
        %1533 = vmatpush1.msra.mxu0 0.0
        %1534 = vmatprep.subr.mxu0 0.0
        %1535 = vmatpush1.msra.mxu0 0.0
        %1536 = vmatprep.subr.mxu0 0.0
        %1537 = vmatpush1.msra.mxu0 0.0
        %1538 = vmatprep.subr.mxu0 0.0
        %1539 = vmatpush1.msra.mxu0 0.0
        %1540 = vmatprep.mubr.f32.mxu0 0.0
        %1541 = vmatmul.mubr.f32.gmra.mrb[0].mxu0 %v1474
        %v1542 = vpop.f32.mrb[0].mxu0
        %v1543 = vadd.f32 0.0, %v1542
        %v1544 = vpop.f32.mrb[0].mxu0
        %1545 = vdwg.mxu0
        %v1546 = vmul.f32 %v1543, 0.5
        %v1547 = vadd.f32 %v337, %v1546
        %v1548 = vmul.f32 %v1547, %v1547
        %v1549 = vsel %vm339, %v1548, 0.0
        %1550 = vadd.xlane.f32.xlu0 %v1549
        %v1551 = vpop.xlane.xlu0 %1550
        %v1552 = vmul.f32 %v1551, %v343
        %v1553 = vadd.f32 %v1552, 1e-06
        %v1554 = vrsqrt.pop %v1553
        %v1555 = vmul.f32 %v1547, %v1554
        %v1556 = vld [vmem:[%s5] sm:$0xff]
        %v1557 = vld [vmem:[%s5 + $0x8] sm:$0xff]
        %v1558 = vld [vmem:[%s5 + $0x10] sm:$0xff]
        %v1559 = vld [vmem:[%s5 + $0x18] sm:$0xff]
        %v1561 = vsel %vm339, %v1555, 0
        %1563 = vmatprep.subr.mxu0 0.0
        %1564 = vmatpush1.msra.mxu0 %v1556
        %1565 = vmatprep.subr.mxu0 0.0
        %1566 = vmatpush1.msra.mxu0 %v1557
        %1567 = vmatprep.subr.mxu0 0.0
        %1568 = vmatpush1.msra.mxu0 %v1558
        %1569 = vmatprep.subr.mxu0 0.0
        %1570 = vmatpush1.msra.mxu0 %v1559
        %1571 = vmatprep.subr.mxu0 0.0
        %1572 = vmatpush1.msra.mxu0 0.0
        %1573 = vmatprep.subr.mxu0 0.0
        %1574 = vmatpush1.msra.mxu0 0.0
        %1575 = vmatprep.subr.mxu0 0.0
        %1576 = vmatpush1.msra.mxu0 0.0
        %1577 = vmatprep.subr.mxu0 0.0
        %1578 = vmatpush1.msra.mxu0 0.0
        %1579 = vmatprep.subr.mxu0 0.0
        %1580 = vmatpush1.msra.mxu0 0.0
        %1581 = vmatprep.subr.mxu0 0.0
        %1582 = vmatpush1.msra.mxu0 0.0
        %1583 = vmatprep.subr.mxu0 0.0
        %1584 = vmatpush1.msra.mxu0 0.0
        %1585 = vmatprep.subr.mxu0 0.0
        %1586 = vmatpush1.msra.mxu0 0.0
        %1587 = vmatprep.subr.mxu0 0.0
        %1588 = vmatpush1.msra.mxu0 0.0
        %1589 = vmatprep.subr.mxu0 0.0
        %1590 = vmatpush1.msra.mxu0 0.0
        %1591 = vmatprep.subr.mxu0 0.0
        %1592 = vmatpush1.msra.mxu0 0.0
        %1593 = vmatprep.subr.mxu0 0.0
        %1594 = vmatpush1.msra.mxu0 0.0
        %1595 = vmatprep.subr.mxu0 0.0
        %1596 = vmatpush1.msra.mxu0 0.0
        %1597 = vmatprep.subr.mxu0 0.0
        %1598 = vmatpush1.msra.mxu0 0.0
        %1599 = vmatprep.subr.mxu0 0.0
        %1600 = vmatpush1.msra.mxu0 0.0
        %1601 = vmatprep.subr.mxu0 0.0
        %1602 = vmatpush1.msra.mxu0 0.0
        %1603 = vmatprep.subr.mxu0 0.0
        %1604 = vmatpush1.msra.mxu0 0.0
        %1605 = vmatprep.subr.mxu0 0.0
        %1606 = vmatpush1.msra.mxu0 0.0
        %1607 = vmatprep.subr.mxu0 0.0
        %1608 = vmatpush1.msra.mxu0 0.0
        %1609 = vmatprep.subr.mxu0 0.0
        %1610 = vmatpush1.msra.mxu0 0.0
        %1611 = vmatprep.subr.mxu0 0.0
        %1612 = vmatpush1.msra.mxu0 0.0
        %1613 = vmatprep.subr.mxu0 0.0
        %1614 = vmatpush1.msra.mxu0 0.0
        %1615 = vmatprep.subr.mxu0 0.0
        %1616 = vmatpush1.msra.mxu0 0.0
        %1617 = vmatprep.subr.mxu0 0.0
        %1618 = vmatpush1.msra.mxu0 0.0
        %1619 = vmatprep.subr.mxu0 0.0
        %1620 = vmatpush1.msra.mxu0 0.0
        %1621 = vmatprep.subr.mxu0 0.0
        %1622 = vmatpush1.msra.mxu0 0.0
        %1623 = vmatprep.subr.mxu0 0.0
        %1624 = vmatpush1.msra.mxu0 0.0
        %1625 = vmatprep.subr.mxu0 0.0
        %1626 = vmatpush1.msra.mxu0 0.0
        %1627 = vmatprep.mubr.f32.mxu0 0.0
        %1628 = vmatmul.mubr.f32.gmra.mrb[0].mxu0 %v1561
        %v1629 = vpop.f32.mrb[0].mxu0
        %v1630 = vadd.f32 0.0, %v1629
        %v1631 = vpop.f32.mrb[0].mxu0
        %1632 = vdwg.mxu0
        %v1633 = vmul.f32 %v1630, 0.5
        %v1634 = vmul.f32 %v1630, 0.70710677
        %v1635 = verf.f32.pop %v1634
        %v1636 = vadd.f32 %v1635, 1.0
        %v1637 = vmul.f32 %v1633, %v1636
        %v1638 = vld [vmem:[%s6] sm:$0xff]
        %v1639 = vld [vmem:[%s6 + $0x8] sm:$0xff]
        %v1640 = vld [vmem:[%s6 + $0x10] sm:$0xff]
        %v1641 = vld [vmem:[%s6 + $0x18] sm:$0xff]
        %v1642 = vld [vmem:[%s6 + $0x20] sm:$0xff]
        %v1643 = vld [vmem:[%s6 + $0x28] sm:$0xff]
        %v1644 = vld [vmem:[%s6 + $0x30] sm:$0xff]
        %v1645 = vld [vmem:[%s6 + $0x38] sm:$0xff]
        %v1646 = vld [vmem:[%s6 + $0x40] sm:$0xff]
        %v1647 = vld [vmem:[%s6 + $0x48] sm:$0xff]
        %v1648 = vld [vmem:[%s6 + $0x50] sm:$0xff]
        %v1649 = vld [vmem:[%s6 + $0x58] sm:$0xff]
        %v1650 = vld [vmem:[%s6 + $0x60] sm:$0xff]
        %v1651 = vld [vmem:[%s6 + $0x68] sm:$0xff]
        %v1652 = vld [vmem:[%s6 + $0x70] sm:$0xff]
        %v1653 = vld [vmem:[%s6 + $0x78] sm:$0xff]
        %1654 = vmatprep.subr.mxu0 0.0
        %1655 = vmatpush1.msra.mxu0 %v1638
        %1656 = vmatprep.subr.mxu0 0.0
        %1657 = vmatpush1.msra.mxu0 %v1639
        %1658 = vmatprep.subr.mxu0 0.0
        %1659 = vmatpush1.msra.mxu0 %v1640
        %1660 = vmatprep.subr.mxu0 0.0
        %1661 = vmatpush1.msra.mxu0 %v1641
        %1662 = vmatprep.subr.mxu0 0.0
        %1663 = vmatpush1.msra.mxu0 %v1642
        %1664 = vmatprep.subr.mxu0 0.0
        %1665 = vmatpush1.msra.mxu0 %v1643
        %1666 = vmatprep.subr.mxu0 0.0
        %1667 = vmatpush1.msra.mxu0 %v1644
        %1668 = vmatprep.subr.mxu0 0.0
        %1669 = vmatpush1.msra.mxu0 %v1645
        %1670 = vmatprep.subr.mxu0 0.0
        %1671 = vmatpush1.msra.mxu0 %v1646
        %1672 = vmatprep.subr.mxu0 0.0
        %1673 = vmatpush1.msra.mxu0 %v1647
        %1674 = vmatprep.subr.mxu0 0.0
        %1675 = vmatpush1.msra.mxu0 %v1648
        %1676 = vmatprep.subr.mxu0 0.0
        %1677 = vmatpush1.msra.mxu0 %v1649
        %1678 = vmatprep.subr.mxu0 0.0
        %1679 = vmatpush1.msra.mxu0 %v1650
        %1680 = vmatprep.subr.mxu0 0.0
        %1681 = vmatpush1.msra.mxu0 %v1651
        %1682 = vmatprep.subr.mxu0 0.0
        %1683 = vmatpush1.msra.mxu0 %v1652
        %1684 = vmatprep.subr.mxu0 0.0
        %1685 = vmatpush1.msra.mxu0 %v1653
        %1686 = vmatprep.subr.mxu0 0.0
        %1687 = vmatpush1.msra.mxu0 0.0
        %1688 = vmatprep.subr.mxu0 0.0
        %1689 = vmatpush1.msra.mxu0 0.0
        %1690 = vmatprep.subr.mxu0 0.0
        %1691 = vmatpush1.msra.mxu0 0.0
        %1692 = vmatprep.subr.mxu0 0.0
        %1693 = vmatpush1.msra.mxu0 0.0
        %1694 = vmatprep.subr.mxu0 0.0
        %1695 = vmatpush1.msra.mxu0 0.0
        %1696 = vmatprep.subr.mxu0 0.0
        %1697 = vmatpush1.msra.mxu0 0.0
        %1698 = vmatprep.subr.mxu0 0.0
        %1699 = vmatpush1.msra.mxu0 0.0
        %1700 = vmatprep.subr.mxu0 0.0
        %1701 = vmatpush1.msra.mxu0 0.0
        %1702 = vmatprep.subr.mxu0 0.0
        %1703 = vmatpush1.msra.mxu0 0.0
        %1704 = vmatprep.subr.mxu0 0.0
        %1705 = vmatpush1.msra.mxu0 0.0
        %1706 = vmatprep.subr.mxu0 0.0
        %1707 = vmatpush1.msra.mxu0 0.0
        %1708 = vmatprep.subr.mxu0 0.0
        %1709 = vmatpush1.msra.mxu0 0.0
        %1710 = vmatprep.subr.mxu0 0.0
        %1711 = vmatpush1.msra.mxu0 0.0
        %1712 = vmatprep.subr.mxu0 0.0
        %1713 = vmatpush1.msra.mxu0 0.0
        %1714 = vmatprep.subr.mxu0 0.0
        %1715 = vmatpush1.msra.mxu0 0.0
        %1716 = vmatprep.subr.mxu0 0.0
        %1717 = vmatpush1.msra.mxu0 0.0
        %1718 = vmatprep.mubr.f32.mxu0 0.0
        %1719 = vmatmul.mubr.f32.gmra.mrb[0].mxu0 %v1637
        %v1720 = vpop.f32.mrb[0].mxu0
        %v1721 = vadd.f32 0.0, %v1720
        %v1722 = vpop.f32.mrb[0].mxu0
        %1723 = vdwg.mxu0
        %v1724 = vadd.f32 %v1547, %v1721
        %1725 = vst.msk [vmem:[%s319] sm:$0xff] %vm339, %v1724
        %s1726 = sand.u32 %s207, 1
        %s1727 = scalar_lea.sflag [#allocation5], %s1726
        %s1728 = sand.u32 %s207, 1
        %s1729 = smul.addr %s1728, 8
        %s1730 = scalar_lea.vmem [#allocation4], %s1729
        // Predicated region
        $region56: #{tpu_custom_call.1} parent=47 // pred_check
          %p1731 = pneg %p217
        $region57: #{tpu_custom_call.1} parent=47 // pred_check_branch
          %1733 = sbr.rel (%p1731) target = $region59
        $region58: #{tpu_custom_call.1} parent=47 // pred_region
          %s1735 = ssub.s32 128, 128
          %1736 = vsyncadd %s1727, %s1735
          %s1737 = smul.addr %s25, 2
          %s1738 = sadd.s32 %s26, %s1737
          %s1739 = smul.addr %s1738, 128
          %s1740 = scalar_lea.hbm %s7, %s1739
          %s1742 = sshll.u32 %s1730, 4
          %s1743 = int_to_ptr.vmem [resolvable:$true] %s1742
          %1745 = dma.vmem_to_hbm [thread:$0]  %s1743, 128, %s1740, %s1727
        $region59: #{tpu_custom_call.1} parent=47 // pred_fallthru
          _
      $region48: #{tpu_custom_call.1} parent=5 // pred_fallthru
        _
      %p1746 = scmp.le.s32.totalorder 2, %s16
      // Predicated region
      $region60: #{tpu_custom_call.1} parent=5 // pred_check
        %p1747 = pneg %p1746
      $region61: #{tpu_custom_call.1} parent=5 // pred_check_branch
        %1749 = sbr.rel (%p1747) target = $region63
      $region62: #{tpu_custom_call.1} parent=5 // pred_region
        %s1750 = ssub.s32 %s16, 2
        // Predicated region
        $region64: #{tpu_custom_call.1} parent=62 // pred_check
          %p1751 = pneg %p223
        $region65: #{tpu_custom_call.1} parent=62 // pred_check_branch
          %1753 = sbr.rel (%p1751) target = $region67
        $region66: #{tpu_custom_call.1} parent=62 // pred_region
          %s1754 = sand.u32 %s208, 1
          %s1755 = scalar_lea.sflag [#allocation5], %s1754
          %s1756 = sand.u32 %s208, 1
          %s1757 = smul.addr %s1756, 8
          %s1758 = scalar_lea.vmem [#allocation4], %s1757
          %1759 = dma.done %s1755, 128
        $region67: #{tpu_custom_call.1} parent=62 // pred_fallthru
          _
      $region63: #{tpu_custom_call.1} parent=5 // pred_fallthru
        _
    $region6: #{tpu_custom_call.1} parent=1 // loop_footer
      %s20 = sadd.s32 1, %s16
    $region7: #{tpu_custom_call.1} parent=1 // loop_footer_branch
      %15 = sbr.rel target = $region3
    $region8: #{tpu_custom_call.1} parent=1 // loop_exit
      _
    %1760 = vsyncpa [#allocation5], 1
    %s1761 = scalar_lea.sflag [#allocation5], 1
    %1762 = vsyncpa %s1761, 1

// kernel: tpu_custom_call.1
$region0: #{tpu_custom_call.1}
  #allocation0 [shape = 'u32[]', space=smem, size = 0x4, offset = 0x4, fixed_abs, tag = 'smem constant byte address 0x4 - core index']
  #allocation1 [shape = 'u32[144,128]{1,0:T(1,128)}', space=vmem, size = 0x12000, scoped, tag = 'internal scratch']
  #allocation2 [shape = 'f32[16,32]{1,0:T(8,128)}', space=vmem, size = 0x2000, scoped, tag = 'scratch operand']
  #allocation3 [shape = 'f32[16,32]{1,0:T(8,128)}', space=vmem, size = 0x2000, scoped, tag = 'scratch operand']
  %s0 = inlined_call_operand.vmem [shape: f32[2,16,32], index: 0, kind: input, shape index: {}]
  %s1 = inlined_call_operand.vmem [shape: f32[16,4], index: 1, kind: input, shape index: {}]
  %s2 = inlined_call_operand.vmem [shape: f32[16,4], index: 2, kind: input, shape index: {}]
  %s3 = inlined_call_operand.vmem [shape: f32[32,96], index: 3, kind: input, shape index: {}]
  %s4 = inlined_call_operand.vmem [shape: f32[32,32], index: 4, kind: input, shape index: {}]
  %s5 = inlined_call_operand.vmem [shape: f32[32,128], index: 5, kind: input, shape index: {}]
  %s6 = inlined_call_operand.vmem [shape: f32[128,32], index: 6, kind: input, shape index: {}]
  %s7 = inlined_call_operand.hbm [shape: f32[2,16,32], index: 7, kind: output, shape index: {}]
  %s8 = sld [smem:[#allocation0]]
  $region68: #{tpu_custom_call.1} parent=0
    _
  %s10 = ssub.s32 1, %s8
  %s11 = scalar_select 0, %s10, %s8
  $region1: #{tpu_custom_call.1} parent=0
    #allocation4 [shape = 'u8[8192]{0}', space=vmem, size = 0x2000, scoped, tag = 'output window, operand 0']
    #allocation5 [shape = 's32[2]{0}', space=sflag, size = 0x8, scoped, tag = 'scoped memory for tpu_custom_call.1']
    %12 = vsyncpa [#allocation5], 0
    %s13 = scalar_lea.sflag [#allocation5], 1
    %14 = vsyncpa %s13, 0
    loop: start=0, step=1, limit=6
    $region2: #{tpu_custom_call.1} parent=1 // loop_pre_header
      _
    $region3: #{tpu_custom_call.1} parent=1 // loop_header
      %s16 = sphi 0, %s20
      %p17 = scmp.ge.s32.totalorder %s16, 6
      %s23 = sphi 0, %s35
      %s24 = sphi 0, %s31
      %s25 = sphi 0, %s23
      %s26 = sphi 0, %s24
      %s27 = sphi 0, %s25
      %s28 = sphi 0, %s26
      %s40 = sphi 0, %s42
      %s43 = sphi 0, %s40
      %s44 = sphi 0, %s43
      %s60 = sphi 0, %s44
      %s66 = sphi 0, %s68
      %s69 = sphi 0, %s66
      %s70 = sphi 0, %s69
      %s86 = sphi 0, %s70
      %s92 = sphi 0, %s94
      %s95 = sphi 0, %s92
      %s96 = sphi 0, %s95
      %s112 = sphi 0, %s96
      %s116 = sphi 0, %s116
      %s118 = sphi 0, %s116
      %s119 = sphi 0, %s118
      %s133 = sphi 0, %s119
      %s137 = sphi 0, %s137
      %s139 = sphi 0, %s137
      %s140 = sphi 0, %s139
      %s154 = sphi 0, %s140
      %s158 = sphi 0, %s158
      %s160 = sphi 0, %s158
      %s161 = sphi 0, %s160
      %s175 = sphi 0, %s161
      %s179 = sphi 0, %s179
      %s181 = sphi 0, %s179
      %s182 = sphi 0, %s181
      %s196 = sphi 0, %s182
      %s204 = sphi 0, %s206
      %s207 = sphi 0, %s204
      %s208 = sphi 0, %s207
      %s224 = sphi 0, %s208
    $region4: #{tpu_custom_call.1} parent=1 // loop_header_branch
      %19 = sbr.rel (%p17) target = $region8
    $region5: #{tpu_custom_call.1} parent=1 // loop_body
      %s21 = ssub.s32 %s16, 1
      %s22 = ssub.s32 %s16, 2
      %s29 = sadd.s32 1, %s24
      %p30 = scmp.ge.s32.totalorder %s29, 2
      %s31 = scalar_select %p30, 0, %s29
      %s32 = sadd.s32 1, %s23
      %s33 = scalar_select %p30, %s32, %s23
      %p34 = scmp.ge.s32.totalorder %s33, 2
      %s35 = scalar_select %p34, 0, %s33
      %s36 = ssub.s32 %s23, %s35
      %s37 = ssub.s32 %s24, %s31
      %s38 = sor.u32 %s36, %s37
      %p39 = scmp.eq.s32.totalorder %s38, 0
      %s41 = sadd.s32 %s40, 1
      %s42 = scalar_select %p39, %s40, %s41
      %p45 = pneg %p39
      %p46 = scmp.eq.s32.totalorder %s16, 3
      %p47 = por %p45, %p46
      %p48 = scmp.ne.s32.totalorder %s40, %s43
      %p49 = scmp.eq.s32.totalorder %s16, 0
      %p50 = por %p48, %p49
      %p51 = scmp.ne.s32.totalorder %s40, %s43
      %p52 = scmp.eq.s32.totalorder %s21, 3
      %p53 = por %p51, %p52
      %p54 = scmp.ne.s32.totalorder %s43, %s44
      %p55 = scmp.eq.s32.totalorder %s21, 0
      %p56 = por %p54, %p55
      %p57 = scmp.ne.s32.totalorder %s43, %s44
      %p58 = scmp.eq.s32.totalorder %s22, 3
      %p59 = por %p57, %p58
      %p61 = scmp.ne.s32.totalorder %s44, %s60
      %p62 = scmp.eq.s32.totalorder %s22, 0
      %p63 = por %p61, %p62
      %s64 = ssub.s32 %s24, %s31
      %p65 = scmp.eq.s32.totalorder %s64, 0
      %s67 = sadd.s32 %s66, 1
      %s68 = scalar_select %p65, %s66, %s67
      %p71 = pneg %p65
      %p72 = scmp.eq.s32.totalorder %s16, 3
      %p73 = por %p71, %p72
      %p74 = scmp.ne.s32.totalorder %s66, %s69
      %p75 = scmp.eq.s32.totalorder %s16, 0
      %p76 = por %p74, %p75
      %p77 = scmp.ne.s32.totalorder %s66, %s69
      %p78 = scmp.eq.s32.totalorder %s21, 3
      %p79 = por %p77, %p78
      %p80 = scmp.ne.s32.totalorder %s69, %s70
      %p81 = scmp.eq.s32.totalorder %s21, 0
      %p82 = por %p80, %p81
      %p83 = scmp.ne.s32.totalorder %s69, %s70
      %p84 = scmp.eq.s32.totalorder %s22, 3
      %p85 = por %p83, %p84
      %p87 = scmp.ne.s32.totalorder %s70, %s86
      %p88 = scmp.eq.s32.totalorder %s22, 0
      %p89 = por %p87, %p88
      %s90 = ssub.s32 %s24, %s31
      %p91 = scmp.eq.s32.totalorder %s90, 0
      %s93 = sadd.s32 %s92, 1
      %s94 = scalar_select %p91, %s92, %s93
      %p97 = pneg %p91
      %p98 = scmp.eq.s32.totalorder %s16, 3
      %p99 = por %p97, %p98
      %p100 = scmp.ne.s32.totalorder %s92, %s95
      %p101 = scmp.eq.s32.totalorder %s16, 0
      %p102 = por %p100, %p101
      %p103 = scmp.ne.s32.totalorder %s92, %s95
      %p104 = scmp.eq.s32.totalorder %s21, 3
      %p105 = por %p103, %p104
      %p106 = scmp.ne.s32.totalorder %s95, %s96
      %p107 = scmp.eq.s32.totalorder %s21, 0
      %p108 = por %p106, %p107
      %p109 = scmp.ne.s32.totalorder %s95, %s96
      %p110 = scmp.eq.s32.totalorder %s22, 3
      %p111 = por %p109, %p110
      %p113 = scmp.ne.s32.totalorder %s96, %s112
      %p114 = scmp.eq.s32.totalorder %s22, 0
      %p115 = por %p113, %p114
      %s117 = sadd.s32 %s116, 1
      %p120 = scmp.eq.s32.totalorder %s16, 3
      %p121 = scmp.ne.s32.totalorder %s116, %s118
      %p122 = scmp.eq.s32.totalorder %s16, 0
      %p123 = por %p121, %p122
      %p124 = scmp.ne.s32.totalorder %s116, %s118
      %p125 = scmp.eq.s32.totalorder %s21, 3
      %p126 = por %p124, %p125
      %p127 = scmp.ne.s32.totalorder %s118, %s119
      %p128 = scmp.eq.s32.totalorder %s21, 0
      %p129 = por %p127, %p128
      %p130 = scmp.ne.s32.totalorder %s118, %s119
      %p131 = scmp.eq.s32.totalorder %s22, 3
      %p132 = por %p130, %p131
      %p134 = scmp.ne.s32.totalorder %s119, %s133
      %p135 = scmp.eq.s32.totalorder %s22, 0
      %p136 = por %p134, %p135
      %s138 = sadd.s32 %s137, 1
      %p141 = scmp.eq.s32.totalorder %s16, 3
      %p142 = scmp.ne.s32.totalorder %s137, %s139
      %p143 = scmp.eq.s32.totalorder %s16, 0
      %p144 = por %p142, %p143
      %p145 = scmp.ne.s32.totalorder %s137, %s139
      %p146 = scmp.eq.s32.totalorder %s21, 3
      %p147 = por %p145, %p146
      %p148 = scmp.ne.s32.totalorder %s139, %s140
      %p149 = scmp.eq.s32.totalorder %s21, 0
      %p150 = por %p148, %p149
      %p151 = scmp.ne.s32.totalorder %s139, %s140
      %p152 = scmp.eq.s32.totalorder %s22, 3
      %p153 = por %p151, %p152
      %p155 = scmp.ne.s32.totalorder %s140, %s154
      %p156 = scmp.eq.s32.totalorder %s22, 0
      %p157 = por %p155, %p156
      %s159 = sadd.s32 %s158, 1
      %p162 = scmp.eq.s32.totalorder %s16, 3
      %p163 = scmp.ne.s32.totalorder %s158, %s160
      %p164 = scmp.eq.s32.totalorder %s16, 0
      %p165 = por %p163, %p164
      %p166 = scmp.ne.s32.totalorder %s158, %s160
      %p167 = scmp.eq.s32.totalorder %s21, 3
      %p168 = por %p166, %p167
      %p169 = scmp.ne.s32.totalorder %s160, %s161
      %p170 = scmp.eq.s32.totalorder %s21, 0
      %p171 = por %p169, %p170
      %p172 = scmp.ne.s32.totalorder %s160, %s161
      %p173 = scmp.eq.s32.totalorder %s22, 3
      %p174 = por %p172, %p173
      %p176 = scmp.ne.s32.totalorder %s161, %s175
      %p177 = scmp.eq.s32.totalorder %s22, 0
      %p178 = por %p176, %p177
      %s180 = sadd.s32 %s179, 1
      %p183 = scmp.eq.s32.totalorder %s16, 3
      %p184 = scmp.ne.s32.totalorder %s179, %s181
      %p185 = scmp.eq.s32.totalorder %s16, 0
      %p186 = por %p184, %p185
      %p187 = scmp.ne.s32.totalorder %s179, %s181
      %p188 = scmp.eq.s32.totalorder %s21, 3
      %p189 = por %p187, %p188
      %p190 = scmp.ne.s32.totalorder %s181, %s182
      %p191 = scmp.eq.s32.totalorder %s21, 0
      %p192 = por %p190, %p191
      %p193 = scmp.ne.s32.totalorder %s181, %s182
      %p194 = scmp.eq.s32.totalorder %s22, 3
      %p195 = por %p193, %p194
      %p197 = scmp.ne.s32.totalorder %s182, %s196
      %p198 = scmp.eq.s32.totalorder %s22, 0
      %p199 = por %p197, %p198
      %s200 = ssub.s32 %s23, %s35
      %s201 = ssub.s32 %s24, %s31
      %s202 = sor.u32 %s200, %s201
      %p203 = scmp.eq.s32.totalorder %s202, 0
      %s205 = sadd.s32 %s204, 1
      %s206 = scalar_select %p203, %s204, %s205
      %p209 = pneg %p203
      %p210 = scmp.eq.s32.totalorder %s16, 3
      %p211 = por %p209, %p210
      %p212 = scmp.ne.s32.totalorder %s204, %s207
      %p213 = scmp.eq.s32.totalorder %s16, 0
      %p214 = por %p212, %p213
      %p215 = scmp.ne.s32.totalorder %s204, %s207
      %p216 = scmp.eq.s32.totalorder %s21, 3
      %p217 = por %p215, %p216
      %p218 = scmp.ne.s32.totalorder %s207, %s208
      %p219 = scmp.eq.s32.totalorder %s21, 0
      %p220 = por %p218, %p219
      %p221 = scmp.ne.s32.totalorder %s207, %s208
      %p222 = scmp.eq.s32.totalorder %s22, 3
      %p223 = por %p221, %p222
      %p225 = scmp.ne.s32.totalorder %s208, %s224
      %p226 = scmp.eq.s32.totalorder %s22, 0
      %p227 = por %p225, %p226
      %p228 = scmp.le.s32.totalorder 1, %s16
      %p229 = scmp.lt.s32.totalorder %s16, 5
      %p230 = pnand %p228, %p229
      %p231 = pneg %p230
      // Predicated region
      $region9: #{tpu_custom_call.1} parent=5 // pred_check
        _
      $region10: #{tpu_custom_call.1} parent=5 // pred_check_branch
        %233 = sbr.rel (%p230) target = $region12
      $region11: #{tpu_custom_call.1} parent=5 // pred_region
        %s234 = ssub.s32 %s16, 1
        // Predicated region
        $region13: #{tpu_custom_call.1} parent=11 // pred_check
          %p235 = pneg %p129
        $region14: #{tpu_custom_call.1} parent=11 // pred_check_branch
          %237 = sbr.rel (%p235) target = $region16
        $region15: #{tpu_custom_call.1} parent=11 // pred_region
          _
        $region16: #{tpu_custom_call.1} parent=11 // pred_fallthru
          _
        // Predicated region
        $region17: #{tpu_custom_call.1} parent=11 // pred_check
          %p238 = pneg %p150
        $region18: #{tpu_custom_call.1} parent=11 // pred_check_branch
          %240 = sbr.rel (%p238) target = $region20
        $region19: #{tpu_custom_call.1} parent=11 // pred_region
          _
        $region20: #{tpu_custom_call.1} parent=11 // pred_fallthru
          _
        // Predicated region
        $region21: #{tpu_custom_call.1} parent=11 // pred_check
          %p241 = pneg %p171
        $region22: #{tpu_custom_call.1} parent=11 // pred_check_branch
          %243 = sbr.rel (%p241) target = $region24
        $region23: #{tpu_custom_call.1} parent=11 // pred_region
          _
        $region24: #{tpu_custom_call.1} parent=11 // pred_fallthru
          _
        // Predicated region
        $region25: #{tpu_custom_call.1} parent=11 // pred_check
          %p244 = pneg %p192
        $region26: #{tpu_custom_call.1} parent=11 // pred_check_branch
          %246 = sbr.rel (%p244) target = $region28
        $region27: #{tpu_custom_call.1} parent=11 // pred_region
          _
        $region28: #{tpu_custom_call.1} parent=11 // pred_fallthru
          _
      $region12: #{tpu_custom_call.1} parent=5 // pred_fallthru
        _
      %p247 = scmp.lt.s32.totalorder %s16, 4
      // Predicated region
      $region29: #{tpu_custom_call.1} parent=5 // pred_check
        %p248 = pneg %p247
      $region30: #{tpu_custom_call.1} parent=5 // pred_check_branch
        %250 = sbr.rel (%p248) target = $region32
      $region31: #{tpu_custom_call.1} parent=5 // pred_region
        // Predicated region
        $region33: #{tpu_custom_call.1} parent=31 // pred_check
          %p251 = pneg %p50
        $region34: #{tpu_custom_call.1} parent=31 // pred_check_branch
          %253 = sbr.rel (%p251) target = $region36
        $region35: #{tpu_custom_call.1} parent=31 // pred_region
          %p254 = scmp.lt.s32.totalorder %s23, 1
          %s255 = scalar_select %p254, %s23, 1
          %p256 = scmp.lt.s32.totalorder %s24, 1
          %s257 = scalar_select %p256, %s24, 1
          %s258 = smul.addr %s255, 2
          %s259 = sadd.s32 %s257, %s258
          %s260 = smul.addr %s259, 8
          %s261 = scalar_lea.vmem %s0, %s260
        $region36: #{tpu_custom_call.1} parent=31 // pred_fallthru
          _
        // Predicated region
        $region37: #{tpu_custom_call.1} parent=31 // pred_check
          %p262 = pneg %p76
        $region38: #{tpu_custom_call.1} parent=31 // pred_check_branch
          %264 = sbr.rel (%p262) target = $region40
        $region39: #{tpu_custom_call.1} parent=31 // pred_region
          %p265 = scmp.lt.s32.totalorder %s24, 1
          %s266 = scalar_select %p265, %s24, 1
          %s267 = smul.addr %s266, 8
          %s268 = scalar_lea.vmem %s1, %s267
        $region40: #{tpu_custom_call.1} parent=31 // pred_fallthru
          _
        // Predicated region
        $region41: #{tpu_custom_call.1} parent=31 // pred_check
          %p269 = pneg %p102
        $region42: #{tpu_custom_call.1} parent=31 // pred_check_branch
          %271 = sbr.rel (%p269) target = $region44
        $region43: #{tpu_custom_call.1} parent=31 // pred_region
          %p272 = scmp.lt.s32.totalorder %s24, 1
          %s273 = scalar_select %p272, %s24, 1
          %s274 = smul.addr %s273, 8
          %s275 = scalar_lea.vmem %s2, %s274
        $region44: #{tpu_custom_call.1} parent=31 // pred_fallthru
          _
      $region32: #{tpu_custom_call.1} parent=5 // pred_fallthru
        _
      %p276 = scmp.le.s32.totalorder 1, %s16
      %p277 = scmp.lt.s32.totalorder %s16, 5
      %p278 = pnand %p276, %p277
      %p279 = pneg %p278
      // Predicated region
      $region45: #{tpu_custom_call.1} parent=5 // pred_check
        _
      $region46: #{tpu_custom_call.1} parent=5 // pred_check_branch
        %281 = sbr.rel (%p278) target = $region48
      $region47: #{tpu_custom_call.1} parent=5 // pred_region
        %s282 = ssub.s32 %s16, 1
        %p283 = scmp.lt.s32.totalorder %s25, 1
        %s284 = scalar_select %p283, %s25, 1
        %p285 = scmp.lt.s32.totalorder %s26, 1
        %s286 = scalar_select %p285, %s26, 1
        %s287 = smul.addr %s284, 2
        %s288 = sadd.s32 %s286, %s287
        %s289 = smul.addr %s288, 8
        %s290 = scalar_lea.vmem %s0, %s289
        %p291 = pneg %p56
        %p292 = pneg %p53
        %p293 = scmp.lt.s32.totalorder %s26, 1
        %s294 = scalar_select %p293, %s26, 1
        %s295 = smul.addr %s294, 8
        %s296 = scalar_lea.vmem %s1, %s295
        %p297 = pneg %p82
        %p298 = pneg %p79
        %p299 = scmp.lt.s32.totalorder %s26, 1
        %s300 = scalar_select %p299, %s26, 1
        %s301 = smul.addr %s300, 8
        %s302 = scalar_lea.vmem %s2, %s301
        %p303 = pneg %p108
        %p304 = pneg %p105
        %p305 = pneg %p129
        %p306 = pneg %p126
        %p307 = pneg %p150
        %p308 = pneg %p147
        %p309 = pneg %p171
        %p310 = pneg %p168
        %p311 = pneg %p192
        %p312 = pneg %p189
        %p313 = pneg %p220
        %p314 = pneg %p217
        %s315 = sand.u32 %s207, 1
        %s316 = scalar_lea.sflag [#allocation5], %s315
        %s317 = sand.u32 %s207, 1
        %s318 = smul.addr %s317, 8
        %s319 = scalar_lea.vmem [#allocation4], %s318
        %p320 = scmp.lt.s32.totalorder %s25, 1
        %s321 = scalar_select %p320, %s25, 1
        %p322 = scmp.lt.s32.totalorder %s26, 1
        %s323 = scalar_select %p322, %s26, 1
        %s324 = smul.addr %s321, 2
        %s325 = sadd.s32 %s323, %s324
        %s326 = smul.addr %s325, 8
        %s327 = scalar_lea.vmem %s0, %s326
        %p328 = scmp.lt.s32.totalorder %s26, 1
        %s329 = scalar_select %p328, %s26, 1
        %s330 = smul.addr %s329, 8
        %s331 = scalar_lea.vmem %s1, %s330
        %p332 = scmp.lt.s32.totalorder %s26, 1
        %s333 = scalar_select %p332, %s26, 1
        %s334 = smul.addr %s333, 8
        %s335 = scalar_lea.vmem %s2, %s334
        %s336 = smul.u32 %s26, 8
        %v337 = vld [vmem:[%s327] sm:$0xff]
        %v338 = vmul.f32 %v337, %v337
        %vm339 = vcmask 261120
        %v340 = vsel %vm339, %v338, 0.0
        %341 = vadd.xlane.f32.xlu0 %v340
        %v342 = vpop.xlane.xlu0 %341
        %v343 = vrcp.pop 32.0
        %v344 = vmul.f32 %v342, %v343
        %v345 = vadd.f32 %v344, 1e-06
        %v346 = vrsqrt.pop %v345
        %v347 = vmul.f32 %v337, %v346
        %v348 = vld [vmem:[%s3] sm:$0xff]
        %v349 = vld [vmem:[%s3 + $0x8] sm:$0xff]
        %v350 = vld [vmem:[%s3 + $0x10] sm:$0xff]
        %v351 = vld [vmem:[%s3 + $0x18] sm:$0xff]
        %v353 = vsel %vm339, %v347, 0
        %355 = vmatprep.subr.mxu0 0.0
        %356 = vmatpush1.msra.mxu0 %v348
        %357 = vmatprep.subr.mxu0 0.0
        %358 = vmatpush1.msra.mxu0 %v349
        %359 = vmatprep.subr.mxu0 0.0
        %360 = vmatpush1.msra.mxu0 %v350
        %361 = vmatprep.subr.mxu0 0.0
        %362 = vmatpush1.msra.mxu0 %v351
        %363 = vmatprep.subr.mxu0 0.0
        %364 = vmatpush1.msra.mxu0 0.0
        %365 = vmatprep.subr.mxu0 0.0
        %366 = vmatpush1.msra.mxu0 0.0
        %367 = vmatprep.subr.mxu0 0.0
        %368 = vmatpush1.msra.mxu0 0.0
        %369 = vmatprep.subr.mxu0 0.0
        %370 = vmatpush1.msra.mxu0 0.0
        %371 = vmatprep.subr.mxu0 0.0
        %372 = vmatpush1.msra.mxu0 0.0
        %373 = vmatprep.subr.mxu0 0.0
        %374 = vmatpush1.msra.mxu0 0.0
        %375 = vmatprep.subr.mxu0 0.0
        %376 = vmatpush1.msra.mxu0 0.0
        %377 = vmatprep.subr.mxu0 0.0
        %378 = vmatpush1.msra.mxu0 0.0
        %379 = vmatprep.subr.mxu0 0.0
        %380 = vmatpush1.msra.mxu0 0.0
        %381 = vmatprep.subr.mxu0 0.0
        %382 = vmatpush1.msra.mxu0 0.0
        %383 = vmatprep.subr.mxu0 0.0
        %384 = vmatpush1.msra.mxu0 0.0
        %385 = vmatprep.subr.mxu0 0.0
        %386 = vmatpush1.msra.mxu0 0.0
        %387 = vmatprep.subr.mxu0 0.0
        %388 = vmatpush1.msra.mxu0 0.0
        %389 = vmatprep.subr.mxu0 0.0
        %390 = vmatpush1.msra.mxu0 0.0
        %391 = vmatprep.subr.mxu0 0.0
        %392 = vmatpush1.msra.mxu0 0.0
        %393 = vmatprep.subr.mxu0 0.0
        %394 = vmatpush1.msra.mxu0 0.0
        %395 = vmatprep.subr.mxu0 0.0
        %396 = vmatpush1.msra.mxu0 0.0
        %397 = vmatprep.subr.mxu0 0.0
        %398 = vmatpush1.msra.mxu0 0.0
        %399 = vmatprep.subr.mxu0 0.0
        %400 = vmatpush1.msra.mxu0 0.0
        %401 = vmatprep.subr.mxu0 0.0
        %402 = vmatpush1.msra.mxu0 0.0
        %403 = vmatprep.subr.mxu0 0.0
        %404 = vmatpush1.msra.mxu0 0.0
        %405 = vmatprep.subr.mxu0 0.0
        %406 = vmatpush1.msra.mxu0 0.0
        %407 = vmatprep.subr.mxu0 0.0
        %408 = vmatpush1.msra.mxu0 0.0
        %409 = vmatprep.subr.mxu0 0.0
        %410 = vmatpush1.msra.mxu0 0.0
        %411 = vmatprep.subr.mxu0 0.0
        %412 = vmatpush1.msra.mxu0 0.0
        %413 = vmatprep.subr.mxu0 0.0
        %414 = vmatpush1.msra.mxu0 0.0
        %415 = vmatprep.subr.mxu0 0.0
        %416 = vmatpush1.msra.mxu0 0.0
        %417 = vmatprep.subr.mxu0 0.0
        %418 = vmatpush1.msra.mxu0 0.0
        %419 = vmatprep.mubr.f32.mxu0 0.0
        %420 = vmatmul.mubr.f32.gmra.mrb[0].mxu0 %v353
        %v421 = vpop.f32.mrb[0].mxu0
        %v422 = vadd.f32 0.0, %v421
        %v423 = vpop.f32.mrb[0].mxu0
        %424 = vdwg.mxu0
        %v425 = vld [vmem:[%s331] sm:$0xff]
        %v426 = vld [vmem:[%s335] sm:$0xff]
        %v427 = vmul.f32 %v422, %v425
        %429 = vrot.lane.b32.xlu0 %v426, 4
        %v430 = vpop.permute.xlu0 %429
        %v432 = vmul.f32 %v422, %v430
        %434 = vrot.lane.b32.xlu0 %v432, 124
        %v435 = vpop.permute.xlu0 %434
        %v437 = vadd.f32 %v427, %v435
        %v438 = vsub.f32 0.0, %v422
        %v439 = vmul.f32 %v438, %v426
        %441 = vrot.lane.b32.xlu0 %v425, 4
        %v442 = vpop.permute.xlu0 %441
        %v444 = vmul.f32 %v422, %v442
        %446 = vrot.lane.b32.xlu0 %v444, 124
        %v447 = vpop.permute.xlu0 %446
        %v449 = vadd.f32 %v439, %v447
        %451 = vrot.lane.b32.xlu0 %v449, 4
        %v452 = vpop.permute.xlu0 %451
        %vm454 = vcmask 31744
        %v455 = vsel %vm454, %v437, %v452
        %456 = vrot.lane.b32.xlu0 %v425, 32
        %v457 = vpop.permute.xlu0 %456
        %v459 = vmul.f32 %v422, %v457
        %460 = vrot.lane.b32.xlu0 %v426, 36
        %v461 = vpop.permute.xlu0 %460
        %v463 = vmul.f32 %v422, %v461
        %465 = vrot.lane.b32.xlu0 %v463, 124
        %v466 = vpop.permute.xlu0 %465
        %v468 = vadd.f32 %v459, %v466
        %469 = vrot.lane.b32.xlu0 %v426, 32
        %v470 = vpop.permute.xlu0 %469
        %v472 = vmul.f32 %v438, %v470
        %473 = vrot.lane.b32.xlu0 %v425, 36
        %v474 = vpop.permute.xlu0 %473
        %v476 = vmul.f32 %v422, %v474
        %478 = vrot.lane.b32.xlu0 %v476, 124
        %v479 = vpop.permute.xlu0 %478
        %v481 = vadd.f32 %v472, %v479
        %483 = vrot.lane.b32.xlu0 %v468, 96
        %v484 = vpop.permute.xlu0 %483
        %487 = vrot.lane.b32.xlu0 %v481, 100
        %v488 = vpop.permute.xlu0 %487
        %v490 = vsel %vm454, %v484, %v488
        %491 = vrot.lane.b32.xlu0 %v425, 8
        %v492 = vpop.permute.xlu0 %491
        %v494 = vmul.f32 %v422, %v492
        %495 = vrot.lane.b32.xlu0 %v426, 12
        %v496 = vpop.permute.xlu0 %495
        %v498 = vmul.f32 %v422, %v496
        %500 = vrot.lane.b32.xlu0 %v498, 124
        %v501 = vpop.permute.xlu0 %500
        %v503 = vadd.f32 %v494, %v501
        %504 = vrot.lane.b32.xlu0 %v426, 8
        %v505 = vpop.permute.xlu0 %504
        %v507 = vmul.f32 %v438, %v505
        %508 = vrot.lane.b32.xlu0 %v425, 12
        %v509 = vpop.permute.xlu0 %508
        %v511 = vmul.f32 %v422, %v509
        %513 = vrot.lane.b32.xlu0 %v511, 124
        %v514 = vpop.permute.xlu0 %513
        %v516 = vadd.f32 %v507, %v514
        %518 = vrot.lane.b32.xlu0 %v503, 120
        %v519 = vpop.permute.xlu0 %518
        %522 = vrot.lane.b32.xlu0 %v516, 124
        %v523 = vpop.permute.xlu0 %522
        %v525 = vsel %vm454, %v519, %v523
        %526 = vrot.lane.b32.xlu0 %v425, 40
        %v527 = vpop.permute.xlu0 %526
        %v529 = vmul.f32 %v422, %v527
        %530 = vrot.lane.b32.xlu0 %v426, 44
        %v531 = vpop.permute.xlu0 %530
        %v533 = vmul.f32 %v422, %v531
        %535 = vrot.lane.b32.xlu0 %v533, 124
        %v536 = vpop.permute.xlu0 %535
        %v538 = vadd.f32 %v529, %v536
        %539 = vrot.lane.b32.xlu0 %v426, 40
        %v540 = vpop.permute.xlu0 %539
        %v542 = vmul.f32 %v438, %v540
        %543 = vrot.lane.b32.xlu0 %v425, 44
        %v544 = vpop.permute.xlu0 %543
        %v546 = vmul.f32 %v422, %v544
        %548 = vrot.lane.b32.xlu0 %v546, 124
        %v549 = vpop.permute.xlu0 %548
        %v551 = vadd.f32 %v542, %v549
        %553 = vrot.lane.b32.xlu0 %v538, 88
        %v554 = vpop.permute.xlu0 %553
        %557 = vrot.lane.b32.xlu0 %v551, 92
        %v558 = vpop.permute.xlu0 %557
        %v560 = vsel %vm454, %v554, %v558
        %561 = vrot.lane.b32.xlu0 %v425, 16
        %v562 = vpop.permute.xlu0 %561
        %v564 = vmul.f32 %v422, %v562
        %565 = vrot.lane.b32.xlu0 %v426, 20
        %v566 = vpop.permute.xlu0 %565
        %v568 = vmul.f32 %v422, %v566
        %570 = vrot.lane.b32.xlu0 %v568, 124
        %v571 = vpop.permute.xlu0 %570
        %v573 = vadd.f32 %v564, %v571
        %574 = vrot.lane.b32.xlu0 %v426, 16
        %v575 = vpop.permute.xlu0 %574
        %v577 = vmul.f32 %v438, %v575
        %578 = vrot.lane.b32.xlu0 %v425, 20
        %v579 = vpop.permute.xlu0 %578
        %v581 = vmul.f32 %v422, %v579
        %583 = vrot.lane.b32.xlu0 %v581, 124
        %v584 = vpop.permute.xlu0 %583
        %v586 = vadd.f32 %v577, %v584
        %588 = vrot.lane.b32.xlu0 %v573, 112
        %v589 = vpop.permute.xlu0 %588
        %592 = vrot.lane.b32.xlu0 %v586, 116
        %v593 = vpop.permute.xlu0 %592
        %v595 = vsel %vm454, %v589, %v593
        %596 = vrot.lane.b32.xlu0 %v425, 48
        %v597 = vpop.permute.xlu0 %596
        %v599 = vmul.f32 %v422, %v597
        %600 = vrot.lane.b32.xlu0 %v426, 52
        %v601 = vpop.permute.xlu0 %600
        %v603 = vmul.f32 %v422, %v601
        %605 = vrot.lane.b32.xlu0 %v603, 124
        %v606 = vpop.permute.xlu0 %605
        %v608 = vadd.f32 %v599, %v606
        %609 = vrot.lane.b32.xlu0 %v426, 48
        %v610 = vpop.permute.xlu0 %609
        %v612 = vmul.f32 %v438, %v610
        %613 = vrot.lane.b32.xlu0 %v425, 52
        %v614 = vpop.permute.xlu0 %613
        %v616 = vmul.f32 %v422, %v614
        %618 = vrot.lane.b32.xlu0 %v616, 124
        %v619 = vpop.permute.xlu0 %618
        %v621 = vadd.f32 %v612, %v619
        %623 = vrot.lane.b32.xlu0 %v608, 80
        %v624 = vpop.permute.xlu0 %623
        %627 = vrot.lane.b32.xlu0 %v621, 84
        %v628 = vpop.permute.xlu0 %627
        %v630 = vsel %vm454, %v624, %v628
        %631 = vrot.lane.b32.xlu0 %v425, 24
        %v632 = vpop.permute.xlu0 %631
        %v634 = vmul.f32 %v422, %v632
        %635 = vrot.lane.b32.xlu0 %v426, 28
        %v636 = vpop.permute.xlu0 %635
        %v638 = vmul.f32 %v422, %v636
        %640 = vrot.lane.b32.xlu0 %v638, 124
        %v641 = vpop.permute.xlu0 %640
        %v643 = vadd.f32 %v634, %v641
        %644 = vrot.lane.b32.xlu0 %v426, 24
        %v645 = vpop.permute.xlu0 %644
        %v647 = vmul.f32 %v438, %v645
        %648 = vrot.lane.b32.xlu0 %v425, 28
        %v649 = vpop.permute.xlu0 %648
        %v651 = vmul.f32 %v422, %v649
        %653 = vrot.lane.b32.xlu0 %v651, 124
        %v654 = vpop.permute.xlu0 %653
        %v656 = vadd.f32 %v647, %v654
        %658 = vrot.lane.b32.xlu0 %v643, 104
        %v659 = vpop.permute.xlu0 %658
        %662 = vrot.lane.b32.xlu0 %v656, 108
        %v663 = vpop.permute.xlu0 %662
        %v665 = vsel %vm454, %v659, %v663
        %666 = vrot.lane.b32.xlu0 %v425, 56
        %v667 = vpop.permute.xlu0 %666
        %v669 = vmul.f32 %v422, %v667
        %670 = vrot.lane.b32.xlu0 %v426, 60
        %v671 = vpop.permute.xlu0 %670
        %v673 = vmul.f32 %v422, %v671
        %675 = vrot.lane.b32.xlu0 %v673, 124
        %v676 = vpop.permute.xlu0 %675
        %v678 = vadd.f32 %v669, %v676
        %679 = vrot.lane.b32.xlu0 %v426, 56
        %v680 = vpop.permute.xlu0 %679
        %v682 = vmul.f32 %v438, %v680
        %683 = vrot.lane.b32.xlu0 %v425, 60
        %v684 = vpop.permute.xlu0 %683
        %v686 = vmul.f32 %v422, %v684
        %688 = vrot.lane.b32.xlu0 %v686, 124
        %v689 = vpop.permute.xlu0 %688
        %v691 = vadd.f32 %v682, %v689
        %693 = vrot.lane.b32.xlu0 %v678, 72
        %v694 = vpop.permute.xlu0 %693
        %697 = vrot.lane.b32.xlu0 %v691, 76
        %v698 = vpop.permute.xlu0 %697
        %v700 = vsel %vm454, %v694, %v698
        %702 = vrot.lane.b32.xlu0 %v560, 8
        %v703 = vpop.permute.xlu0 %702
        %706 = vrot.lane.b32.xlu0 %v630, 16
        %v707 = vpop.permute.xlu0 %706
        %710 = vrot.lane.b32.xlu0 %v700, 24
        %v711 = vpop.permute.xlu0 %710
        %vm713 = vcmask 64512
        %v714 = vsel %vm713, %v490, %v703
        %vm715 = vcmask 130048
        %v716 = vsel %vm715, %v714, %v707
        %vm717 = vcmask 195584
        %v718 = vsel %vm717, %v716, %v711
        %s719 = scalar_lea.vmem [#allocation2], %s336
        %720 = vst.msk [vmem:[%s719] sm:$0xff] %vm339, %v718
        %722 = vrot.lane.b32.xlu0 %v422, 64
        %v723 = vpop.permute.xlu0 %722
        %s725 = scalar_lea.vmem [#allocation3], %s336
        %726 = vst.msk [vmem:[%s725] sm:$0xff] %vm339, %v723
        %v727 = vlaneseq
        %v728 = vshrl.u32 %v727, 7
        %v729 = vlaneseq
        %v730 = vand.u32 %v729, 127
        %vm731 = vcmp.ge.s32.totalorder %v728, %v730
        %s732 = sadd.s32 %s26, 1
        // While loop
        $region49: #{tpu_custom_call.1} parent=47 // loop_pre_header
          _
        $region50: #{tpu_custom_call.1} parent=47 // loop_header
          %s734 = sphi 0, %s736
          %p735 = scmp.ge.s32.totalorder %s734, %s732
          %v739 = vphi -1e+30, %v842
          %v740 = vphi 0.0, %v853
          %v741 = vphi 0.0, %v928
          %v742 = vphi -1e+30, %v1011
          %v743 = vphi 0.0, %v1022
          %v744 = vphi 0.0, %v1101
          %v745 = vphi -1e+30, %v1184
          %v746 = vphi 0.0, %v1195
          %v747 = vphi 0.0, %v1273
          %v748 = vphi -1e+30, %v1356
          %v749 = vphi 0.0, %v1367
          %v750 = vphi 0.0, %v1445
        $region51: #{tpu_custom_call.1} parent=47 // loop_header_branch
          %738 = sbr.rel (%p735) target = $region55
        $region52: #{tpu_custom_call.1} parent=47 // loop_body
          %s751 = smul.u32 %s734, 8
          %s752 = scalar_lea.vmem [#allocation2], %s751
          %v753 = vld [vmem:[%s752] sm:$0xff]
          %s754 = scalar_lea.vmem [#allocation3], %s751
          %v755 = vld [vmem:[%s754] sm:$0xff]
          %p756 = scmp.lt.s32.totalorder %s734, %s26
          %s757 = scalar_select %p756, 1, 0
          %v758 = vstv %s757
          %vm759 = vcmp.eq.s32.totalorder %v758, 1
          %vm760 = vmor %vm759, %vm731
          %v762 = vsel %vm713, %v455, 0
          %v765 = vsel %vm713, %v753, 0
          %767 = vmatprep.subr.mxu0 0.0
          %768 = vmatpush1.xpose.msra.mxu0 %v765
          %769 = vmatprep.subr.mxu0 0.0
          %770 = vmatpush1.xpose.msra.mxu0 0.0
          %771 = vmatprep.subr.mxu0 0.0
          %772 = vmatpush1.xpose.msra.mxu0 0.0
          %773 = vmatprep.subr.mxu0 0.0
          %774 = vmatpush1.xpose.msra.mxu0 0.0
          %775 = vmatprep.subr.mxu0 0.0
          %776 = vmatpush1.xpose.msra.mxu0 0.0
          %777 = vmatprep.subr.mxu0 0.0
          %778 = vmatpush1.xpose.msra.mxu0 0.0
          %779 = vmatprep.subr.mxu0 0.0
          %780 = vmatpush1.xpose.msra.mxu0 0.0
          %781 = vmatprep.subr.mxu0 0.0
          %782 = vmatpush1.xpose.msra.mxu0 0.0
          %783 = vmatprep.subr.mxu0 0.0
          %784 = vmatpush1.xpose.msra.mxu0 0.0
          %785 = vmatprep.subr.mxu0 0.0
          %786 = vmatpush1.xpose.msra.mxu0 0.0
          %787 = vmatprep.subr.mxu0 0.0
          %788 = vmatpush1.xpose.msra.mxu0 0.0
          %789 = vmatprep.subr.mxu0 0.0
          %790 = vmatpush1.xpose.msra.mxu0 0.0
          %791 = vmatprep.subr.mxu0 0.0
          %792 = vmatpush1.xpose.msra.mxu0 0.0
          %793 = vmatprep.subr.mxu0 0.0
          %794 = vmatpush1.xpose.msra.mxu0 0.0
          %795 = vmatprep.subr.mxu0 0.0
          %796 = vmatpush1.xpose.msra.mxu0 0.0
          %797 = vmatprep.subr.mxu0 0.0
          %798 = vmatpush1.xpose.msra.mxu0 0.0
          %799 = vmatprep.subr.mxu0 0.0
          %800 = vmatpush1.xpose.msra.mxu0 0.0
          %801 = vmatprep.subr.mxu0 0.0
          %802 = vmatpush1.xpose.msra.mxu0 0.0
          %803 = vmatprep.subr.mxu0 0.0
          %804 = vmatpush1.xpose.msra.mxu0 0.0
          %805 = vmatprep.subr.mxu0 0.0
          %806 = vmatpush1.xpose.msra.mxu0 0.0
          %807 = vmatprep.subr.mxu0 0.0
          %808 = vmatpush1.xpose.msra.mxu0 0.0
          %809 = vmatprep.subr.mxu0 0.0
          %810 = vmatpush1.xpose.msra.mxu0 0.0
          %811 = vmatprep.subr.mxu0 0.0
          %812 = vmatpush1.xpose.msra.mxu0 0.0
          %813 = vmatprep.subr.mxu0 0.0
          %814 = vmatpush1.xpose.msra.mxu0 0.0
          %815 = vmatprep.subr.mxu0 0.0
          %816 = vmatpush1.xpose.msra.mxu0 0.0
          %817 = vmatprep.subr.mxu0 0.0
          %818 = vmatpush1.xpose.msra.mxu0 0.0
          %819 = vmatprep.subr.mxu0 0.0
          %820 = vmatpush1.xpose.msra.mxu0 0.0
          %821 = vmatprep.subr.mxu0 0.0
          %822 = vmatpush1.xpose.msra.mxu0 0.0
          %823 = vmatprep.subr.mxu0 0.0
          %824 = vmatpush1.xpose.msra.mxu0 0.0
          %825 = vmatprep.subr.mxu0 0.0
          %826 = vmatpush1.xpose.msra.mxu0 0.0
          %827 = vmatprep.subr.mxu0 0.0
          %828 = vmatpush1.xpose.msra.mxu0 0.0
          %829 = vmatprep.subr.mxu0 0.0
          %830 = vmatpush1.xpose.msra.mxu0 0.0
          %831 = vmatprep.mubr.f32.mxu0 0.0
          %832 = vmatmul.mubr.f32.gmra.mrb[0].mxu0 %v762
          %v833 = vpop.f32.mrb[0].mxu0
          %v834 = vadd.f32 0.0, %v833
          %v835 = vpop.f32.mrb[0].mxu0
          %836 = vdwg.mxu0
          %v837 = vmul.f32 %v834, 0.35355338
          %v838 = vsel %vm760, %v837, -1e+30
          %v839 = vsel %vm713, %v838, -inf
          %840 = vmax.xlane.f32.xlu0 %v839
          %v841 = vpop.xlane.xlu0 %840
          %v842 = vmax.f32 %v739, %v841
          %v843 = vsub.f32 %v739, %v842
          %v844 = vmul.f32 %v843, 1.442695
          %v845 = vpow.pop %v844
          %v846 = vsub.f32 %v838, %v842
          %v847 = vmul.f32 %v846, 1.442695
          %v848 = vpow.pop %v847
          %v849 = vmul.f32 %v845, %v740
          %v850 = vsel %vm713, %v848, 0.0
          %851 = vadd.xlane.f32.xlu0 %v850
          %v852 = vpop.xlane.xlu0 %851
          %v853 = vadd.f32 %v849, %v852
          %v854 = vmul.f32 %v845, %v741
          %v856 = vsel %vm713, %v848, 0
          %858 = vmatprep.subr.mxu0 0.0
          %859 = vmatpush1.msra.mxu0 %v755
          %860 = vmatprep.subr.mxu0 0.0
          %861 = vmatpush1.msra.mxu0 0.0
          %862 = vmatprep.subr.mxu0 0.0
          %863 = vmatpush1.msra.mxu0 0.0
          %864 = vmatprep.subr.mxu0 0.0
          %865 = vmatpush1.msra.mxu0 0.0
          %866 = vmatprep.subr.mxu0 0.0
          %867 = vmatpush1.msra.mxu0 0.0
          %868 = vmatprep.subr.mxu0 0.0
          %869 = vmatpush1.msra.mxu0 0.0
          %870 = vmatprep.subr.mxu0 0.0
          %871 = vmatpush1.msra.mxu0 0.0
          %872 = vmatprep.subr.mxu0 0.0
          %873 = vmatpush1.msra.mxu0 0.0
          %874 = vmatprep.subr.mxu0 0.0
          %875 = vmatpush1.msra.mxu0 0.0
          %876 = vmatprep.subr.mxu0 0.0
          %877 = vmatpush1.msra.mxu0 0.0
          %878 = vmatprep.subr.mxu0 0.0
          %879 = vmatpush1.msra.mxu0 0.0
          %880 = vmatprep.subr.mxu0 0.0
          %881 = vmatpush1.msra.mxu0 0.0
          %882 = vmatprep.subr.mxu0 0.0
          %883 = vmatpush1.msra.mxu0 0.0
          %884 = vmatprep.subr.mxu0 0.0
          %885 = vmatpush1.msra.mxu0 0.0
          %886 = vmatprep.subr.mxu0 0.0
          %887 = vmatpush1.msra.mxu0 0.0
          %888 = vmatprep.subr.mxu0 0.0
          %889 = vmatpush1.msra.mxu0 0.0
          %890 = vmatprep.subr.mxu0 0.0
          %891 = vmatpush1.msra.mxu0 0.0
          %892 = vmatprep.subr.mxu0 0.0
          %893 = vmatpush1.msra.mxu0 0.0
          %894 = vmatprep.subr.mxu0 0.0
          %895 = vmatpush1.msra.mxu0 0.0
          %896 = vmatprep.subr.mxu0 0.0
          %897 = vmatpush1.msra.mxu0 0.0
          %898 = vmatprep.subr.mxu0 0.0
          %899 = vmatpush1.msra.mxu0 0.0
          %900 = vmatprep.subr.mxu0 0.0
          %901 = vmatpush1.msra.mxu0 0.0
          %902 = vmatprep.subr.mxu0 0.0
          %903 = vmatpush1.msra.mxu0 0.0
          %904 = vmatprep.subr.mxu0 0.0
          %905 = vmatpush1.msra.mxu0 0.0
          %906 = vmatprep.subr.mxu0 0.0
          %907 = vmatpush1.msra.mxu0 0.0
          %908 = vmatprep.subr.mxu0 0.0
          %909 = vmatpush1.msra.mxu0 0.0
          %910 = vmatprep.subr.mxu0 0.0
          %911 = vmatpush1.msra.mxu0 0.0
          %912 = vmatprep.subr.mxu0 0.0
          %913 = vmatpush1.msra.mxu0 0.0
          %914 = vmatprep.subr.mxu0 0.0
          %915 = vmatpush1.msra.mxu0 0.0
          %916 = vmatprep.subr.mxu0 0.0
          %917 = vmatpush1.msra.mxu0 0.0
          %918 = vmatprep.subr.mxu0 0.0
          %919 = vmatpush1.msra.mxu0 0.0
          %920 = vmatprep.subr.mxu0 0.0
          %921 = vmatpush1.msra.mxu0 0.0
          %922 = vmatprep.mubr.f32.mxu0 0.0
          %923 = vmatmul.mubr.f32.gmra.mrb[0].mxu0 %v856
          %v924 = vpop.f32.mrb[0].mxu0
          %v925 = vadd.f32 0.0, %v924
          %v926 = vpop.f32.mrb[0].mxu0
          %927 = vdwg.mxu0
          %v928 = vadd.f32 %v854, %v925
          %929 = vrot.lane.b32.xlu0 %v753, 120
          %v930 = vpop.permute.xlu0 %929
          %v932 = vsel %vm713, %v525, 0
          %v934 = vsel %vm713, %v930, 0
          %936 = vmatprep.subr.mxu0 0.0
          %937 = vmatpush1.xpose.msra.mxu0 %v934
          %938 = vmatprep.subr.mxu0 0.0
          %939 = vmatpush1.xpose.msra.mxu0 0.0
          %940 = vmatprep.subr.mxu0 0.0
          %941 = vmatpush1.xpose.msra.mxu0 0.0
          %942 = vmatprep.subr.mxu0 0.0
          %943 = vmatpush1.xpose.msra.mxu0 0.0
          %944 = vmatprep.subr.mxu0 0.0
          %945 = vmatpush1.xpose.msra.mxu0 0.0
          %946 = vmatprep.subr.mxu0 0.0
          %947 = vmatpush1.xpose.msra.mxu0 0.0
          %948 = vmatprep.subr.mxu0 0.0
          %949 = vmatpush1.xpose.msra.mxu0 0.0
          %950 = vmatprep.subr.mxu0 0.0
          %951 = vmatpush1.xpose.msra.mxu0 0.0
          %952 = vmatprep.subr.mxu0 0.0
          %953 = vmatpush1.xpose.msra.mxu0 0.0
          %954 = vmatprep.subr.mxu0 0.0
          %955 = vmatpush1.xpose.msra.mxu0 0.0
          %956 = vmatprep.subr.mxu0 0.0
          %957 = vmatpush1.xpose.msra.mxu0 0.0
          %958 = vmatprep.subr.mxu0 0.0
          %959 = vmatpush1.xpose.msra.mxu0 0.0
          %960 = vmatprep.subr.mxu0 0.0
          %961 = vmatpush1.xpose.msra.mxu0 0.0
          %962 = vmatprep.subr.mxu0 0.0
          %963 = vmatpush1.xpose.msra.mxu0 0.0
          %964 = vmatprep.subr.mxu0 0.0
          %965 = vmatpush1.xpose.msra.mxu0 0.0
          %966 = vmatprep.subr.mxu0 0.0
          %967 = vmatpush1.xpose.msra.mxu0 0.0
          %968 = vmatprep.subr.mxu0 0.0
          %969 = vmatpush1.xpose.msra.mxu0 0.0
          %970 = vmatprep.subr.mxu0 0.0
          %971 = vmatpush1.xpose.msra.mxu0 0.0
          %972 = vmatprep.subr.mxu0 0.0
          %973 = vmatpush1.xpose.msra.mxu0 0.0
          %974 = vmatprep.subr.mxu0 0.0
          %975 = vmatpush1.xpose.msra.mxu0 0.0
          %976 = vmatprep.subr.mxu0 0.0
          %977 = vmatpush1.xpose.msra.mxu0 0.0
          %978 = vmatprep.subr.mxu0 0.0
          %979 = vmatpush1.xpose.msra.mxu0 0.0
          %980 = vmatprep.subr.mxu0 0.0
          %981 = vmatpush1.xpose.msra.mxu0 0.0
          %982 = vmatprep.subr.mxu0 0.0
          %983 = vmatpush1.xpose.msra.mxu0 0.0
          %984 = vmatprep.subr.mxu0 0.0
          %985 = vmatpush1.xpose.msra.mxu0 0.0
          %986 = vmatprep.subr.mxu0 0.0
          %987 = vmatpush1.xpose.msra.mxu0 0.0
          %988 = vmatprep.subr.mxu0 0.0
          %989 = vmatpush1.xpose.msra.mxu0 0.0
          %990 = vmatprep.subr.mxu0 0.0
          %991 = vmatpush1.xpose.msra.mxu0 0.0
          %992 = vmatprep.subr.mxu0 0.0
          %993 = vmatpush1.xpose.msra.mxu0 0.0
          %994 = vmatprep.subr.mxu0 0.0
          %995 = vmatpush1.xpose.msra.mxu0 0.0
          %996 = vmatprep.subr.mxu0 0.0
          %997 = vmatpush1.xpose.msra.mxu0 0.0
          %998 = vmatprep.subr.mxu0 0.0
          %999 = vmatpush1.xpose.msra.mxu0 0.0
          %1000 = vmatprep.mubr.f32.mxu0 0.0
          %1001 = vmatmul.mubr.f32.gmra.mrb[0].mxu0 %v932
          %v1002 = vpop.f32.mrb[0].mxu0
          %v1003 = vadd.f32 0.0, %v1002
          %v1004 = vpop.f32.mrb[0].mxu0
          %1005 = vdwg.mxu0
          %v1006 = vmul.f32 %v1003, 0.35355338
          %v1007 = vsel %vm760, %v1006, -1e+30
          %v1008 = vsel %vm713, %v1007, -inf
          %1009 = vmax.xlane.f32.xlu0 %v1008
          %v1010 = vpop.xlane.xlu0 %1009
          %v1011 = vmax.f32 %v742, %v1010
          %v1012 = vsub.f32 %v742, %v1011
          %v1013 = vmul.f32 %v1012, 1.442695
          %v1014 = vpow.pop %v1013
          %v1015 = vsub.f32 %v1007, %v1011
          %v1016 = vmul.f32 %v1015, 1.442695
          %v1017 = vpow.pop %v1016
          %v1018 = vmul.f32 %v1014, %v743
          %v1019 = vsel %vm713, %v1017, 0.0
          %1020 = vadd.xlane.f32.xlu0 %v1019
          %v1021 = vpop.xlane.xlu0 %1020
          %v1022 = vadd.f32 %v1018, %v1021
          %v1023 = vmul.f32 %v1014, %v744
          %1025 = vrot.lane.b32.xlu0 %v755, 120
          %v1026 = vpop.permute.xlu0 %1025
          %v1029 = vsel %vm713, %v1017, 0
          %1031 = vmatprep.subr.mxu0 0.0
          %1032 = vmatpush1.msra.mxu0 %v1026
          %1033 = vmatprep.subr.mxu0 0.0
          %1034 = vmatpush1.msra.mxu0 0.0
          %1035 = vmatprep.subr.mxu0 0.0
          %1036 = vmatpush1.msra.mxu0 0.0
          %1037 = vmatprep.subr.mxu0 0.0
          %1038 = vmatpush1.msra.mxu0 0.0
          %1039 = vmatprep.subr.mxu0 0.0
          %1040 = vmatpush1.msra.mxu0 0.0
          %1041 = vmatprep.subr.mxu0 0.0
          %1042 = vmatpush1.msra.mxu0 0.0
          %1043 = vmatprep.subr.mxu0 0.0
          %1044 = vmatpush1.msra.mxu0 0.0
          %1045 = vmatprep.subr.mxu0 0.0
          %1046 = vmatpush1.msra.mxu0 0.0
          %1047 = vmatprep.subr.mxu0 0.0
          %1048 = vmatpush1.msra.mxu0 0.0
          %1049 = vmatprep.subr.mxu0 0.0
          %1050 = vmatpush1.msra.mxu0 0.0
          %1051 = vmatprep.subr.mxu0 0.0
          %1052 = vmatpush1.msra.mxu0 0.0
          %1053 = vmatprep.subr.mxu0 0.0
          %1054 = vmatpush1.msra.mxu0 0.0
          %1055 = vmatprep.subr.mxu0 0.0
          %1056 = vmatpush1.msra.mxu0 0.0
          %1057 = vmatprep.subr.mxu0 0.0
          %1058 = vmatpush1.msra.mxu0 0.0
          %1059 = vmatprep.subr.mxu0 0.0
          %1060 = vmatpush1.msra.mxu0 0.0
          %1061 = vmatprep.subr.mxu0 0.0
          %1062 = vmatpush1.msra.mxu0 0.0
          %1063 = vmatprep.subr.mxu0 0.0
          %1064 = vmatpush1.msra.mxu0 0.0
          %1065 = vmatprep.subr.mxu0 0.0
          %1066 = vmatpush1.msra.mxu0 0.0
          %1067 = vmatprep.subr.mxu0 0.0
          %1068 = vmatpush1.msra.mxu0 0.0
          %1069 = vmatprep.subr.mxu0 0.0
          %1070 = vmatpush1.msra.mxu0 0.0
          %1071 = vmatprep.subr.mxu0 0.0
          %1072 = vmatpush1.msra.mxu0 0.0
          %1073 = vmatprep.subr.mxu0 0.0
          %1074 = vmatpush1.msra.mxu0 0.0
          %1075 = vmatprep.subr.mxu0 0.0
          %1076 = vmatpush1.msra.mxu0 0.0
          %1077 = vmatprep.subr.mxu0 0.0
          %1078 = vmatpush1.msra.mxu0 0.0
          %1079 = vmatprep.subr.mxu0 0.0
          %1080 = vmatpush1.msra.mxu0 0.0
          %1081 = vmatprep.subr.mxu0 0.0
          %1082 = vmatpush1.msra.mxu0 0.0
          %1083 = vmatprep.subr.mxu0 0.0
          %1084 = vmatpush1.msra.mxu0 0.0
          %1085 = vmatprep.subr.mxu0 0.0
          %1086 = vmatpush1.msra.mxu0 0.0
          %1087 = vmatprep.subr.mxu0 0.0
          %1088 = vmatpush1.msra.mxu0 0.0
          %1089 = vmatprep.subr.mxu0 0.0
          %1090 = vmatpush1.msra.mxu0 0.0
          %1091 = vmatprep.subr.mxu0 0.0
          %1092 = vmatpush1.msra.mxu0 0.0
          %1093 = vmatprep.subr.mxu0 0.0
          %1094 = vmatpush1.msra.mxu0 0.0
          %1095 = vmatprep.mubr.f32.mxu0 0.0
          %1096 = vmatmul.mubr.f32.gmra.mrb[0].mxu0 %v1029
          %v1097 = vpop.f32.mrb[0].mxu0
          %v1098 = vadd.f32 0.0, %v1097
          %v1099 = vpop.f32.mrb[0].mxu0
          %1100 = vdwg.mxu0
          %v1101 = vadd.f32 %v1023, %v1098
          %1102 = vrot.lane.b32.xlu0 %v753, 112
          %v1103 = vpop.permute.xlu0 %1102
          %v1105 = vsel %vm713, %v595, 0
          %v1107 = vsel %vm713, %v1103, 0
          %1109 = vmatprep.subr.mxu0 0.0
          %1110 = vmatpush1.xpose.msra.mxu0 %v1107
          %1111 = vmatprep.subr.mxu0 0.0
          %1112 = vmatpush1.xpose.msra.mxu0 0.0
          %1113 = vmatprep.subr.mxu0 0.0
          %1114 = vmatpush1.xpose.msra.mxu0 0.0
          %1115 = vmatprep.subr.mxu0 0.0
          %1116 = vmatpush1.xpose.msra.mxu0 0.0
          %1117 = vmatprep.subr.mxu0 0.0
          %1118 = vmatpush1.xpose.msra.mxu0 0.0
          %1119 = vmatprep.subr.mxu0 0.0
          %1120 = vmatpush1.xpose.msra.mxu0 0.0
          %1121 = vmatprep.subr.mxu0 0.0
          %1122 = vmatpush1.xpose.msra.mxu0 0.0
          %1123 = vmatprep.subr.mxu0 0.0
          %1124 = vmatpush1.xpose.msra.mxu0 0.0
          %1125 = vmatprep.subr.mxu0 0.0
          %1126 = vmatpush1.xpose.msra.mxu0 0.0
          %1127 = vmatprep.subr.mxu0 0.0
          %1128 = vmatpush1.xpose.msra.mxu0 0.0
          %1129 = vmatprep.subr.mxu0 0.0
          %1130 = vmatpush1.xpose.msra.mxu0 0.0
          %1131 = vmatprep.subr.mxu0 0.0
          %1132 = vmatpush1.xpose.msra.mxu0 0.0
          %1133 = vmatprep.subr.mxu0 0.0
          %1134 = vmatpush1.xpose.msra.mxu0 0.0
          %1135 = vmatprep.subr.mxu0 0.0
          %1136 = vmatpush1.xpose.msra.mxu0 0.0
          %1137 = vmatprep.subr.mxu0 0.0
          %1138 = vmatpush1.xpose.msra.mxu0 0.0
          %1139 = vmatprep.subr.mxu0 0.0
          %1140 = vmatpush1.xpose.msra.mxu0 0.0
          %1141 = vmatprep.subr.mxu0 0.0
          %1142 = vmatpush1.xpose.msra.mxu0 0.0
          %1143 = vmatprep.subr.mxu0 0.0
          %1144 = vmatpush1.xpose.msra.mxu0 0.0
          %1145 = vmatprep.subr.mxu0 0.0
          %1146 = vmatpush1.xpose.msra.mxu0 0.0
          %1147 = vmatprep.subr.mxu0 0.0
          %1148 = vmatpush1.xpose.msra.mxu0 0.0
          %1149 = vmatprep.subr.mxu0 0.0
          %1150 = vmatpush1.xpose.msra.mxu0 0.0
          %1151 = vmatprep.subr.mxu0 0.0
          %1152 = vmatpush1.xpose.msra.mxu0 0.0
          %1153 = vmatprep.subr.mxu0 0.0
          %1154 = vmatpush1.xpose.msra.mxu0 0.0
          %1155 = vmatprep.subr.mxu0 0.0
          %1156 = vmatpush1.xpose.msra.mxu0 0.0
          %1157 = vmatprep.subr.mxu0 0.0
          %1158 = vmatpush1.xpose.msra.mxu0 0.0
          %1159 = vmatprep.subr.mxu0 0.0
          %1160 = vmatpush1.xpose.msra.mxu0 0.0
          %1161 = vmatprep.subr.mxu0 0.0
          %1162 = vmatpush1.xpose.msra.mxu0 0.0
          %1163 = vmatprep.subr.mxu0 0.0
          %1164 = vmatpush1.xpose.msra.mxu0 0.0
          %1165 = vmatprep.subr.mxu0 0.0
          %1166 = vmatpush1.xpose.msra.mxu0 0.0
          %1167 = vmatprep.subr.mxu0 0.0
          %1168 = vmatpush1.xpose.msra.mxu0 0.0
          %1169 = vmatprep.subr.mxu0 0.0
          %1170 = vmatpush1.xpose.msra.mxu0 0.0
          %1171 = vmatprep.subr.mxu0 0.0
          %1172 = vmatpush1.xpose.msra.mxu0 0.0
          %1173 = vmatprep.mubr.f32.mxu0 0.0
          %1174 = vmatmul.mubr.f32.gmra.mrb[0].mxu0 %v1105
          %v1175 = vpop.f32.mrb[0].mxu0
          %v1176 = vadd.f32 0.0, %v1175
          %v1177 = vpop.f32.mrb[0].mxu0
          %1178 = vdwg.mxu0
          %v1179 = vmul.f32 %v1176, 0.35355338
          %v1180 = vsel %vm760, %v1179, -1e+30
          %v1181 = vsel %vm713, %v1180, -inf
          %1182 = vmax.xlane.f32.xlu0 %v1181
          %v1183 = vpop.xlane.xlu0 %1182
          %v1184 = vmax.f32 %v745, %v1183
          %v1185 = vsub.f32 %v745, %v1184
          %v1186 = vmul.f32 %v1185, 1.442695
          %v1187 = vpow.pop %v1186
          %v1188 = vsub.f32 %v1180, %v1184
          %v1189 = vmul.f32 %v1188, 1.442695
          %v1190 = vpow.pop %v1189
          %v1191 = vmul.f32 %v1187, %v746
          %v1192 = vsel %vm713, %v1190, 0.0
          %1193 = vadd.xlane.f32.xlu0 %v1192
          %v1194 = vpop.xlane.xlu0 %1193
          %v1195 = vadd.f32 %v1191, %v1194
          %v1196 = vmul.f32 %v1187, %v747
          %1197 = vrot.lane.b32.xlu0 %v755, 112
          %v1198 = vpop.permute.xlu0 %1197
          %v1201 = vsel %vm713, %v1190, 0
          %1203 = vmatprep.subr.mxu0 0.0
          %1204 = vmatpush1.msra.mxu0 %v1198
          %1205 = vmatprep.subr.mxu0 0.0
          %1206 = vmatpush1.msra.mxu0 0.0
          %1207 = vmatprep.subr.mxu0 0.0
          %1208 = vmatpush1.msra.mxu0 0.0
          %1209 = vmatprep.subr.mxu0 0.0
          %1210 = vmatpush1.msra.mxu0 0.0
          %1211 = vmatprep.subr.mxu0 0.0
          %1212 = vmatpush1.msra.mxu0 0.0
          %1213 = vmatprep.subr.mxu0 0.0
          %1214 = vmatpush1.msra.mxu0 0.0
          %1215 = vmatprep.subr.mxu0 0.0
          %1216 = vmatpush1.msra.mxu0 0.0
          %1217 = vmatprep.subr.mxu0 0.0
          %1218 = vmatpush1.msra.mxu0 0.0
          %1219 = vmatprep.subr.mxu0 0.0
          %1220 = vmatpush1.msra.mxu0 0.0
          %1221 = vmatprep.subr.mxu0 0.0
          %1222 = vmatpush1.msra.mxu0 0.0
          %1223 = vmatprep.subr.mxu0 0.0
          %1224 = vmatpush1.msra.mxu0 0.0
          %1225 = vmatprep.subr.mxu0 0.0
          %1226 = vmatpush1.msra.mxu0 0.0
          %1227 = vmatprep.subr.mxu0 0.0
          %1228 = vmatpush1.msra.mxu0 0.0
          %1229 = vmatprep.subr.mxu0 0.0
          %1230 = vmatpush1.msra.mxu0 0.0
          %1231 = vmatprep.subr.mxu0 0.0
          %1232 = vmatpush1.msra.mxu0 0.0
          %1233 = vmatprep.subr.mxu0 0.0
          %1234 = vmatpush1.msra.mxu0 0.0
          %1235 = vmatprep.subr.mxu0 0.0
          %1236 = vmatpush1.msra.mxu0 0.0
          %1237 = vmatprep.subr.mxu0 0.0
          %1238 = vmatpush1.msra.mxu0 0.0
          %1239 = vmatprep.subr.mxu0 0.0
          %1240 = vmatpush1.msra.mxu0 0.0
          %1241 = vmatprep.subr.mxu0 0.0
          %1242 = vmatpush1.msra.mxu0 0.0
          %1243 = vmatprep.subr.mxu0 0.0
          %1244 = vmatpush1.msra.mxu0 0.0
          %1245 = vmatprep.subr.mxu0 0.0
          %1246 = vmatpush1.msra.mxu0 0.0
          %1247 = vmatprep.subr.mxu0 0.0
          %1248 = vmatpush1.msra.mxu0 0.0
          %1249 = vmatprep.subr.mxu0 0.0
          %1250 = vmatpush1.msra.mxu0 0.0
          %1251 = vmatprep.subr.mxu0 0.0
          %1252 = vmatpush1.msra.mxu0 0.0
          %1253 = vmatprep.subr.mxu0 0.0
          %1254 = vmatpush1.msra.mxu0 0.0
          %1255 = vmatprep.subr.mxu0 0.0
          %1256 = vmatpush1.msra.mxu0 0.0
          %1257 = vmatprep.subr.mxu0 0.0
          %1258 = vmatpush1.msra.mxu0 0.0
          %1259 = vmatprep.subr.mxu0 0.0
          %1260 = vmatpush1.msra.mxu0 0.0
          %1261 = vmatprep.subr.mxu0 0.0
          %1262 = vmatpush1.msra.mxu0 0.0
          %1263 = vmatprep.subr.mxu0 0.0
          %1264 = vmatpush1.msra.mxu0 0.0
          %1265 = vmatprep.subr.mxu0 0.0
          %1266 = vmatpush1.msra.mxu0 0.0
          %1267 = vmatprep.mubr.f32.mxu0 0.0
          %1268 = vmatmul.mubr.f32.gmra.mrb[0].mxu0 %v1201
          %v1269 = vpop.f32.mrb[0].mxu0
          %v1270 = vadd.f32 0.0, %v1269
          %v1271 = vpop.f32.mrb[0].mxu0
          %1272 = vdwg.mxu0
          %v1273 = vadd.f32 %v1196, %v1270
          %1274 = vrot.lane.b32.xlu0 %v753, 104
          %v1275 = vpop.permute.xlu0 %1274
          %v1277 = vsel %vm713, %v665, 0
          %v1279 = vsel %vm713, %v1275, 0
          %1281 = vmatprep.subr.mxu0 0.0
          %1282 = vmatpush1.xpose.msra.mxu0 %v1279
          %1283 = vmatprep.subr.mxu0 0.0
          %1284 = vmatpush1.xpose.msra.mxu0 0.0
          %1285 = vmatprep.subr.mxu0 0.0
          %1286 = vmatpush1.xpose.msra.mxu0 0.0
          %1287 = vmatprep.subr.mxu0 0.0
          %1288 = vmatpush1.xpose.msra.mxu0 0.0
          %1289 = vmatprep.subr.mxu0 0.0
          %1290 = vmatpush1.xpose.msra.mxu0 0.0
          %1291 = vmatprep.subr.mxu0 0.0
          %1292 = vmatpush1.xpose.msra.mxu0 0.0
          %1293 = vmatprep.subr.mxu0 0.0
          %1294 = vmatpush1.xpose.msra.mxu0 0.0
          %1295 = vmatprep.subr.mxu0 0.0
          %1296 = vmatpush1.xpose.msra.mxu0 0.0
          %1297 = vmatprep.subr.mxu0 0.0
          %1298 = vmatpush1.xpose.msra.mxu0 0.0
          %1299 = vmatprep.subr.mxu0 0.0
          %1300 = vmatpush1.xpose.msra.mxu0 0.0
          %1301 = vmatprep.subr.mxu0 0.0
          %1302 = vmatpush1.xpose.msra.mxu0 0.0
          %1303 = vmatprep.subr.mxu0 0.0
          %1304 = vmatpush1.xpose.msra.mxu0 0.0
          %1305 = vmatprep.subr.mxu0 0.0
          %1306 = vmatpush1.xpose.msra.mxu0 0.0
          %1307 = vmatprep.subr.mxu0 0.0
          %1308 = vmatpush1.xpose.msra.mxu0 0.0
          %1309 = vmatprep.subr.mxu0 0.0
          %1310 = vmatpush1.xpose.msra.mxu0 0.0
          %1311 = vmatprep.subr.mxu0 0.0
          %1312 = vmatpush1.xpose.msra.mxu0 0.0
          %1313 = vmatprep.subr.mxu0 0.0
          %1314 = vmatpush1.xpose.msra.mxu0 0.0
          %1315 = vmatprep.subr.mxu0 0.0
          %1316 = vmatpush1.xpose.msra.mxu0 0.0
          %1317 = vmatprep.subr.mxu0 0.0
          %1318 = vmatpush1.xpose.msra.mxu0 0.0
          %1319 = vmatprep.subr.mxu0 0.0
          %1320 = vmatpush1.xpose.msra.mxu0 0.0
          %1321 = vmatprep.subr.mxu0 0.0
          %1322 = vmatpush1.xpose.msra.mxu0 0.0
          %1323 = vmatprep.subr.mxu0 0.0
          %1324 = vmatpush1.xpose.msra.mxu0 0.0
          %1325 = vmatprep.subr.mxu0 0.0
          %1326 = vmatpush1.xpose.msra.mxu0 0.0
          %1327 = vmatprep.subr.mxu0 0.0
          %1328 = vmatpush1.xpose.msra.mxu0 0.0
          %1329 = vmatprep.subr.mxu0 0.0
          %1330 = vmatpush1.xpose.msra.mxu0 0.0
          %1331 = vmatprep.subr.mxu0 0.0
          %1332 = vmatpush1.xpose.msra.mxu0 0.0
          %1333 = vmatprep.subr.mxu0 0.0
          %1334 = vmatpush1.xpose.msra.mxu0 0.0
          %1335 = vmatprep.subr.mxu0 0.0
          %1336 = vmatpush1.xpose.msra.mxu0 0.0
          %1337 = vmatprep.subr.mxu0 0.0
          %1338 = vmatpush1.xpose.msra.mxu0 0.0
          %1339 = vmatprep.subr.mxu0 0.0
          %1340 = vmatpush1.xpose.msra.mxu0 0.0
          %1341 = vmatprep.subr.mxu0 0.0
          %1342 = vmatpush1.xpose.msra.mxu0 0.0
          %1343 = vmatprep.subr.mxu0 0.0
          %1344 = vmatpush1.xpose.msra.mxu0 0.0
          %1345 = vmatprep.mubr.f32.mxu0 0.0
          %1346 = vmatmul.mubr.f32.gmra.mrb[0].mxu0 %v1277
          %v1347 = vpop.f32.mrb[0].mxu0
          %v1348 = vadd.f32 0.0, %v1347
          %v1349 = vpop.f32.mrb[0].mxu0
          %1350 = vdwg.mxu0
          %v1351 = vmul.f32 %v1348, 0.35355338
          %v1352 = vsel %vm760, %v1351, -1e+30
          %v1353 = vsel %vm713, %v1352, -inf
          %1354 = vmax.xlane.f32.xlu0 %v1353
          %v1355 = vpop.xlane.xlu0 %1354
          %v1356 = vmax.f32 %v748, %v1355
          %v1357 = vsub.f32 %v748, %v1356
          %v1358 = vmul.f32 %v1357, 1.442695
          %v1359 = vpow.pop %v1358
          %v1360 = vsub.f32 %v1352, %v1356
          %v1361 = vmul.f32 %v1360, 1.442695
          %v1362 = vpow.pop %v1361
          %v1363 = vmul.f32 %v1359, %v749
          %v1364 = vsel %vm713, %v1362, 0.0
          %1365 = vadd.xlane.f32.xlu0 %v1364
          %v1366 = vpop.xlane.xlu0 %1365
          %v1367 = vadd.f32 %v1363, %v1366
          %v1368 = vmul.f32 %v1359, %v750
          %1369 = vrot.lane.b32.xlu0 %v755, 104
          %v1370 = vpop.permute.xlu0 %1369
          %v1373 = vsel %vm713, %v1362, 0
          %1375 = vmatprep.subr.mxu0 0.0
          %1376 = vmatpush1.msra.mxu0 %v1370
          %1377 = vmatprep.subr.mxu0 0.0
          %1378 = vmatpush1.msra.mxu0 0.0
          %1379 = vmatprep.subr.mxu0 0.0
          %1380 = vmatpush1.msra.mxu0 0.0
          %1381 = vmatprep.subr.mxu0 0.0
          %1382 = vmatpush1.msra.mxu0 0.0
          %1383 = vmatprep.subr.mxu0 0.0
          %1384 = vmatpush1.msra.mxu0 0.0
          %1385 = vmatprep.subr.mxu0 0.0
          %1386 = vmatpush1.msra.mxu0 0.0
          %1387 = vmatprep.subr.mxu0 0.0
          %1388 = vmatpush1.msra.mxu0 0.0
          %1389 = vmatprep.subr.mxu0 0.0
          %1390 = vmatpush1.msra.mxu0 0.0
          %1391 = vmatprep.subr.mxu0 0.0
          %1392 = vmatpush1.msra.mxu0 0.0
          %1393 = vmatprep.subr.mxu0 0.0
          %1394 = vmatpush1.msra.mxu0 0.0
          %1395 = vmatprep.subr.mxu0 0.0
          %1396 = vmatpush1.msra.mxu0 0.0
          %1397 = vmatprep.subr.mxu0 0.0
          %1398 = vmatpush1.msra.mxu0 0.0
          %1399 = vmatprep.subr.mxu0 0.0
          %1400 = vmatpush1.msra.mxu0 0.0
          %1401 = vmatprep.subr.mxu0 0.0
          %1402 = vmatpush1.msra.mxu0 0.0
          %1403 = vmatprep.subr.mxu0 0.0
          %1404 = vmatpush1.msra.mxu0 0.0
          %1405 = vmatprep.subr.mxu0 0.0
          %1406 = vmatpush1.msra.mxu0 0.0
          %1407 = vmatprep.subr.mxu0 0.0
          %1408 = vmatpush1.msra.mxu0 0.0
          %1409 = vmatprep.subr.mxu0 0.0
          %1410 = vmatpush1.msra.mxu0 0.0
          %1411 = vmatprep.subr.mxu0 0.0
          %1412 = vmatpush1.msra.mxu0 0.0
          %1413 = vmatprep.subr.mxu0 0.0
          %1414 = vmatpush1.msra.mxu0 0.0
          %1415 = vmatprep.subr.mxu0 0.0
          %1416 = vmatpush1.msra.mxu0 0.0
          %1417 = vmatprep.subr.mxu0 0.0
          %1418 = vmatpush1.msra.mxu0 0.0
          %1419 = vmatprep.subr.mxu0 0.0
          %1420 = vmatpush1.msra.mxu0 0.0
          %1421 = vmatprep.subr.mxu0 0.0
          %1422 = vmatpush1.msra.mxu0 0.0
          %1423 = vmatprep.subr.mxu0 0.0
          %1424 = vmatpush1.msra.mxu0 0.0
          %1425 = vmatprep.subr.mxu0 0.0
          %1426 = vmatpush1.msra.mxu0 0.0
          %1427 = vmatprep.subr.mxu0 0.0
          %1428 = vmatpush1.msra.mxu0 0.0
          %1429 = vmatprep.subr.mxu0 0.0
          %1430 = vmatpush1.msra.mxu0 0.0
          %1431 = vmatprep.subr.mxu0 0.0
          %1432 = vmatpush1.msra.mxu0 0.0
          %1433 = vmatprep.subr.mxu0 0.0
          %1434 = vmatpush1.msra.mxu0 0.0
          %1435 = vmatprep.subr.mxu0 0.0
          %1436 = vmatpush1.msra.mxu0 0.0
          %1437 = vmatprep.subr.mxu0 0.0
          %1438 = vmatpush1.msra.mxu0 0.0
          %1439 = vmatprep.mubr.f32.mxu0 0.0
          %1440 = vmatmul.mubr.f32.gmra.mrb[0].mxu0 %v1373
          %v1441 = vpop.f32.mrb[0].mxu0
          %v1442 = vadd.f32 0.0, %v1441
          %v1443 = vpop.f32.mrb[0].mxu0
          %1444 = vdwg.mxu0
          %v1445 = vadd.f32 %v1368, %v1442
        $region53: #{tpu_custom_call.1} parent=47 // loop_footer
          %s736 = sadd.s32 %s734, 1
        $region54: #{tpu_custom_call.1} parent=47 // loop_footer_branch
          %733 = sbr.rel target = $region50
        $region55: #{tpu_custom_call.1} parent=47 // loop_exit
          _
        %v1446 = vrcp.pop %v740
        %v1447 = vmul.f32 %v741, %v1446
        %v1448 = vrcp.pop %v743
        %v1449 = vmul.f32 %v744, %v1448
        %v1450 = vrcp.pop %v746
        %v1451 = vmul.f32 %v747, %v1450
        %v1452 = vrcp.pop %v749
        %v1453 = vmul.f32 %v750, %v1452
        %1455 = vrot.lane.b32.xlu0 %v1449, 8
        %v1456 = vpop.permute.xlu0 %1455
        %1459 = vrot.lane.b32.xlu0 %v1451, 16
        %v1460 = vpop.permute.xlu0 %1459
        %1463 = vrot.lane.b32.xlu0 %v1453, 24
        %v1464 = vpop.permute.xlu0 %1463
        %v1466 = vsel %vm713, %v1447, %v1456
        %v1467 = vsel %vm715, %v1466, %v1460
        %v1468 = vsel %vm717, %v1467, %v1464
        %v1469 = vld [vmem:[%s4] sm:$0xff]
        %v1470 = vld [vmem:[%s4 + $0x8] sm:$0xff]
        %v1471 = vld [vmem:[%s4 + $0x10] sm:$0xff]
        %v1472 = vld [vmem:[%s4 + $0x18] sm:$0xff]
        %v1474 = vsel %vm339, %v1468, 0
        %1476 = vmatprep.subr.mxu0 0.0
        %1477 = vmatpush1.msra.mxu0 %v1469
        %1478 = vmatprep.subr.mxu0 0.0
        %1479 = vmatpush1.msra.mxu0 %v1470
        %1480 = vmatprep.subr.mxu0 0.0
        %1481 = vmatpush1.msra.mxu0 %v1471
        %1482 = vmatprep.subr.mxu0 0.0
        %1483 = vmatpush1.msra.mxu0 %v1472
        %1484 = vmatprep.subr.mxu0 0.0
        %1485 = vmatpush1.msra.mxu0 0.0
        %1486 = vmatprep.subr.mxu0 0.0
        %1487 = vmatpush1.msra.mxu0 0.0
        %1488 = vmatprep.subr.mxu0 0.0
        %1489 = vmatpush1.msra.mxu0 0.0
        %1490 = vmatprep.subr.mxu0 0.0
        %1491 = vmatpush1.msra.mxu0 0.0
        %1492 = vmatprep.subr.mxu0 0.0
        %1493 = vmatpush1.msra.mxu0 0.0
        %1494 = vmatprep.subr.mxu0 0.0
        %1495 = vmatpush1.msra.mxu0 0.0
        %1496 = vmatprep.subr.mxu0 0.0
        %1497 = vmatpush1.msra.mxu0 0.0
        %1498 = vmatprep.subr.mxu0 0.0
        %1499 = vmatpush1.msra.mxu0 0.0
        %1500 = vmatprep.subr.mxu0 0.0
        %1501 = vmatpush1.msra.mxu0 0.0
        %1502 = vmatprep.subr.mxu0 0.0
        %1503 = vmatpush1.msra.mxu0 0.0
        %1504 = vmatprep.subr.mxu0 0.0
        %1505 = vmatpush1.msra.mxu0 0.0
        %1506 = vmatprep.subr.mxu0 0.0
        %1507 = vmatpush1.msra.mxu0 0.0
        %1508 = vmatprep.subr.mxu0 0.0
        %1509 = vmatpush1.msra.mxu0 0.0
        %1510 = vmatprep.subr.mxu0 0.0
        %1511 = vmatpush1.msra.mxu0 0.0
        %1512 = vmatprep.subr.mxu0 0.0
        %1513 = vmatpush1.msra.mxu0 0.0
        %1514 = vmatprep.subr.mxu0 0.0
        %1515 = vmatpush1.msra.mxu0 0.0
        %1516 = vmatprep.subr.mxu0 0.0
        %1517 = vmatpush1.msra.mxu0 0.0
        %1518 = vmatprep.subr.mxu0 0.0
        %1519 = vmatpush1.msra.mxu0 0.0
        %1520 = vmatprep.subr.mxu0 0.0
        %1521 = vmatpush1.msra.mxu0 0.0
        %1522 = vmatprep.subr.mxu0 0.0
        %1523 = vmatpush1.msra.mxu0 0.0
        %1524 = vmatprep.subr.mxu0 0.0
        %1525 = vmatpush1.msra.mxu0 0.0
        %1526 = vmatprep.subr.mxu0 0.0
        %1527 = vmatpush1.msra.mxu0 0.0
        %1528 = vmatprep.subr.mxu0 0.0
        %1529 = vmatpush1.msra.mxu0 0.0
        %1530 = vmatprep.subr.mxu0 0.0
        %1531 = vmatpush1.msra.mxu0 0.0
        %1532 = vmatprep.subr.mxu0 0.0
        %1533 = vmatpush1.msra.mxu0 0.0
        %1534 = vmatprep.subr.mxu0 0.0
        %1535 = vmatpush1.msra.mxu0 0.0
        %1536 = vmatprep.subr.mxu0 0.0
        %1537 = vmatpush1.msra.mxu0 0.0
        %1538 = vmatprep.subr.mxu0 0.0
        %1539 = vmatpush1.msra.mxu0 0.0
        %1540 = vmatprep.mubr.f32.mxu0 0.0
        %1541 = vmatmul.mubr.f32.gmra.mrb[0].mxu0 %v1474
        %v1542 = vpop.f32.mrb[0].mxu0
        %v1543 = vadd.f32 0.0, %v1542
        %v1544 = vpop.f32.mrb[0].mxu0
        %1545 = vdwg.mxu0
        %v1546 = vmul.f32 %v1543, 0.5
        %v1547 = vadd.f32 %v337, %v1546
        %v1548 = vmul.f32 %v1547, %v1547
        %v1549 = vsel %vm339, %v1548, 0.0
        %1550 = vadd.xlane.f32.xlu0 %v1549
        %v1551 = vpop.xlane.xlu0 %1550
        %v1552 = vmul.f32 %v1551, %v343
        %v1553 = vadd.f32 %v1552, 1e-06
        %v1554 = vrsqrt.pop %v1553
        %v1555 = vmul.f32 %v1547, %v1554
        %v1556 = vld [vmem:[%s5] sm:$0xff]
        %v1557 = vld [vmem:[%s5 + $0x8] sm:$0xff]
        %v1558 = vld [vmem:[%s5 + $0x10] sm:$0xff]
        %v1559 = vld [vmem:[%s5 + $0x18] sm:$0xff]
        %v1561 = vsel %vm339, %v1555, 0
        %1563 = vmatprep.subr.mxu0 0.0
        %1564 = vmatpush1.msra.mxu0 %v1556
        %1565 = vmatprep.subr.mxu0 0.0
        %1566 = vmatpush1.msra.mxu0 %v1557
        %1567 = vmatprep.subr.mxu0 0.0
        %1568 = vmatpush1.msra.mxu0 %v1558
        %1569 = vmatprep.subr.mxu0 0.0
        %1570 = vmatpush1.msra.mxu0 %v1559
        %1571 = vmatprep.subr.mxu0 0.0
        %1572 = vmatpush1.msra.mxu0 0.0
        %1573 = vmatprep.subr.mxu0 0.0
        %1574 = vmatpush1.msra.mxu0 0.0
        %1575 = vmatprep.subr.mxu0 0.0
        %1576 = vmatpush1.msra.mxu0 0.0
        %1577 = vmatprep.subr.mxu0 0.0
        %1578 = vmatpush1.msra.mxu0 0.0
        %1579 = vmatprep.subr.mxu0 0.0
        %1580 = vmatpush1.msra.mxu0 0.0
        %1581 = vmatprep.subr.mxu0 0.0
        %1582 = vmatpush1.msra.mxu0 0.0
        %1583 = vmatprep.subr.mxu0 0.0
        %1584 = vmatpush1.msra.mxu0 0.0
        %1585 = vmatprep.subr.mxu0 0.0
        %1586 = vmatpush1.msra.mxu0 0.0
        %1587 = vmatprep.subr.mxu0 0.0
        %1588 = vmatpush1.msra.mxu0 0.0
        %1589 = vmatprep.subr.mxu0 0.0
        %1590 = vmatpush1.msra.mxu0 0.0
        %1591 = vmatprep.subr.mxu0 0.0
        %1592 = vmatpush1.msra.mxu0 0.0
        %1593 = vmatprep.subr.mxu0 0.0
        %1594 = vmatpush1.msra.mxu0 0.0
        %1595 = vmatprep.subr.mxu0 0.0
        %1596 = vmatpush1.msra.mxu0 0.0
        %1597 = vmatprep.subr.mxu0 0.0
        %1598 = vmatpush1.msra.mxu0 0.0
        %1599 = vmatprep.subr.mxu0 0.0
        %1600 = vmatpush1.msra.mxu0 0.0
        %1601 = vmatprep.subr.mxu0 0.0
        %1602 = vmatpush1.msra.mxu0 0.0
        %1603 = vmatprep.subr.mxu0 0.0
        %1604 = vmatpush1.msra.mxu0 0.0
        %1605 = vmatprep.subr.mxu0 0.0
        %1606 = vmatpush1.msra.mxu0 0.0
        %1607 = vmatprep.subr.mxu0 0.0
        %1608 = vmatpush1.msra.mxu0 0.0
        %1609 = vmatprep.subr.mxu0 0.0
        %1610 = vmatpush1.msra.mxu0 0.0
        %1611 = vmatprep.subr.mxu0 0.0
        %1612 = vmatpush1.msra.mxu0 0.0
        %1613 = vmatprep.subr.mxu0 0.0
        %1614 = vmatpush1.msra.mxu0 0.0
        %1615 = vmatprep.subr.mxu0 0.0
        %1616 = vmatpush1.msra.mxu0 0.0
        %1617 = vmatprep.subr.mxu0 0.0
        %1618 = vmatpush1.msra.mxu0 0.0
        %1619 = vmatprep.subr.mxu0 0.0
        %1620 = vmatpush1.msra.mxu0 0.0
        %1621 = vmatprep.subr.mxu0 0.0
        %1622 = vmatpush1.msra.mxu0 0.0
        %1623 = vmatprep.subr.mxu0 0.0
        %1624 = vmatpush1.msra.mxu0 0.0
        %1625 = vmatprep.subr.mxu0 0.0
        %1626 = vmatpush1.msra.mxu0 0.0
        %1627 = vmatprep.mubr.f32.mxu0 0.0
        %1628 = vmatmul.mubr.f32.gmra.mrb[0].mxu0 %v1561
        %v1629 = vpop.f32.mrb[0].mxu0
        %v1630 = vadd.f32 0.0, %v1629
        %v1631 = vpop.f32.mrb[0].mxu0
        %1632 = vdwg.mxu0
        %v1633 = vmul.f32 %v1630, 0.5
        %v1634 = vmul.f32 %v1630, 0.70710677
        %v1635 = verf.f32.pop %v1634
        %v1636 = vadd.f32 %v1635, 1.0
        %v1637 = vmul.f32 %v1633, %v1636
        %v1638 = vld [vmem:[%s6] sm:$0xff]
        %v1639 = vld [vmem:[%s6 + $0x8] sm:$0xff]
        %v1640 = vld [vmem:[%s6 + $0x10] sm:$0xff]
        %v1641 = vld [vmem:[%s6 + $0x18] sm:$0xff]
        %v1642 = vld [vmem:[%s6 + $0x20] sm:$0xff]
        %v1643 = vld [vmem:[%s6 + $0x28] sm:$0xff]
        %v1644 = vld [vmem:[%s6 + $0x30] sm:$0xff]
        %v1645 = vld [vmem:[%s6 + $0x38] sm:$0xff]
        %v1646 = vld [vmem:[%s6 + $0x40] sm:$0xff]
        %v1647 = vld [vmem:[%s6 + $0x48] sm:$0xff]
        %v1648 = vld [vmem:[%s6 + $0x50] sm:$0xff]
        %v1649 = vld [vmem:[%s6 + $0x58] sm:$0xff]
        %v1650 = vld [vmem:[%s6 + $0x60] sm:$0xff]
        %v1651 = vld [vmem:[%s6 + $0x68] sm:$0xff]
        %v1652 = vld [vmem:[%s6 + $0x70] sm:$0xff]
        %v1653 = vld [vmem:[%s6 + $0x78] sm:$0xff]
        %1654 = vmatprep.subr.mxu0 0.0
        %1655 = vmatpush1.msra.mxu0 %v1638
        %1656 = vmatprep.subr.mxu0 0.0
        %1657 = vmatpush1.msra.mxu0 %v1639
        %1658 = vmatprep.subr.mxu0 0.0
        %1659 = vmatpush1.msra.mxu0 %v1640
        %1660 = vmatprep.subr.mxu0 0.0
        %1661 = vmatpush1.msra.mxu0 %v1641
        %1662 = vmatprep.subr.mxu0 0.0
        %1663 = vmatpush1.msra.mxu0 %v1642
        %1664 = vmatprep.subr.mxu0 0.0
        %1665 = vmatpush1.msra.mxu0 %v1643
        %1666 = vmatprep.subr.mxu0 0.0
        %1667 = vmatpush1.msra.mxu0 %v1644
        %1668 = vmatprep.subr.mxu0 0.0
        %1669 = vmatpush1.msra.mxu0 %v1645
        %1670 = vmatprep.subr.mxu0 0.0
        %1671 = vmatpush1.msra.mxu0 %v1646
        %1672 = vmatprep.subr.mxu0 0.0
        %1673 = vmatpush1.msra.mxu0 %v1647
        %1674 = vmatprep.subr.mxu0 0.0
        %1675 = vmatpush1.msra.mxu0 %v1648
        %1676 = vmatprep.subr.mxu0 0.0
        %1677 = vmatpush1.msra.mxu0 %v1649
        %1678 = vmatprep.subr.mxu0 0.0
        %1679 = vmatpush1.msra.mxu0 %v1650
        %1680 = vmatprep.subr.mxu0 0.0
        %1681 = vmatpush1.msra.mxu0 %v1651
        %1682 = vmatprep.subr.mxu0 0.0
        %1683 = vmatpush1.msra.mxu0 %v1652
        %1684 = vmatprep.subr.mxu0 0.0
        %1685 = vmatpush1.msra.mxu0 %v1653
        %1686 = vmatprep.subr.mxu0 0.0
        %1687 = vmatpush1.msra.mxu0 0.0
        %1688 = vmatprep.subr.mxu0 0.0
        %1689 = vmatpush1.msra.mxu0 0.0
        %1690 = vmatprep.subr.mxu0 0.0
        %1691 = vmatpush1.msra.mxu0 0.0
        %1692 = vmatprep.subr.mxu0 0.0
        %1693 = vmatpush1.msra.mxu0 0.0
        %1694 = vmatprep.subr.mxu0 0.0
        %1695 = vmatpush1.msra.mxu0 0.0
        %1696 = vmatprep.subr.mxu0 0.0
        %1697 = vmatpush1.msra.mxu0 0.0
        %1698 = vmatprep.subr.mxu0 0.0
        %1699 = vmatpush1.msra.mxu0 0.0
        %1700 = vmatprep.subr.mxu0 0.0
        %1701 = vmatpush1.msra.mxu0 0.0
        %1702 = vmatprep.subr.mxu0 0.0
        %1703 = vmatpush1.msra.mxu0 0.0
        %1704 = vmatprep.subr.mxu0 0.0
        %1705 = vmatpush1.msra.mxu0 0.0
        %1706 = vmatprep.subr.mxu0 0.0
        %1707 = vmatpush1.msra.mxu0 0.0
        %1708 = vmatprep.subr.mxu0 0.0
        %1709 = vmatpush1.msra.mxu0 0.0
        %1710 = vmatprep.subr.mxu0 0.0
        %1711 = vmatpush1.msra.mxu0 0.0
        %1712 = vmatprep.subr.mxu0 0.0
        %1713 = vmatpush1.msra.mxu0 0.0
        %1714 = vmatprep.subr.mxu0 0.0
        %1715 = vmatpush1.msra.mxu0 0.0
        %1716 = vmatprep.subr.mxu0 0.0
        %1717 = vmatpush1.msra.mxu0 0.0
        %1718 = vmatprep.mubr.f32.mxu0 0.0
        %1719 = vmatmul.mubr.f32.gmra.mrb[0].mxu0 %v1637
        %v1720 = vpop.f32.mrb[0].mxu0
        %v1721 = vadd.f32 0.0, %v1720
        %v1722 = vpop.f32.mrb[0].mxu0
        %1723 = vdwg.mxu0
        %v1724 = vadd.f32 %v1547, %v1721
        %1725 = vst.msk [vmem:[%s319] sm:$0xff] %vm339, %v1724
        %s1726 = sand.u32 %s207, 1
        %s1727 = scalar_lea.sflag [#allocation5], %s1726
        %s1728 = sand.u32 %s207, 1
        %s1729 = smul.addr %s1728, 8
        %s1730 = scalar_lea.vmem [#allocation4], %s1729
        // Predicated region
        $region56: #{tpu_custom_call.1} parent=47 // pred_check
          %p1731 = pneg %p217
        $region57: #{tpu_custom_call.1} parent=47 // pred_check_branch
          %1733 = sbr.rel (%p1731) target = $region59
        $region58: #{tpu_custom_call.1} parent=47 // pred_region
          %s1735 = ssub.s32 128, 128
          %1736 = vsyncadd %s1727, %s1735
          %s1737 = smul.addr %s25, 2
          %s1738 = sadd.s32 %s26, %s1737
          %s1739 = smul.addr %s1738, 128
          %s1740 = scalar_lea.hbm %s7, %s1739
          %s1742 = sshll.u32 %s1730, 4
          %s1743 = int_to_ptr.vmem [resolvable:$true] %s1742
          %1745 = dma.vmem_to_hbm [thread:$0]  %s1743, 128, %s1740, %s1727
        $region59: #{tpu_custom_call.1} parent=47 // pred_fallthru
          _
      $region48: #{tpu_custom_call.1} parent=5 // pred_fallthru
        _
      %p1746 = scmp.le.s32.totalorder 2, %s16
      // Predicated region
      $region60: #{tpu_custom_call.1} parent=5 // pred_check
        %p1747 = pneg %p1746
      $region61: #{tpu_custom_call.1} parent=5 // pred_check_branch
        %1749 = sbr.rel (%p1747) target = $region63
      $region62: #{tpu_custom_call.1} parent=5 // pred_region
        %s1750 = ssub.s32 %s16, 2
        // Predicated region
        $region64: #{tpu_custom_call.1} parent=62 // pred_check
          %p1751 = pneg %p223
        $region65: #{tpu_custom_call.1} parent=62 // pred_check_branch
          %1753 = sbr.rel (%p1751) target = $region67
        $region66: #{tpu_custom_call.1} parent=62 // pred_region
          %s1754 = sand.u32 %s208, 1
          %s1755 = scalar_lea.sflag [#allocation5], %s1754
          %s1756 = sand.u32 %s208, 1
          %s1757 = smul.addr %s1756, 8
          %s1758 = scalar_lea.vmem [#allocation4], %s1757
          %1759 = dma.done %s1755, 128
        $region67: #{tpu_custom_call.1} parent=62 // pred_fallthru
          _
      $region63: #{tpu_custom_call.1} parent=5 // pred_fallthru
        _
    $region6: #{tpu_custom_call.1} parent=1 // loop_footer
      %s20 = sadd.s32 1, %s16
    $region7: #{tpu_custom_call.1} parent=1 // loop_footer_branch
      %15 = sbr.rel target = $region3
    $region8: #{tpu_custom_call.1} parent=1 // loop_exit
      _
    %1760 = vsyncpa [#allocation5], 1
    %s1761 = scalar_lea.sflag [#allocation5], 1
    %1762 = vsyncpa %s1761, 1

</llo_original>
